<compile_context>
chip_gen: v6e
topology: v6e:2x2x1
jax: 0.10.0
libtpu: 0.0.40
codegen_flags: <defaults>
</compile_context>

<pallas_src>
import functools
import math

import jax
import jax.numpy as jnp
from jax import lax
from jax.experimental import pallas as pl
from jax.experimental.pallas import tpu as pltpu


# -----------------------------------------------------------------------------
# helpers
# -----------------------------------------------------------------------------
def _pick_tile(dim, prefs):
    """Largest preferred tile that divides `dim`, else the full dim (always legal)."""
    for p in prefs:
        if dim % p == 0:
            return p
    return dim


def _dot_nt(a, b):
    """a (M, D) . b (N, D)^T -> (M, N), contracting the last dim of both (MXU)."""
    return lax.dot_general(a, b, (((1,), (1,)), ((), ())),
                           preferred_element_type=jnp.float32)


def _cparams(sem, vmem_mb=48):
    return pltpu.CompilerParams(dimension_semantics=sem,
                                vmem_limit_bytes=vmem_mb * 1024 * 1024)


# -----------------------------------------------------------------------------
# Kernel 1: tiled matmul + bias + scale + activation + row-mask epilogue
# -----------------------------------------------------------------------------
def _matmul_kernel(x_ref, w_ref, b_ref, m_ref, o_ref, acc_ref, *, scale, act):
    @pl.when(pl.program_id(2) == 0)
    def _init():
        acc_ref[...] = jnp.zeros_like(acc_ref)

    acc_ref[...] += jnp.dot(x_ref[...].astype(jnp.bfloat16),
                            w_ref[...].astype(jnp.bfloat16),
                            preferred_element_type=jnp.float32)

    @pl.when(pl.program_id(2) == pl.num_programs(2) - 1)
    def _finalize():
        y = (acc_ref[...] + b_ref[...]) * scale
        if act == "leaky":                       # LeakyReLU(0.1)
            y = jnp.where(y >= 0.0, y, 0.1 * y)
        elif act == "relu":
            y = jnp.maximum(y, 0.0)
        o_ref[...] = (y * m_ref[...]).astype(o_ref.dtype)


def matmul_bias_act(x, w, b, rowmask, *, scale=1.0, act="none"):
    """x: (M, K), w: (K, N), b: (N,), rowmask: (M, 1) -> (M, N)."""
    M, K = x.shape
    N = w.shape[1]
    tm = _pick_tile(M, (256, 128))
    tn = _pick_tile(N, (256, 128))
    tk = _pick_tile(K, (512, 256))
    grid = (M // tm, N // tn, K // tk)
    kernel = functools.partial(_matmul_kernel, scale=float(scale), act=act)
    return pl.pallas_call(
        kernel,
        out_shape=jax.ShapeDtypeStruct((M, N), jnp.float32),
        grid=grid,
        in_specs=[
            pl.BlockSpec((tm, tk), lambda i, j, k: (i, k)),
            pl.BlockSpec((tk, tn), lambda i, j, k: (k, j)),
            pl.BlockSpec((1, tn), lambda i, j, k: (0, j)),
            pl.BlockSpec((tm, 1), lambda i, j, k: (i, 0)),
        ],
        out_specs=pl.BlockSpec((tm, tn), lambda i, j, k: (i, j)),
        scratch_shapes=[pltpu.VMEM((tm, tn), jnp.float32)],
        compiler_params=_cparams(("parallel", "parallel", "arbitrary")),
    )(x, w, b.reshape(1, N), rowmask)


# -----------------------------------------------------------------------------
# Kernel 2: fused  LN(res + a @ w + b) * rowmask   (conv_o + residual + norm_1)
# -----------------------------------------------------------------------------
def _matmul_add_ln_kernel(a_ref, w_ref, b_ref, r_ref, g_ref, be_ref, m_ref, o_ref, *, eps):
    y = jnp.dot(a_ref[...].astype(jnp.bfloat16),
                w_ref[...].astype(jnp.bfloat16),
                preferred_element_type=jnp.float32)
    z = r_ref[...] + y + b_ref[...]
    mean = jnp.mean(z, axis=-1, keepdims=True)
    var = jnp.mean(jnp.square(z - mean), axis=-1, keepdims=True)
    zn = (z - mean) * lax.rsqrt(var + eps)
    o_ref[...] = ((zn * g_ref[...] + be_ref[...]) * m_ref[...]).astype(o_ref.dtype)


def matmul_add_ln(a, w, b, res, gamma, beta, rowmask, eps=1e-5):
    M, K = a.shape
    N = w.shape[1]
    tm = _pick_tile(M, (256, 128))
    return pl.pallas_call(
        functools.partial(_matmul_add_ln_kernel, eps=float(eps)),
        out_shape=jax.ShapeDtypeStruct((M, N), jnp.float32),
        grid=(M // tm,),
        in_specs=[
            pl.BlockSpec((tm, K), lambda i: (i, 0)),
            pl.BlockSpec((K, N), lambda i: (0, 0)),
            pl.BlockSpec((1, N), lambda i: (0, 0)),
            pl.BlockSpec((tm, N), lambda i: (i, 0)),
            pl.BlockSpec((1, N), lambda i: (0, 0)),
            pl.BlockSpec((1, N), lambda i: (0, 0)),
            pl.BlockSpec((tm, 1), lambda i: (i, 0)),
        ],
        out_specs=pl.BlockSpec((tm, N), lambda i: (i, 0)),
        compiler_params=_cparams(("parallel",)),
    )(a, w, b.reshape(1, N), res, gamma.reshape(1, N), beta.reshape(1, N), rowmask)


# -----------------------------------------------------------------------------
# Kernel 3: multi-head attention with VITS relative positions (one batch / call)
# -----------------------------------------------------------------------------
def _attn_kernel(len_ref, qkv_ref, ek_ref, ev_ref, o_ref, *, heads, k_channels, window):
    b = pl.program_id(0)
    T, H = o_ref.shape
    seq_len = len_ref[b]

    row = lax.broadcasted_iota(jnp.int32, (T, T), 0)
    col = lax.broadcasted_iota(jnp.int32, (T, T), 1)
    valid = (row < seq_len) & (col < seq_len)          # attn_mask built in-kernel
    off = col - row                                    # relative offset j - i
    # Diagonal-band selector masks, hoisted out of the head loop and shared by the
    # relative-key scatter and relative-value gather.
    band = [off == d for d in range(-window, window + 1)]

    scale = 1.0 / math.sqrt(k_channels)
    ek = ek_ref[...].astype(jnp.bfloat16)              # (2W+1, Dk)
    ev = ev_ref[...]                                   # (2W+1, Dk), f32

    outs = []
    for h in range(heads):
        lo = h * k_channels
        q = qkv_ref[:, lo:lo + k_channels]
        k = qkv_ref[:, H + lo:H + lo + k_channels]
        v = qkv_ref[:, 2 * H + lo:2 * H + lo + k_channels]
        qb = q.astype(jnp.bfloat16)
        kb = k.astype(jnp.bfloat16)

        # content logits + relative-key logits (both on the MXU)
        s = _dot_nt(qb, kb) * scale                                    # (T, T)
        bk = _dot_nt(qb, ek) * scale                                   # (T, 2W+1)
        for c in range(2 * window + 1):
            s = s + jnp.where(band[c], bk[:, c:c + 1], 0.0)

        # mask + softmax (f32)
        s = jnp.where(valid, s, -1e4)
        s_max = jnp.max(s, axis=-1, keepdims=True)
        e = jnp.exp(s - s_max)
        denom = jnp.sum(e, axis=-1, keepdims=True)
        p = e * pl.reciprocal(denom, approx=True)

        # content output + relative-value term (banded)
        out = jnp.dot(p.astype(jnp.bfloat16), v.astype(jnp.bfloat16),
                      preferred_element_type=jnp.float32)              # (T, Dk)
        for c in range(2 * window + 1):
            cd = jnp.sum(jnp.where(band[c], p, 0.0), axis=-1, keepdims=True)
            out = out + cd * ev[c:c + 1, :]
        outs.append(out)

    # single lane-dense (T, H) store instead of per-head partial stores
    o_ref[...] = jnp.concatenate(outs, axis=-1).astype(o_ref.dtype)


def attention(lengths, qkv, rel_k, rel_v, *, heads, window):
    """lengths: (B,) int32; qkv: (B, T, 3H); rel_k/rel_v: (2W+1, Dk) -> (B, T, H)."""
    B, T, threeH = qkv.shape
    H = threeH // 3
    Dk = H // heads
    kernel = functools.partial(_attn_kernel, heads=heads, k_channels=Dk, window=window)
    rel_spec = pl.BlockSpec(rel_k.shape, lambda b, L: (0, 0))
    return pl.pallas_call(
        kernel,
        out_shape=jax.ShapeDtypeStruct((B, T, H), jnp.float32),
        grid_spec=pltpu.PrefetchScalarGridSpec(
            num_scalar_prefetch=1,
            grid=(B,),
            in_specs=[
                pl.BlockSpec((None, T, threeH), lambda b, L: (b, 0, 0)),
                rel_spec,
                rel_spec,
            ],
            out_specs=pl.BlockSpec((None, T, H), lambda b, L: (b, 0, 0)),
        ),
        compiler_params=_cparams(("parallel",)),
    )(lengths, qkv, rel_k, rel_v)


# -----------------------------------------------------------------------------
# Kernel 4/5: same-padded Conv1d (K shifted matmuls) with fused epilogues
# -----------------------------------------------------------------------------
def _conv_relu_kernel(x_ref, w_ref, b_ref, m_ref, o_ref):
    K = w_ref.shape[0]
    T = o_ref.shape[0]
    acc = jnp.zeros(o_ref.shape, jnp.float32)
    for kk in range(K):
        acc += jnp.dot(x_ref[kk:kk + T, :].astype(jnp.bfloat16),
                       w_ref[kk].astype(jnp.bfloat16),
                       preferred_element_type=jnp.float32)
    o_ref[...] = (jnp.maximum(acc + b_ref[...], 0.0) * m_ref[...]).astype(o_ref.dtype)


def conv1d_relu_mask(xpad, w, b, rowmask):
    """xpad: (B, T+K-1, Cin) pre-masked/padded; w: (K, Cin, Cout) -> (B, T, Cout)."""
    B, Tp, Cin = xpad.shape
    K, _, Cout = w.shape
    T = Tp - (K - 1)
    return pl.pallas_call(
        _conv_relu_kernel,
        out_shape=jax.ShapeDtypeStruct((B, T, Cout), jnp.float32),
        grid=(B,),
        in_specs=[
            pl.BlockSpec((None, Tp, Cin), lambda bb: (bb, 0, 0)),
            pl.BlockSpec((K, Cin, Cout), lambda bb: (0, 0, 0)),
            pl.BlockSpec((1, Cout), lambda bb: (0, 0)),
            pl.BlockSpec((None, T, 1), lambda bb: (bb, 0, 0)),
        ],
        out_specs=pl.BlockSpec((None, T, Cout), lambda bb: (bb, 0, 0)),
        compiler_params=_cparams(("parallel",)),
    )(xpad, w, b.reshape(1, Cout), rowmask)


def _conv_add_ln_kernel(x_ref, w_ref, b_ref, r_ref, g_ref, be_ref, m_ref, o_ref, *, eps):
    K = w_ref.shape[0]
    T = o_ref.shape[0]
    acc = jnp.zeros(o_ref.shape, jnp.float32)
    for kk in range(K):
        acc += jnp.dot(x_ref[kk:kk + T, :].astype(jnp.bfloat16),
                       w_ref[kk].astype(jnp.bfloat16),
                       preferred_element_type=jnp.float32)
    z = r_ref[...] + acc + b_ref[...]
    mean = jnp.mean(z, axis=-1, keepdims=True)
    var = jnp.mean(jnp.square(z - mean), axis=-1, keepdims=True)
    zn = (z - mean) * lax.rsqrt(var + eps)
    o_ref[...] = ((zn * g_ref[...] + be_ref[...]) * m_ref[...]).astype(o_ref.dtype)


def conv1d_add_ln(xpad, w, b, res, gamma, beta, rowmask, eps=1e-5):
    """FFN conv2 + residual + LayerNorm + mask, fused. res: (B, T, Cout)."""
    B, Tp, Cin = xpad.shape
    K, _, Cout = w.shape
    T = Tp - (K - 1)
    return pl.pallas_call(
        functools.partial(_conv_add_ln_kernel, eps=float(eps)),
        out_shape=jax.ShapeDtypeStruct((B, T, Cout), jnp.float32),
        grid=(B,),
        in_specs=[
            pl.BlockSpec((None, Tp, Cin), lambda bb: (bb, 0, 0)),
            pl.BlockSpec((K, Cin, Cout), lambda bb: (0, 0, 0)),
            pl.BlockSpec((1, Cout), lambda bb: (0, 0)),
            pl.BlockSpec((None, T, Cout), lambda bb: (bb, 0, 0)),
            pl.BlockSpec((1, Cout), lambda bb: (0, 0)),
            pl.BlockSpec((1, Cout), lambda bb: (0, 0)),
            pl.BlockSpec((None, T, 1), lambda bb: (bb, 0, 0)),
        ],
        out_specs=pl.BlockSpec((None, T, Cout), lambda bb: (bb, 0, 0)),
        compiler_params=_cparams(("parallel",)),
    )(xpad, w, b.reshape(1, Cout), res, gamma.reshape(1, Cout),
      beta.reshape(1, Cout), rowmask)


# -----------------------------------------------------------------------------
# Parameter init (deterministic, synthetic; kernel-friendly layouts)
# -----------------------------------------------------------------------------
def init_params(key, cfg):
    H = cfg["hidden_channels"]
    Fc = cfg["filter_channels"]
    heads = cfg["n_heads"]
    Dk = H // heads
    out = cfg["out_channels"]
    ks = cfg["kernel_size"]
    window = cfg["window_size"]
    n_layers = cfg["n_layers"]

    def nrm(k, shape, scale=0.02):
        return (scale * jax.random.normal(k, shape)).astype(jnp.float32)

    keys = jax.random.split(key, 4 + n_layers)
    params = {
        "emb_w": nrm(keys[0], (768, H)),
        "emb_b": nrm(keys[1], (H,)),
        "proj_w": nrm(keys[2], (H, 2 * out)),
        "proj_b": nrm(keys[3], (2 * out,)),
        "layers": [],
    }
    for i in range(n_layers):
        lk = jax.random.split(keys[4 + i], 12)
        params["layers"].append({
            "wqkv": nrm(lk[0], (H, 3 * H)), "bqkv": nrm(lk[1], (3 * H,)),   # fused QKV
            "wo": nrm(lk[2], (H, H)), "bo": nrm(lk[3], (H,)),
            "emb_rel_k": nrm(lk[4], (2 * window + 1, Dk), scale=Dk ** -0.5),
            "emb_rel_v": nrm(lk[5], (2 * window + 1, Dk), scale=Dk ** -0.5),
            "g1": jnp.ones((H,), jnp.float32), "b1": jnp.zeros((H,), jnp.float32),
            "ffn_w1": nrm(lk[6], (ks, H, Fc)), "ffn_b1": nrm(lk[7], (Fc,)),  # (K, Cin, Cout)
            "ffn_w2": nrm(lk[8], (ks, Fc, H)), "ffn_b2": nrm(lk[9], (H,)),
            "g2": jnp.ones((H,), jnp.float32), "b2": jnp.zeros((H,), jnp.float32),
        })
    return params


# -----------------------------------------------------------------------------
# Full TextEncoder forward
# -----------------------------------------------------------------------------
def text_encoder_forward(params, phone, lengths, cfg):
    B, T, Din = phone.shape
    H = cfg["hidden_channels"]
    heads = cfg["n_heads"]
    out_ch = cfg["out_channels"]
    W = cfg["window_size"]
    K = cfg["kernel_size"]
    pad_l, pad_r = (K - 1) // 2, K // 2

    # sequence mask (built once; attention rebuilds it in-kernel from `lengths`)
    x_mask = (jnp.arange(T)[None, :] < lengths[:, None]).astype(jnp.float32)  # (B, T)
    rm_flat = x_mask.reshape(B * T, 1)
    rm_bt1 = x_mask[:, :, None]

    # emb_phone -> * sqrt(H) -> LeakyReLU(0.1) -> * x_mask (mask fold covers the
    # encoder-entry mask; the duplicated multiply in the original is dropped).
    x = matmul_bias_act(phone.reshape(B * T, Din), params["emb_w"], params["emb_b"],
                        rm_flat, scale=math.sqrt(H), act="leaky")              # (B*T, H)

    for layer in params["layers"]:
        # ---- MultiHeadAttention (relative positions, heads_share=True) ----
        qkv = matmul_bias_act(x, layer["wqkv"], layer["bqkv"], rm_flat)         # (B*T, 3H)
        attn = attention(lengths, qkv.reshape(B, T, 3 * H),
                         layer["emb_rel_k"], layer["emb_rel_v"],
                         heads=heads, window=W)                                 # (B, T, H)
        # conv_o + residual + LayerNorm (+ mask fold) in one kernel
        x = matmul_add_ln(attn.reshape(B * T, H), layer["wo"], layer["bo"],
                          x, layer["g1"], layer["b1"], rm_flat)                 # (B*T, H)

        # ---- FFN: same-padded conv -> relu -> conv, fused residual + LN ----
        xb = x.reshape(B, T, H)                                 # already masked
        xp = jnp.pad(xb, ((0, 0), (pad_l, pad_r), (0, 0)))
        h1 = conv1d_relu_mask(xp, layer["ffn_w1"], layer["ffn_b1"], rm_bt1)     # (B, T, Fc)
        h1p = jnp.pad(h1, ((0, 0), (pad_l, pad_r), (0, 0)))
        xb = conv1d_add_ln(h1p, layer["ffn_w2"], layer["ffn_b2"], xb,
                           layer["g2"], layer["b2"], rm_bt1)                    # (B, T, H)
        x = xb.reshape(B * T, H)

    # proj (1x1 conv) * x_mask, split into (m, logs)
    stats = matmul_bias_act(x, params["proj_w"], params["proj_b"], rm_flat)     # (B*T, 2*out)
    stats = stats.reshape(B, T, 2 * out_ch)
    m = stats[..., :out_ch].transpose(0, 2, 1)       # (B, out_channels, T) torch layout
    logs = stats[..., out_ch:].transpose(0, 2, 1)
    return m, logs, x_mask[:, None, :]               # x_mask: (B, 1, T)


# -----------------------------------------------------------------------------
if __name__ == "__main__":
    cfg = dict(out_channels=4, hidden_channels=32, filter_channels=64,
               n_heads=2, n_layers=2, kernel_size=3, p_dropout=0.0, window_size=10)

    key = jax.random.PRNGKey(0)
    kp, kx = jax.random.split(key)
    params = init_params(kp, cfg)

    B, T = 2, 16
    phone = jax.random.normal(kx, (B, T, 768), jnp.float32)
    lengths = jnp.array([16, 11], dtype=jnp.int32)

    fwd = jax.jit(lambda p, ph, ln: text_encoder_forward(p, ph, ln, cfg))
    m, logs, x_mask = fwd(params, phone, lengths)
    jax.block_until_ready((m, logs, x_mask))

    assert m.shape == (B, cfg["out_channels"], T)
    assert logs.shape == (B, cfg["out_channels"], T)
    assert x_mask.shape == (B, 1, T)
    assert bool(jnp.all(jnp.isfinite(m))) and bool(jnp.all(jnp.isfinite(logs)))
    print("KERNEL_OK")
</pallas_src>

<mosaic_0001>
module attributes {stable_mosaic.version = 11 : i64} {
  func.func @_matmul_kernel(%arg0: i32, %arg1: i32, %arg2: i32, %arg3: memref<32x256xf32, #tpu.memory_space<vmem>>, %arg4: memref<256x32xf32, #tpu.memory_space<vmem>>, %arg5: memref<1x32xf32, #tpu.memory_space<vmem>>, %arg6: memref<32x1xf32, #tpu.memory_space<vmem>>, %arg7: memref<32x32xf32, #tpu.memory_space<vmem>>, %arg8: memref<32x32xf32, #tpu.memory_space<vmem>>) attributes {dimension_semantics = [#tpu.dimension_semantics<parallel>, #tpu.dimension_semantics<parallel>, #tpu.dimension_semantics<arbitrary>], iteration_bounds = array<i64: 1, 1, 3>, scalar_prefetch = 0 : i64, scratch_operands = 1 : i64, tpu.core_type = #tpu.core_type<tc>, window_params = [{transform_indices = @transform_0, window_bounds = array<i64: 32, 256>}, {transform_indices = @transform_1, window_bounds = array<i64: 256, 32>}, {transform_indices = @transform_2, window_bounds = array<i64: 1, 32>}, {transform_indices = @transform_3, window_bounds = array<i64: 32, 1>}, {transform_indices = @transform_4, window_bounds = array<i64: 32, 32>}]} {
    %c0_i32 = arith.constant 0 : i32
    %0 = arith.cmpi eq, %arg2, %c0_i32 : i32
    %1 = arith.extui %0 : i1 to i32
    %c0_i32_0 = arith.constant 0 : i32
    %2 = arith.cmpi ne, %1, %c0_i32_0 : i32
    scf.if %2 {
      %cst_9 = arith.constant 0.000000e+00 : f32
      %14 = vector.broadcast %cst_9 : f32 to vector<32x32xf32>
      %c0_10 = arith.constant 0 : index
      %c0_11 = arith.constant 0 : index
      %15 = vector.load %arg8[%c0_10, %c0_11] : memref<32x32xf32, #tpu.memory_space<vmem>>, vector<32x32xf32>
      tpu.vector_store %arg8[%c0_10, %c0_11], %14 {strides = array<i32>} : memref<32x32xf32, #tpu.memory_space<vmem>>, vector<32x32xf32>,
    } else {
    }
    %c0 = arith.constant 0 : index
    %c0_1 = arith.constant 0 : index
    %3 = vector.load %arg8[%c0, %c0_1] : memref<32x32xf32, #tpu.memory_space<vmem>>, vector<32x32xf32>
    %c0_2 = arith.constant 0 : index
    %c0_3 = arith.constant 0 : index
    %4 = vector.load %arg3[%c0_2, %c0_3] : memref<32x256xf32, #tpu.memory_space<vmem>>, vector<32x256xf32>
    %5 = arith.truncf %4 : vector<32x256xf32> to vector<32x256xbf16>
    %c0_4 = arith.constant 0 : index
    %c0_5 = arith.constant 0 : index
    %6 = vector.load %arg4[%c0_4, %c0_5] : memref<256x32xf32, #tpu.memory_space<vmem>>, vector<256x32xf32>
    %7 = arith.truncf %6 : vector<256x32xf32> to vector<256x32xbf16>
    %cst = arith.constant dense<0.000000e+00> : vector<32x32xf32>
    %8 = tpu.matmul %5, %7, %cst {dimension_numbers = #tpu.dot_dimension_numbers<[1], [0], [0], [1], [0, 0, 1, 1], [], []>} : vector<32x256xbf16>, vector<256x32xbf16>, vector<32x32xf32> -> vector<32x32xf32>
    %9 = arith.addf %3, %8 : vector<32x32xf32>
    %c0_6 = arith.constant 0 : index
    %c0_7 = arith.constant 0 : index
    %10 = vector.load %arg8[%c0_6, %c0_7] : memref<32x32xf32, #tpu.memory_space<vmem>>, vector<32x32xf32>
    tpu.vector_store %arg8[%c0_6, %c0_7], %9 {strides = array<i32>} : memref<32x32xf32, #tpu.memory_space<vmem>>, vector<32x32xf32>,
    %c2_i32 = arith.constant 2 : i32
    %11 = arith.cmpi eq, %arg2, %c2_i32 : i32
    %12 = arith.extui %11 : i1 to i32
    %c0_i32_8 = arith.constant 0 : i32
    %13 = arith.cmpi ne, %12, %c0_i32_8 : i32
    scf.if %13 {
      %c0_9 = arith.constant 0 : index
      %c0_10 = arith.constant 0 : index
      %14 = vector.load %arg8[%c0_9, %c0_10] : memref<32x32xf32, #tpu.memory_space<vmem>>, vector<32x32xf32>
      %c0_11 = arith.constant 0 : index
      %c0_12 = arith.constant 0 : index
      %15 = vector.load %arg5[%c0_11, %c0_12] : memref<1x32xf32, #tpu.memory_space<vmem>>, vector<1x32xf32>
      %16 = vector.broadcast %15 : vector<1x32xf32> to vector<32x32xf32>
      %17 = arith.addf %14, %16 : vector<32x32xf32>
      %cst_13 = arith.constant 5.65685415 : f32
      %18 = vector.broadcast %cst_13 : f32 to vector<32x32xf32>
      %19 = arith.mulf %17, %18 : vector<32x32xf32>
      %cst_14 = arith.constant 0.000000e+00 : f32
      %20 = vector.broadcast %cst_14 : f32 to vector<32x32xf32>
      %21 = arith.cmpf oge, %19, %20 : vector<32x32xf32>
      %cst_15 = arith.constant 1.000000e-01 : f32
      %22 = vector.broadcast %cst_15 : f32 to vector<32x32xf32>
      %23 = arith.mulf %22, %19 : vector<32x32xf32>
      %24 = arith.select %21, %19, %23 : vector<32x32xi1>, vector<32x32xf32>
      %c0_16 = arith.constant 0 : index
      %c0_17 = arith.constant 0 : index
      %25 = vector.load %arg6[%c0_16, %c0_17] : memref<32x1xf32, #tpu.memory_space<vmem>>, vector<32x1xf32>
      %26 = vector.broadcast %25 : vector<32x1xf32> to vector<32x32xf32>
      %27 = arith.mulf %24, %26 : vector<32x32xf32>
      %c0_18 = arith.constant 0 : index
      %c0_19 = arith.constant 0 : index
      %28 = vector.load %arg7[%c0_18, %c0_19] : memref<32x32xf32, #tpu.memory_space<vmem>>, vector<32x32xf32>
      tpu.vector_store %arg7[%c0_18, %c0_19], %27 {strides = array<i32>} : memref<32x32xf32, #tpu.memory_space<vmem>>, vector<32x32xf32>,
    } else {
    }
    return
  }
  func.func @transform_0(%arg0: i32, %arg1: i32, %arg2: i32) -> (i32, i32) {
    %c0_i32 = arith.constant 0 : i32
    return %arg0, %arg2 : i32, i32
  }
  func.func @transform_1(%arg0: i32, %arg1: i32, %arg2: i32) -> (i32, i32) {
    %c0_i32 = arith.constant 0 : i32
    return %arg2, %arg1 : i32, i32
  }
  func.func @transform_2(%arg0: i32, %arg1: i32, %arg2: i32) -> (i32, i32) {
    %c0_i32 = arith.constant 0 : i32
    %c0_i32_0 = arith.constant 0 : i32
    return %c0_i32, %arg1 : i32, i32
  }
  func.func @transform_3(%arg0: i32, %arg1: i32, %arg2: i32) -> (i32, i32) {
    %c0_i32 = arith.constant 0 : i32
    %c0_i32_0 = arith.constant 0 : i32
    return %arg0, %c0_i32 : i32, i32
  }
  func.func @transform_4(%arg0: i32, %arg1: i32, %arg2: i32) -> (i32, i32) {
    %c0_i32 = arith.constant 0 : i32
    return %arg0, %arg1 : i32, i32
  }
}

module attributes {stable_mosaic.version = 11 : i64} {
  func.func @_matmul_kernel(%arg0: i32, %arg1: i32, %arg2: i32, %arg3: memref<32x32xf32, #tpu.memory_space<vmem>>, %arg4: memref<32x96xf32, #tpu.memory_space<vmem>>, %arg5: memref<1x96xf32, #tpu.memory_space<vmem>>, %arg6: memref<32x1xf32, #tpu.memory_space<vmem>>, %arg7: memref<32x96xf32, #tpu.memory_space<vmem>>, %arg8: memref<32x96xf32, #tpu.memory_space<vmem>>) attributes {dimension_semantics = [#tpu.dimension_semantics<parallel>, #tpu.dimension_semantics<parallel>, #tpu.dimension_semantics<arbitrary>], iteration_bounds = array<i64: 1, 1, 1>, scalar_prefetch = 0 : i64, scratch_operands = 1 : i64, tpu.core_type = #tpu.core_type<tc>, window_params = [{transform_indices = @transform_0, window_bounds = array<i64: 32, 32>}, {transform_indices = @transform_1, window_bounds = array<i64: 32, 96>}, {transform_indices = @transform_2, window_bounds = array<i64: 1, 96>}, {transform_indices = @transform_3, window_bounds = array<i64: 32, 1>}, {transform_indices = @transform_4, window_bounds = array<i64: 32, 96>}]} {
    %c0_i32 = arith.constant 0 : i32
    %0 = arith.cmpi eq, %arg2, %c0_i32 : i32
    %1 = arith.extui %0 : i1 to i32
    %c0_i32_0 = arith.constant 0 : i32
    %2 = arith.cmpi ne, %1, %c0_i32_0 : i32
    scf.if %2 {
      %cst_10 = arith.constant 0.000000e+00 : f32
      %14 = vector.broadcast %cst_10 : f32 to vector<32x96xf32>
      %c0_11 = arith.constant 0 : index
      %c0_12 = arith.constant 0 : index
      %15 = vector.load %arg8[%c0_11, %c0_12] : memref<32x96xf32, #tpu.memory_space<vmem>>, vector<32x96xf32>
      tpu.vector_store %arg8[%c0_11, %c0_12], %14 {strides = array<i32>} : memref<32x96xf32, #tpu.memory_space<vmem>>, vector<32x96xf32>,
    } else {
    }
    %c0 = arith.constant 0 : index
    %c0_1 = arith.constant 0 : index
    %3 = vector.load %arg8[%c0, %c0_1] : memref<32x96xf32, #tpu.memory_space<vmem>>, vector<32x96xf32>
    %c0_2 = arith.constant 0 : index
    %c0_3 = arith.constant 0 : index
    %4 = vector.load %arg3[%c0_2, %c0_3] : memref<32x32xf32, #tpu.memory_space<vmem>>, vector<32x32xf32>
    %5 = arith.truncf %4 : vector<32x32xf32> to vector<32x32xbf16>
    %c0_4 = arith.constant 0 : index
    %c0_5 = arith.constant 0 : index
    %6 = vector.load %arg4[%c0_4, %c0_5] : memref<32x96xf32, #tpu.memory_space<vmem>>, vector<32x96xf32>
    %7 = arith.truncf %6 : vector<32x96xf32> to vector<32x96xbf16>
    %cst = arith.constant dense<0.000000e+00> : vector<32x96xf32>
    %8 = tpu.matmul %5, %7, %cst {dimension_numbers = #tpu.dot_dimension_numbers<[1], [0], [0], [1], [0, 0, 1, 1], [], []>} : vector<32x32xbf16>, vector<32x96xbf16>, vector<32x96xf32> -> vector<32x96xf32>
    %9 = arith.addf %3, %8 : vector<32x96xf32>
    %c0_6 = arith.constant 0 : index
    %c0_7 = arith.constant 0 : index
    %10 = vector.load %arg8[%c0_6, %c0_7] : memref<32x96xf32, #tpu.memory_space<vmem>>, vector<32x96xf32>
    tpu.vector_store %arg8[%c0_6, %c0_7], %9 {strides = array<i32>} : memref<32x96xf32, #tpu.memory_space<vmem>>, vector<32x96xf32>,
    %c0_i32_8 = arith.constant 0 : i32
    %11 = arith.cmpi eq, %arg2, %c0_i32_8 : i32
    %12 = arith.extui %11 : i1 to i32
    %c0_i32_9 = arith.constant 0 : i32
    %13 = arith.cmpi ne, %12, %c0_i32_9 : i32
    scf.if %13 {
      %c0_10 = arith.constant 0 : index
      %c0_11 = arith.constant 0 : index
      %14 = vector.load %arg8[%c0_10, %c0_11] : memref<32x96xf32, #tpu.memory_space<vmem>>, vector<32x96xf32>
      %c0_12 = arith.constant 0 : index
      %c0_13 = arith.constant 0 : index
      %15 = vector.load %arg5[%c0_12, %c0_13] : memref<1x96xf32, #tpu.memory_space<vmem>>, vector<1x96xf32>
      %16 = vector.broadcast %15 : vector<1x96xf32> to vector<32x96xf32>
      %17 = arith.addf %14, %16 : vector<32x96xf32>
      %cst_14 = arith.constant 1.000000e+00 : f32
      %18 = vector.broadcast %cst_14 : f32 to vector<32x96xf32>
      %19 = arith.mulf %17, %18 : vector<32x96xf32>
      %c0_15 = arith.constant 0 : index
      %c0_16 = arith.constant 0 : index
      %20 = vector.load %arg6[%c0_15, %c0_16] : memref<32x1xf32, #tpu.memory_space<vmem>>, vector<32x1xf32>
      %21 = vector.broadcast %20 : vector<32x1xf32> to vector<32x96xf32>
      %22 = arith.mulf %19, %21 : vector<32x96xf32>
      %c0_17 = arith.constant 0 : index
      %c0_18 = arith.constant 0 : index
      %23 = vector.load %arg7[%c0_17, %c0_18] : memref<32x96xf32, #tpu.memory_space<vmem>>, vector<32x96xf32>
      tpu.vector_store %arg7[%c0_17, %c0_18], %22 {strides = array<i32>} : memref<32x96xf32, #tpu.memory_space<vmem>>, vector<32x96xf32>,
    } else {
    }
    return
  }
  func.func @transform_0(%arg0: i32, %arg1: i32, %arg2: i32) -> (i32, i32) {
    %c0_i32 = arith.constant 0 : i32
    return %arg0, %arg2 : i32, i32
  }
  func.func @transform_1(%arg0: i32, %arg1: i32, %arg2: i32) -> (i32, i32) {
    %c0_i32 = arith.constant 0 : i32
    return %arg2, %arg1 : i32, i32
  }
  func.func @transform_2(%arg0: i32, %arg1: i32, %arg2: i32) -> (i32, i32) {
    %c0_i32 = arith.constant 0 : i32
    %c0_i32_0 = arith.constant 0 : i32
    return %c0_i32, %arg1 : i32, i32
  }
  func.func @transform_3(%arg0: i32, %arg1: i32, %arg2: i32) -> (i32, i32) {
    %c0_i32 = arith.constant 0 : i32
    %c0_i32_0 = arith.constant 0 : i32
    return %arg0, %c0_i32 : i32, i32
  }
  func.func @transform_4(%arg0: i32, %arg1: i32, %arg2: i32) -> (i32, i32) {
    %c0_i32 = arith.constant 0 : i32
    return %arg0, %arg1 : i32, i32
  }
}

module attributes {stable_mosaic.version = 11 : i64} {
  func.func @_matmul_add_ln_kernel(%arg0: i32, %arg1: memref<32x32xf32, #tpu.memory_space<vmem>>, %arg2: memref<32x32xf32, #tpu.memory_space<vmem>>, %arg3: memref<1x32xf32, #tpu.memory_space<vmem>>, %arg4: memref<32x32xf32, #tpu.memory_space<vmem>>, %arg5: memref<1x32xf32, #tpu.memory_space<vmem>>, %arg6: memref<1x32xf32, #tpu.memory_space<vmem>>, %arg7: memref<32x1xf32, #tpu.memory_space<vmem>>, %arg8: memref<32x32xf32, #tpu.memory_space<vmem>>) attributes {dimension_semantics = [#tpu.dimension_semantics<parallel>], iteration_bounds = array<i64: 1>, scalar_prefetch = 0 : i64, scratch_operands = 0 : i64, tpu.core_type = #tpu.core_type<tc>, window_params = [{transform_indices = @transform_0, window_bounds = array<i64: 32, 32>}, {pipeline_mode = #tpu.pipeline_mode<synchronous>, transform_indices = @transform_1, window_bounds = array<i64: 32, 32>}, {pipeline_mode = #tpu.pipeline_mode<synchronous>, transform_indices = @transform_2, window_bounds = array<i64: 1, 32>}, {transform_indices = @transform_3, window_bounds = array<i64: 32, 32>}, {pipeline_mode = #tpu.pipeline_mode<synchronous>, transform_indices = @transform_4, window_bounds = array<i64: 1, 32>}, {pipeline_mode = #tpu.pipeline_mode<synchronous>, transform_indices = @transform_5, window_bounds = array<i64: 1, 32>}, {transform_indices = @transform_6, window_bounds = array<i64: 32, 1>}, {transform_indices = @transform_7, window_bounds = array<i64: 32, 32>}]} {
    %c0 = arith.constant 0 : index
    %c0_0 = arith.constant 0 : index
    %0 = vector.load %arg1[%c0, %c0_0] : memref<32x32xf32, #tpu.memory_space<vmem>>, vector<32x32xf32>
    %1 = arith.truncf %0 : vector<32x32xf32> to vector<32x32xbf16>
    %c0_1 = arith.constant 0 : index
    %c0_2 = arith.constant 0 : index
    %2 = vector.load %arg2[%c0_1, %c0_2] : memref<32x32xf32, #tpu.memory_space<vmem>>, vector<32x32xf32>
    %3 = arith.truncf %2 : vector<32x32xf32> to vector<32x32xbf16>
    %cst = arith.constant dense<0.000000e+00> : vector<32x32xf32>
    %4 = tpu.matmul %1, %3, %cst {dimension_numbers = #tpu.dot_dimension_numbers<[1], [0], [0], [1], [0, 0, 1, 1], [], []>} : vector<32x32xbf16>, vector<32x32xbf16>, vector<32x32xf32> -> vector<32x32xf32>
    %c0_3 = arith.constant 0 : index
    %c0_4 = arith.constant 0 : index
    %5 = vector.load %arg4[%c0_3, %c0_4] : memref<32x32xf32, #tpu.memory_space<vmem>>, vector<32x32xf32>
    %6 = arith.addf %5, %4 : vector<32x32xf32>
    %c0_5 = arith.constant 0 : index
    %c0_6 = arith.constant 0 : index
    %7 = vector.load %arg3[%c0_5, %c0_6] : memref<1x32xf32, #tpu.memory_space<vmem>>, vector<1x32xf32>
    %8 = vector.broadcast %7 : vector<1x32xf32> to vector<32x32xf32>
    %9 = arith.addf %6, %8 : vector<32x32xf32>
    %cst_7 = arith.constant dense<0.000000e+00> : vector<32xf32>
    %10 = vector.multi_reduction <add>, %9, %cst_7 [1] : vector<32x32xf32> to vector<32xf32>
    %11 = vector.shape_cast %10 : vector<32xf32> to vector<32x1xf32>
    %cst_8 = arith.constant 3.200000e+01 : f32
    %12 = vector.broadcast %cst_8 : f32 to vector<32x1xf32>
    %13 = arith.divf %11, %12 : vector<32x1xf32>
    %14 = vector.broadcast %13 : vector<32x1xf32> to vector<32x32xf32>
    %15 = arith.subf %9, %14 : vector<32x32xf32>
    %16 = arith.mulf %15, %15 : vector<32x32xf32>
    %cst_9 = arith.constant dense<0.000000e+00> : vector<32xf32>
    %17 = vector.multi_reduction <add>, %16, %cst_9 [1] : vector<32x32xf32> to vector<32xf32>
    %18 = vector.shape_cast %17 : vector<32xf32> to vector<32x1xf32>
    %cst_10 = arith.constant 3.200000e+01 : f32
    %19 = vector.broadcast %cst_10 : f32 to vector<32x1xf32>
    %20 = arith.divf %18, %19 : vector<32x1xf32>
    %21 = vector.broadcast %13 : vector<32x1xf32> to vector<32x32xf32>
    %22 = arith.subf %9, %21 : vector<32x32xf32>
    %cst_11 = arith.constant 9.99999974E-6 : f32
    %23 = vector.broadcast %cst_11 : f32 to vector<32x1xf32>
    %24 = arith.addf %20, %23 : vector<32x1xf32>
    %25 = math.rsqrt %24 : vector<32x1xf32>
    %26 = vector.broadcast %25 : vector<32x1xf32> to vector<32x32xf32>
    %27 = arith.mulf %22, %26 : vector<32x32xf32>
    %c0_12 = arith.constant 0 : index
    %c0_13 = arith.constant 0 : index
    %28 = vector.load %arg5[%c0_12, %c0_13] : memref<1x32xf32, #tpu.memory_space<vmem>>, vector<1x32xf32>
    %29 = vector.broadcast %28 : vector<1x32xf32> to vector<32x32xf32>
    %30 = arith.mulf %27, %29 : vector<32x32xf32>
    %c0_14 = arith.constant 0 : index
    %c0_15 = arith.constant 0 : index
    %31 = vector.load %arg6[%c0_14, %c0_15] : memref<1x32xf32, #tpu.memory_space<vmem>>, vector<1x32xf32>
    %32 = vector.broadcast %31 : vector<1x32xf32> to vector<32x32xf32>
    %33 = arith.addf %30, %32 : vector<32x32xf32>
    %c0_16 = arith.constant 0 : index
    %c0_17 = arith.constant 0 : index
    %34 = vector.load %arg7[%c0_16, %c0_17] : memref<32x1xf32, #tpu.memory_space<vmem>>, vector<32x1xf32>
    %35 = vector.broadcast %34 : vector<32x1xf32> to vector<32x32xf32>
    %36 = arith.mulf %33, %35 : vector<32x32xf32>
    %c0_18 = arith.constant 0 : index
    %c0_19 = arith.constant 0 : index
    %37 = vector.load %arg8[%c0_18, %c0_19] : memref<32x32xf32, #tpu.memory_space<vmem>>, vector<32x32xf32>
    tpu.vector_store %arg8[%c0_18, %c0_19], %36 {strides = array<i32>} : memref<32x32xf32, #tpu.memory_space<vmem>>, vector<32x32xf32>,
    return
  }
  func.func @transform_0(%arg0: i32) -> (i32, i32) {
    %c0_i32 = arith.constant 0 : i32
    %c0_i32_0 = arith.constant 0 : i32
    return %arg0, %c0_i32 : i32, i32
  }
  func.func @transform_1(%arg0: i32) -> (i32, i32) {
    %c0_i32 = arith.constant 0 : i32
    %c0_i32_0 = arith.constant 0 : i32
    %c0_i32_1 = arith.constant 0 : i32
    return %c0_i32, %c0_i32_0 : i32, i32
  }
  func.func @transform_2(%arg0: i32) -> (i32, i32) {
    %c0_i32 = arith.constant 0 : i32
    %c0_i32_0 = arith.constant 0 : i32
    %c0_i32_1 = arith.constant 0 : i32
    return %c0_i32, %c0_i32_0 : i32, i32
  }
  func.func @transform_3(%arg0: i32) -> (i32, i32) {
    %c0_i32 = arith.constant 0 : i32
    %c0_i32_0 = arith.constant 0 : i32
    return %arg0, %c0_i32 : i32, i32
  }
  func.func @transform_4(%arg0: i32) -> (i32, i32) {
    %c0_i32 = arith.constant 0 : i32
    %c0_i32_0 = arith.constant 0 : i32
    %c0_i32_1 = arith.constant 0 : i32
    return %c0_i32, %c0_i32_0 : i32, i32
  }
  func.func @transform_5(%arg0: i32) -> (i32, i32) {
    %c0_i32 = arith.constant 0 : i32
    %c0_i32_0 = arith.constant 0 : i32
    %c0_i32_1 = arith.constant 0 : i32
    return %c0_i32, %c0_i32_0 : i32, i32
  }
  func.func @transform_6(%arg0: i32) -> (i32, i32) {
    %c0_i32 = arith.constant 0 : i32
    %c0_i32_0 = arith.constant 0 : i32
    return %arg0, %c0_i32 : i32, i32
  }
  func.func @transform_7(%arg0: i32) -> (i32, i32) {
    %c0_i32 = arith.constant 0 : i32
    %c0_i32_0 = arith.constant 0 : i32
    return %arg0, %c0_i32 : i32, i32
  }
}

module attributes {stable_mosaic.version = 11 : i64} {
  func.func @_attn_kernel(%arg0: i32, %arg1: memref<2xi32, #tpu.memory_space<smem>>, %arg2: memref<1x16x96xf32, #tpu.memory_space<vmem>>, %arg3: memref<21x16xf32, #tpu.memory_space<vmem>>, %arg4: memref<21x16xf32, #tpu.memory_space<vmem>>, %arg5: memref<1x16x32xf32, #tpu.memory_space<vmem>>) attributes {dimension_semantics = [#tpu.dimension_semantics<parallel>], iteration_bounds = array<i64: 2>, scalar_prefetch = 1 : i64, scratch_operands = 0 : i64, tpu.core_type = #tpu.core_type<tc>, window_params = [{transform_indices = @transform_0, window_bounds = array<i64: 1, 16, 96>}, {pipeline_mode = #tpu.pipeline_mode<synchronous>, transform_indices = @transform_1, window_bounds = array<i64: 21, 16>}, {pipeline_mode = #tpu.pipeline_mode<synchronous>, transform_indices = @transform_2, window_bounds = array<i64: 21, 16>}, {transform_indices = @transform_3, window_bounds = array<i64: 1, 16, 32>}]} {
    %0 = arith.index_cast %arg0 : i32 to index
    %1 = memref.load %arg1[%0] : memref<2xi32, #tpu.memory_space<smem>>
    %2 = tpu.iota {dimensions = array<i32: 0>} : vector<16x16xi32>
    %3 = tpu.iota {dimensions = array<i32: 1>} : vector<16x16xi32>
    %4 = vector.broadcast %1 : i32 to vector<16x16xi32>
    %5 = arith.cmpi slt, %2, %4 : vector<16x16xi32>
    %6 = vector.broadcast %1 : i32 to vector<16x16xi32>
    %7 = arith.cmpi slt, %3, %6 : vector<16x16xi32>
    %8 = arith.andi %5, %7 : vector<16x16xi1>
    %9 = arith.subi %3, %2 : vector<16x16xi32>
    %c-10_i32 = arith.constant -10 : i32
    %10 = vector.broadcast %c-10_i32 : i32 to vector<16x16xi32>
    %11 = arith.cmpi eq, %9, %10 : vector<16x16xi32>
    %c-9_i32 = arith.constant -9 : i32
    %12 = vector.broadcast %c-9_i32 : i32 to vector<16x16xi32>
    %13 = arith.cmpi eq, %9, %12 : vector<16x16xi32>
    %c-8_i32 = arith.constant -8 : i32
    %14 = vector.broadcast %c-8_i32 : i32 to vector<16x16xi32>
    %15 = arith.cmpi eq, %9, %14 : vector<16x16xi32>
    %c-7_i32 = arith.constant -7 : i32
    %16 = vector.broadcast %c-7_i32 : i32 to vector<16x16xi32>
    %17 = arith.cmpi eq, %9, %16 : vector<16x16xi32>
    %c-6_i32 = arith.constant -6 : i32
    %18 = vector.broadcast %c-6_i32 : i32 to vector<16x16xi32>
    %19 = arith.cmpi eq, %9, %18 : vector<16x16xi32>
    %c-5_i32 = arith.constant -5 : i32
    %20 = vector.broadcast %c-5_i32 : i32 to vector<16x16xi32>
    %21 = arith.cmpi eq, %9, %20 : vector<16x16xi32>
    %c-4_i32 = arith.constant -4 : i32
    %22 = vector.broadcast %c-4_i32 : i32 to vector<16x16xi32>
    %23 = arith.cmpi eq, %9, %22 : vector<16x16xi32>
    %c-3_i32 = arith.constant -3 : i32
    %24 = vector.broadcast %c-3_i32 : i32 to vector<16x16xi32>
    %25 = arith.cmpi eq, %9, %24 : vector<16x16xi32>
    %c-2_i32 = arith.constant -2 : i32
    %26 = vector.broadcast %c-2_i32 : i32 to vector<16x16xi32>
    %27 = arith.cmpi eq, %9, %26 : vector<16x16xi32>
    %c-1_i32 = arith.constant -1 : i32
    %28 = vector.broadcast %c-1_i32 : i32 to vector<16x16xi32>
    %29 = arith.cmpi eq, %9, %28 : vector<16x16xi32>
    %c0_i32 = arith.constant 0 : i32
    %30 = vector.broadcast %c0_i32 : i32 to vector<16x16xi32>
    %31 = arith.cmpi eq, %9, %30 : vector<16x16xi32>
    %c1_i32 = arith.constant 1 : i32
    %32 = vector.broadcast %c1_i32 : i32 to vector<16x16xi32>
    %33 = arith.cmpi eq, %9, %32 : vector<16x16xi32>
    %c2_i32 = arith.constant 2 : i32
    %34 = vector.broadcast %c2_i32 : i32 to vector<16x16xi32>
    %35 = arith.cmpi eq, %9, %34 : vector<16x16xi32>
    %c3_i32 = arith.constant 3 : i32
    %36 = vector.broadcast %c3_i32 : i32 to vector<16x16xi32>
    %37 = arith.cmpi eq, %9, %36 : vector<16x16xi32>
    %c4_i32 = arith.constant 4 : i32
    %38 = vector.broadcast %c4_i32 : i32 to vector<16x16xi32>
    %39 = arith.cmpi eq, %9, %38 : vector<16x16xi32>
    %c5_i32 = arith.constant 5 : i32
    %40 = vector.broadcast %c5_i32 : i32 to vector<16x16xi32>
    %41 = arith.cmpi eq, %9, %40 : vector<16x16xi32>
    %c6_i32 = arith.constant 6 : i32
    %42 = vector.broadcast %c6_i32 : i32 to vector<16x16xi32>
    %43 = arith.cmpi eq, %9, %42 : vector<16x16xi32>
    %c7_i32 = arith.constant 7 : i32
    %44 = vector.broadcast %c7_i32 : i32 to vector<16x16xi32>
    %45 = arith.cmpi eq, %9, %44 : vector<16x16xi32>
    %c8_i32 = arith.constant 8 : i32
    %46 = vector.broadcast %c8_i32 : i32 to vector<16x16xi32>
    %47 = arith.cmpi eq, %9, %46 : vector<16x16xi32>
    %c9_i32 = arith.constant 9 : i32
    %48 = vector.broadcast %c9_i32 : i32 to vector<16x16xi32>
    %49 = arith.cmpi eq, %9, %48 : vector<16x16xi32>
    %c10_i32 = arith.constant 10 : i32
    %50 = vector.broadcast %c10_i32 : i32 to vector<16x16xi32>
    %51 = arith.cmpi eq, %9, %50 : vector<16x16xi32>
    %c0 = arith.constant 0 : index
    %c0_0 = arith.constant 0 : index
    %52 = vector.load %arg3[%c0, %c0_0] : memref<21x16xf32, #tpu.memory_space<vmem>>, vector<21x16xf32>
    %53 = arith.truncf %52 : vector<21x16xf32> to vector<21x16xbf16>
    %c0_1 = arith.constant 0 : index
    %c0_2 = arith.constant 0 : index
    %54 = vector.load %arg4[%c0_1, %c0_2] : memref<21x16xf32, #tpu.memory_space<vmem>>, vector<21x16xf32>
    %c0_3 = arith.constant 0 : index
    %c0_4 = arith.constant 0 : index
    %c0_5 = arith.constant 0 : index
    %55 = vector.load %arg2[%c0_3, %c0_4, %c0_5] : memref<1x16x96xf32, #tpu.memory_space<vmem>>, vector<1x16x16xf32>
    %56 = vector.shape_cast %55 : vector<1x16x16xf32> to vector<16x16xf32>
    %c0_6 = arith.constant 0 : index
    %c0_7 = arith.constant 0 : index
    %c32 = arith.constant 32 : index
    %57 = vector.load %arg2[%c0_6, %c0_7, %c32] : memref<1x16x96xf32, #tpu.memory_space<vmem>>, vector<1x16x16xf32>
    %58 = vector.shape_cast %57 : vector<1x16x16xf32> to vector<16x16xf32>
    %c0_8 = arith.constant 0 : index
    %c0_9 = arith.constant 0 : index
    %c64 = arith.constant 64 : index
    %59 = vector.load %arg2[%c0_8, %c0_9, %c64] : memref<1x16x96xf32, #tpu.memory_space<vmem>>, vector<1x16x16xf32>
    %60 = vector.shape_cast %59 : vector<1x16x16xf32> to vector<16x16xf32>
    %61 = arith.truncf %56 : vector<16x16xf32> to vector<16x16xbf16>
    %62 = arith.truncf %58 : vector<16x16xf32> to vector<16x16xbf16>
    %cst = arith.constant dense<0.000000e+00> : vector<16x16xf32>
    %63 = tpu.matmul %61, %62, %cst {dimension_numbers = #tpu.dot_dimension_numbers<[1], [1], [0], [0], [0, 0, 1, 0], [], []>} : vector<16x16xbf16>, vector<16x16xbf16>, vector<16x16xf32> -> vector<16x16xf32>
    %cst_10 = arith.constant 2.500000e-01 : f32
    %64 = vector.broadcast %cst_10 : f32 to vector<16x16xf32>
    %65 = arith.mulf %63, %64 : vector<16x16xf32>
    %cst_11 = arith.constant dense<0.000000e+00> : vector<16x21xf32>
    %66 = tpu.matmul %61, %53, %cst_11 {dimension_numbers = #tpu.dot_dimension_numbers<[1], [1], [0], [0], [0, 0, 1, 0], [], []>} : vector<16x16xbf16>, vector<21x16xbf16>, vector<16x21xf32> -> vector<16x21xf32>
    %cst_12 = arith.constant 2.500000e-01 : f32
    %67 = vector.broadcast %cst_12 : f32 to vector<16x21xf32>
    %68 = arith.mulf %66, %67 : vector<16x21xf32>
    %69 = vector.extract_strided_slice %68 {offsets = [0, 0], sizes = [16, 1], strides = [1, 1]} : vector<16x21xf32> to vector<16x1xf32>
    %cst_13 = arith.constant 0.000000e+00 : f32
    %70 = vector.shape_cast %69 : vector<16x1xf32> to vector<16x1xf32>
    %71 = vector.broadcast %70 : vector<16x1xf32> to vector<16x16xf32>
    %72 = vector.broadcast %cst_13 : f32 to vector<16x16xf32>
    %73 = arith.select %11, %71, %72 : vector<16x16xi1>, vector<16x16xf32>
    %74 = arith.addf %65, %73 : vector<16x16xf32>
    %75 = vector.extract_strided_slice %68 {offsets = [0, 1], sizes = [16, 1], strides = [1, 1]} : vector<16x21xf32> to vector<16x1xf32>
    %cst_14 = arith.constant 0.000000e+00 : f32
    %76 = vector.shape_cast %75 : vector<16x1xf32> to vector<16x1xf32>
    %77 = vector.broadcast %76 : vector<16x1xf32> to vector<16x16xf32>
    %78 = vector.broadcast %cst_14 : f32 to vector<16x16xf32>
    %79 = arith.select %13, %77, %78 : vector<16x16xi1>, vector<16x16xf32>
    %80 = arith.addf %74, %79 : vector<16x16xf32>
    %81 = vector.extract_strided_slice %68 {offsets = [0, 2], sizes = [16, 1], strides = [1, 1]} : vector<16x21xf32> to vector<16x1xf32>
    %cst_15 = arith.constant 0.000000e+00 : f32
    %82 = vector.shape_cast %81 : vector<16x1xf32> to vector<16x1xf32>
    %83 = vector.broadcast %82 : vector<16x1xf32> to vector<16x16xf32>
    %84 = vector.broadcast %cst_15 : f32 to vector<16x16xf32>
    %85 = arith.select %15, %83, %84 : vector<16x16xi1>, vector<16x16xf32>
    %86 = arith.addf %80, %85 : vector<16x16xf32>
    %87 = vector.extract_strided_slice %68 {offsets = [0, 3], sizes = [16, 1], strides = [1, 1]} : vector<16x21xf32> to vector<16x1xf32>
    %cst_16 = arith.constant 0.000000e+00 : f32
    %88 = vector.shape_cast %87 : vector<16x1xf32> to vector<16x1xf32>
    %89 = vector.broadcast %88 : vector<16x1xf32> to vector<16x16xf32>
    %90 = vector.broadcast %cst_16 : f32 to vector<16x16xf32>
    %91 = arith.select %17, %89, %90 : vector<16x16xi1>, vector<16x16xf32>
    %92 = arith.addf %86, %91 : vector<16x16xf32>
    %93 = vector.extract_strided_slice %68 {offsets = [0, 4], sizes = [16, 1], strides = [1, 1]} : vector<16x21xf32> to vector<16x1xf32>
    %cst_17 = arith.constant 0.000000e+00 : f32
    %94 = vector.shape_cast %93 : vector<16x1xf32> to vector<16x1xf32>
    %95 = vector.broadcast %94 : vector<16x1xf32> to vector<16x16xf32>
    %96 = vector.broadcast %cst_17 : f32 to vector<16x16xf32>
    %97 = arith.select %19, %95, %96 : vector<16x16xi1>, vector<16x16xf32>
    %98 = arith.addf %92, %97 : vector<16x16xf32>
    %99 = vector.extract_strided_slice %68 {offsets = [0, 5], sizes = [16, 1], strides = [1, 1]} : vector<16x21xf32> to vector<16x1xf32>
    %cst_18 = arith.constant 0.000000e+00 : f32
    %100 = vector.shape_cast %99 : vector<16x1xf32> to vector<16x1xf32>
    %101 = vector.broadcast %100 : vector<16x1xf32> to vector<16x16xf32>
    %102 = vector.broadcast %cst_18 : f32 to vector<16x16xf32>
    %103 = arith.select %21, %101, %102 : vector<16x16xi1>, vector<16x16xf32>
    %104 = arith.addf %98, %103 : vector<16x16xf32>
    %105 = vector.extract_strided_slice %68 {offsets = [0, 6], sizes = [16, 1], strides = [1, 1]} : vector<16x21xf32> to vector<16x1xf32>
    %cst_19 = arith.constant 0.000000e+00 : f32
    %106 = vector.shape_cast %105 : vector<16x1xf32> to vector<16x1xf32>
    %107 = vector.broadcast %106 : vector<16x1xf32> to vector<16x16xf32>
    %108 = vector.broadcast %cst_19 : f32 to vector<16x16xf32>
    %109 = arith.select %23, %107, %108 : vector<16x16xi1>, vector<16x16xf32>
    %110 = arith.addf %104, %109 : vector<16x16xf32>
    %111 = vector.extract_strided_slice %68 {offsets = [0, 7], sizes = [16, 1], strides = [1, 1]} : vector<16x21xf32> to vector<16x1xf32>
    %cst_20 = arith.constant 0.000000e+00 : f32
    %112 = vector.shape_cast %111 : vector<16x1xf32> to vector<16x1xf32>
    %113 = vector.broadcast %112 : vector<16x1xf32> to vector<16x16xf32>
    %114 = vector.broadcast %cst_20 : f32 to vector<16x16xf32>
    %115 = arith.select %25, %113, %114 : vector<16x16xi1>, vector<16x16xf32>
    %116 = arith.addf %110, %115 : vector<16x16xf32>
    %117 = vector.extract_strided_slice %68 {offsets = [0, 8], sizes = [16, 1], strides = [1, 1]} : vector<16x21xf32> to vector<16x1xf32>
    %cst_21 = arith.constant 0.000000e+00 : f32
    %118 = vector.shape_cast %117 : vector<16x1xf32> to vector<16x1xf32>
    %119 = vector.broadcast %118 : vector<16x1xf32> to vector<16x16xf32>
    %120 = vector.broadcast %cst_21 : f32 to vector<16x16xf32>
    %121 = arith.select %27, %119, %120 : vector<16x16xi1>, vector<16x16xf32>
    %122 = arith.addf %116, %121 : vector<16x16xf32>
    %123 = vector.extract_strided_slice %68 {offsets = [0, 9], sizes = [16, 1], strides = [1, 1]} : vector<16x21xf32> to vector<16x1xf32>
    %cst_22 = arith.constant 0.000000e+00 : f32
    %124 = vector.shape_cast %123 : vector<16x1xf32> to vector<16x1xf32>
    %125 = vector.broadcast %124 : vector<16x1xf32> to vector<16x16xf32>
    %126 = vector.broadcast %cst_22 : f32 to vector<16x16xf32>
    %127 = arith.select %29, %125, %126 : vector<16x16xi1>, vector<16x16xf32>
    %128 = arith.addf %122, %127 : vector<16x16xf32>
    %129 = vector.extract_strided_slice %68 {offsets = [0, 10], sizes = [16, 1], strides = [1, 1]} : vector<16x21xf32> to vector<16x1xf32>
    %cst_23 = arith.constant 0.000000e+00 : f32
    %130 = vector.shape_cast %129 : vector<16x1xf32> to vector<16x1xf32>
    %131 = vector.broadcast %130 : vector<16x1xf32> to vector<16x16xf32>
    %132 = vector.broadcast %cst_23 : f32 to vector<16x16xf32>
    %133 = arith.select %31, %131, %132 : vector<16x16xi1>, vector<16x16xf32>
    %134 = arith.addf %128, %133 : vector<16x16xf32>
    %135 = vector.extract_strided_slice %68 {offsets = [0, 11], sizes = [16, 1], strides = [1, 1]} : vector<16x21xf32> to vector<16x1xf32>
    %cst_24 = arith.constant 0.000000e+00 : f32
    %136 = vector.shape_cast %135 : vector<16x1xf32> to vector<16x1xf32>
    %137 = vector.broadcast %136 : vector<16x1xf32> to vector<16x16xf32>
    %138 = vector.broadcast %cst_24 : f32 to vector<16x16xf32>
    %139 = arith.select %33, %137, %138 : vector<16x16xi1>, vector<16x16xf32>
    %140 = arith.addf %134, %139 : vector<16x16xf32>
    %141 = vector.extract_strided_slice %68 {offsets = [0, 12], sizes = [16, 1], strides = [1, 1]} : vector<16x21xf32> to vector<16x1xf32>
    %cst_25 = arith.constant 0.000000e+00 : f32
    %142 = vector.shape_cast %141 : vector<16x1xf32> to vector<16x1xf32>
    %143 = vector.broadcast %142 : vector<16x1xf32> to vector<16x16xf32>
    %144 = vector.broadcast %cst_25 : f32 to vector<16x16xf32>
    %145 = arith.select %35, %143, %144 : vector<16x16xi1>, vector<16x16xf32>
    %146 = arith.addf %140, %145 : vector<16x16xf32>
    %147 = vector.extract_strided_slice %68 {offsets = [0, 13], sizes = [16, 1], strides = [1, 1]} : vector<16x21xf32> to vector<16x1xf32>
    %cst_26 = arith.constant 0.000000e+00 : f32
    %148 = vector.shape_cast %147 : vector<16x1xf32> to vector<16x1xf32>
    %149 = vector.broadcast %148 : vector<16x1xf32> to vector<16x16xf32>
    %150 = vector.broadcast %cst_26 : f32 to vector<16x16xf32>
    %151 = arith.select %37, %149, %150 : vector<16x16xi1>, vector<16x16xf32>
    %152 = arith.addf %146, %151 : vector<16x16xf32>
    %153 = vector.extract_strided_slice %68 {offsets = [0, 14], sizes = [16, 1], strides = [1, 1]} : vector<16x21xf32> to vector<16x1xf32>
    %cst_27 = arith.constant 0.000000e+00 : f32
    %154 = vector.shape_cast %153 : vector<16x1xf32> to vector<16x1xf32>
    %155 = vector.broadcast %154 : vector<16x1xf32> to vector<16x16xf32>
    %156 = vector.broadcast %cst_27 : f32 to vector<16x16xf32>
    %157 = arith.select %39, %155, %156 : vector<16x16xi1>, vector<16x16xf32>
    %158 = arith.addf %152, %157 : vector<16x16xf32>
    %159 = vector.extract_strided_slice %68 {offsets = [0, 15], sizes = [16, 1], strides = [1, 1]} : vector<16x21xf32> to vector<16x1xf32>
    %cst_28 = arith.constant 0.000000e+00 : f32
    %160 = vector.shape_cast %159 : vector<16x1xf32> to vector<16x1xf32>
    %161 = vector.broadcast %160 : vector<16x1xf32> to vector<16x16xf32>
    %162 = vector.broadcast %cst_28 : f32 to vector<16x16xf32>
    %163 = arith.select %41, %161, %162 : vector<16x16xi1>, vector<16x16xf32>
    %164 = arith.addf %158, %163 : vector<16x16xf32>
    %165 = vector.extract_strided_slice %68 {offsets = [0, 16], sizes = [16, 1], strides = [1, 1]} : vector<16x21xf32> to vector<16x1xf32>
    %cst_29 = arith.constant 0.000000e+00 : f32
    %166 = vector.shape_cast %165 : vector<16x1xf32> to vector<16x1xf32>
    %167 = vector.broadcast %166 : vector<16x1xf32> to vector<16x16xf32>
    %168 = vector.broadcast %cst_29 : f32 to vector<16x16xf32>
    %169 = arith.select %43, %167, %168 : vector<16x16xi1>, vector<16x16xf32>
    %170 = arith.addf %164, %169 : vector<16x16xf32>
    %171 = vector.extract_strided_slice %68 {offsets = [0, 17], sizes = [16, 1], strides = [1, 1]} : vector<16x21xf32> to vector<16x1xf32>
    %cst_30 = arith.constant 0.000000e+00 : f32
    %172 = vector.shape_cast %171 : vector<16x1xf32> to vector<16x1xf32>
    %173 = vector.broadcast %172 : vector<16x1xf32> to vector<16x16xf32>
    %174 = vector.broadcast %cst_30 : f32 to vector<16x16xf32>
    %175 = arith.select %45, %173, %174 : vector<16x16xi1>, vector<16x16xf32>
    %176 = arith.addf %170, %175 : vector<16x16xf32>
    %177 = vector.extract_strided_slice %68 {offsets = [0, 18], sizes = [16, 1], strides = [1, 1]} : vector<16x21xf32> to vector<16x1xf32>
    %cst_31 = arith.constant 0.000000e+00 : f32
    %178 = vector.shape_cast %177 : vector<16x1xf32> to vector<16x1xf32>
    %179 = vector.broadcast %178 : vector<16x1xf32> to vector<16x16xf32>
    %180 = vector.broadcast %cst_31 : f32 to vector<16x16xf32>
    %181 = arith.select %47, %179, %180 : vector<16x16xi1>, vector<16x16xf32>
    %182 = arith.addf %176, %181 : vector<16x16xf32>
    %183 = vector.extract_strided_slice %68 {offsets = [0, 19], sizes = [16, 1], strides = [1, 1]} : vector<16x21xf32> to vector<16x1xf32>
    %cst_32 = arith.constant 0.000000e+00 : f32
    %184 = vector.shape_cast %183 : vector<16x1xf32> to vector<16x1xf32>
    %185 = vector.broadcast %184 : vector<16x1xf32> to vector<16x16xf32>
    %186 = vector.broadcast %cst_32 : f32 to vector<16x16xf32>
    %187 = arith.select %49, %185, %186 : vector<16x16xi1>, vector<16x16xf32>
    %188 = arith.addf %182, %187 : vector<16x16xf32>
    %189 = vector.extract_strided_slice %68 {offsets = [0, 20], sizes = [16, 1], strides = [1, 1]} : vector<16x21xf32> to vector<16x1xf32>
    %cst_33 = arith.constant 0.000000e+00 : f32
    %190 = vector.shape_cast %189 : vector<16x1xf32> to vector<16x1xf32>
    %191 = vector.broadcast %190 : vector<16x1xf32> to vector<16x16xf32>
    %192 = vector.broadcast %cst_33 : f32 to vector<16x16xf32>
    %193 = arith.select %51, %191, %192 : vector<16x16xi1>, vector<16x16xf32>
    %194 = arith.addf %188, %193 : vector<16x16xf32>
    %cst_34 = arith.constant -1.000000e+04 : f32
    %195 = vector.broadcast %cst_34 : f32 to vector<16x16xf32>
    %196 = arith.select %8, %194, %195 : vector<16x16xi1>, vector<16x16xf32>
    %cst_35 = arith.constant dense<0xFF800000> : vector<16xf32>
    %197 = vector.multi_reduction <maximumf>, %196, %cst_35 [1] : vector<16x16xf32> to vector<16xf32>
    %198 = vector.shape_cast %197 : vector<16xf32> to vector<16x1xf32>
    %199 = vector.broadcast %198 : vector<16x1xf32> to vector<16x16xf32>
    %200 = arith.subf %196, %199 : vector<16x16xf32>
    %201 = math.exp %200 : vector<16x16xf32>
    %cst_36 = arith.constant dense<0.000000e+00> : vector<16xf32>
    %202 = vector.multi_reduction <add>, %201, %cst_36 [1] : vector<16x16xf32> to vector<16xf32>
    %203 = vector.shape_cast %202 : vector<16xf32> to vector<16x1xf32>
    %204 = tpu.reciprocal %203 {approx = true} : vector<16x1xf32> -> vector<16x1xf32>
    %205 = vector.broadcast %204 : vector<16x1xf32> to vector<16x16xf32>
    %206 = arith.mulf %201, %205 : vector<16x16xf32>
    %207 = arith.truncf %206 : vector<16x16xf32> to vector<16x16xbf16>
    %208 = arith.truncf %60 : vector<16x16xf32> to vector<16x16xbf16>
    %cst_37 = arith.constant dense<0.000000e+00> : vector<16x16xf32>
    %209 = tpu.matmul %207, %208, %cst_37 {dimension_numbers = #tpu.dot_dimension_numbers<[1], [0], [0], [1], [0, 0, 1, 1], [], []>} : vector<16x16xbf16>, vector<16x16xbf16>, vector<16x16xf32> -> vector<16x16xf32>
    %cst_38 = arith.constant 0.000000e+00 : f32
    %210 = vector.broadcast %cst_38 : f32 to vector<16x16xf32>
    %211 = arith.select %11, %206, %210 : vector<16x16xi1>, vector<16x16xf32>
    %cst_39 = arith.constant dense<0.000000e+00> : vector<16xf32>
    %212 = vector.multi_reduction <add>, %211, %cst_39 [1] : vector<16x16xf32> to vector<16xf32>
    %213 = vector.shape_cast %212 : vector<16xf32> to vector<16x1xf32>
    %214 = vector.extract_strided_slice %54 {offsets = [0, 0], sizes = [1, 16], strides = [1, 1]} : vector<21x16xf32> to vector<1x16xf32>
    %215 = vector.broadcast %213 : vector<16x1xf32> to vector<16x16xf32>
    %216 = vector.broadcast %214 : vector<1x16xf32> to vector<16x16xf32>
    %217 = arith.mulf %215, %216 : vector<16x16xf32>
    %218 = arith.addf %209, %217 : vector<16x16xf32>
    %cst_40 = arith.constant 0.000000e+00 : f32
    %219 = vector.broadcast %cst_40 : f32 to vector<16x16xf32>
    %220 = arith.select %13, %206, %219 : vector<16x16xi1>, vector<16x16xf32>
    %cst_41 = arith.constant dense<0.000000e+00> : vector<16xf32>
    %221 = vector.multi_reduction <add>, %220, %cst_41 [1] : vector<16x16xf32> to vector<16xf32>
    %222 = vector.shape_cast %221 : vector<16xf32> to vector<16x1xf32>
    %223 = vector.extract_strided_slice %54 {offsets = [1, 0], sizes = [1, 16], strides = [1, 1]} : vector<21x16xf32> to vector<1x16xf32>
    %224 = vector.broadcast %222 : vector<16x1xf32> to vector<16x16xf32>
    %225 = vector.broadcast %223 : vector<1x16xf32> to vector<16x16xf32>
    %226 = arith.mulf %224, %225 : vector<16x16xf32>
    %227 = arith.addf %218, %226 : vector<16x16xf32>
    %cst_42 = arith.constant 0.000000e+00 : f32
    %228 = vector.broadcast %cst_42 : f32 to vector<16x16xf32>
    %229 = arith.select %15, %206, %228 : vector<16x16xi1>, vector<16x16xf32>
    %cst_43 = arith.constant dense<0.000000e+00> : vector<16xf32>
    %230 = vector.multi_reduction <add>, %229, %cst_43 [1] : vector<16x16xf32> to vector<16xf32>
    %231 = vector.shape_cast %230 : vector<16xf32> to vector<16x1xf32>
    %232 = vector.extract_strided_slice %54 {offsets = [2, 0], sizes = [1, 16], strides = [1, 1]} : vector<21x16xf32> to vector<1x16xf32>
    %233 = vector.broadcast %231 : vector<16x1xf32> to vector<16x16xf32>
    %234 = vector.broadcast %232 : vector<1x16xf32> to vector<16x16xf32>
    %235 = arith.mulf %233, %234 : vector<16x16xf32>
    %236 = arith.addf %227, %235 : vector<16x16xf32>
    %cst_44 = arith.constant 0.000000e+00 : f32
    %237 = vector.broadcast %cst_44 : f32 to vector<16x16xf32>
    %238 = arith.select %17, %206, %237 : vector<16x16xi1>, vector<16x16xf32>
    %cst_45 = arith.constant dense<0.000000e+00> : vector<16xf32>
    %239 = vector.multi_reduction <add>, %238, %cst_45 [1] : vector<16x16xf32> to vector<16xf32>
    %240 = vector.shape_cast %239 : vector<16xf32> to vector<16x1xf32>
    %241 = vector.extract_strided_slice %54 {offsets = [3, 0], sizes = [1, 16], strides = [1, 1]} : vector<21x16xf32> to vector<1x16xf32>
    %242 = vector.broadcast %240 : vector<16x1xf32> to vector<16x16xf32>
    %243 = vector.broadcast %241 : vector<1x16xf32> to vector<16x16xf32>
    %244 = arith.mulf %242, %243 : vector<16x16xf32>
    %245 = arith.addf %236, %244 : vector<16x16xf32>
    %cst_46 = arith.constant 0.000000e+00 : f32
    %246 = vector.broadcast %cst_46 : f32 to vector<16x16xf32>
    %247 = arith.select %19, %206, %246 : vector<16x16xi1>, vector<16x16xf32>
    %cst_47 = arith.constant dense<0.000000e+00> : vector<16xf32>
    %248 = vector.multi_reduction <add>, %247, %cst_47 [1] : vector<16x16xf32> to vector<16xf32>
    %249 = vector.shape_cast %248 : vector<16xf32> to vector<16x1xf32>
    %250 = vector.extract_strided_slice %54 {offsets = [4, 0], sizes = [1, 16], strides = [1, 1]} : vector<21x16xf32> to vector<1x16xf32>
    %251 = vector.broadcast %249 : vector<16x1xf32> to vector<16x16xf32>
    %252 = vector.broadcast %250 : vector<1x16xf32> to vector<16x16xf32>
    %253 = arith.mulf %251, %252 : vector<16x16xf32>
    %254 = arith.addf %245, %253 : vector<16x16xf32>
    %cst_48 = arith.constant 0.000000e+00 : f32
    %255 = vector.broadcast %cst_48 : f32 to vector<16x16xf32>
    %256 = arith.select %21, %206, %255 : vector<16x16xi1>, vector<16x16xf32>
    %cst_49 = arith.constant dense<0.000000e+00> : vector<16xf32>
    %257 = vector.multi_reduction <add>, %256, %cst_49 [1] : vector<16x16xf32> to vector<16xf32>
    %258 = vector.shape_cast %257 : vector<16xf32> to vector<16x1xf32>
    %259 = vector.extract_strided_slice %54 {offsets = [5, 0], sizes = [1, 16], strides = [1, 1]} : vector<21x16xf32> to vector<1x16xf32>
    %260 = vector.broadcast %258 : vector<16x1xf32> to vector<16x16xf32>
    %261 = vector.broadcast %259 : vector<1x16xf32> to vector<16x16xf32>
    %262 = arith.mulf %260, %261 : vector<16x16xf32>
    %263 = arith.addf %254, %262 : vector<16x16xf32>
    %cst_50 = arith.constant 0.000000e+00 : f32
    %264 = vector.broadcast %cst_50 : f32 to vector<16x16xf32>
    %265 = arith.select %23, %206, %264 : vector<16x16xi1>, vector<16x16xf32>
    %cst_51 = arith.constant dense<0.000000e+00> : vector<16xf32>
    %266 = vector.multi_reduction <add>, %265, %cst_51 [1] : vector<16x16xf32> to vector<16xf32>
    %267 = vector.shape_cast %266 : vector<16xf32> to vector<16x1xf32>
    %268 = vector.extract_strided_slice %54 {offsets = [6, 0], sizes = [1, 16], strides = [1, 1]} : vector<21x16xf32> to vector<1x16xf32>
    %269 = vector.broadcast %267 : vector<16x1xf32> to vector<16x16xf32>
    %270 = vector.broadcast %268 : vector<1x16xf32> to vector<16x16xf32>
    %271 = arith.mulf %269, %270 : vector<16x16xf32>
    %272 = arith.addf %263, %271 : vector<16x16xf32>
    %cst_52 = arith.constant 0.000000e+00 : f32
    %273 = vector.broadcast %cst_52 : f32 to vector<16x16xf32>
    %274 = arith.select %25, %206, %273 : vector<16x16xi1>, vector<16x16xf32>
    %cst_53 = arith.constant dense<0.000000e+00> : vector<16xf32>
    %275 = vector.multi_reduction <add>, %274, %cst_53 [1] : vector<16x16xf32> to vector<16xf32>
    %276 = vector.shape_cast %275 : vector<16xf32> to vector<16x1xf32>
    %277 = vector.extract_strided_slice %54 {offsets = [7, 0], sizes = [1, 16], strides = [1, 1]} : vector<21x16xf32> to vector<1x16xf32>
    %278 = vector.broadcast %276 : vector<16x1xf32> to vector<16x16xf32>
    %279 = vector.broadcast %277 : vector<1x16xf32> to vector<16x16xf32>
    %280 = arith.mulf %278, %279 : vector<16x16xf32>
    %281 = arith.addf %272, %280 : vector<16x16xf32>
    %cst_54 = arith.constant 0.000000e+00 : f32
    %282 = vector.broadcast %cst_54 : f32 to vector<16x16xf32>
    %283 = arith.select %27, %206, %282 : vector<16x16xi1>, vector<16x16xf32>
    %cst_55 = arith.constant dense<0.000000e+00> : vector<16xf32>
    %284 = vector.multi_reduction <add>, %283, %cst_55 [1] : vector<16x16xf32> to vector<16xf32>
    %285 = vector.shape_cast %284 : vector<16xf32> to vector<16x1xf32>
    %286 = vector.extract_strided_slice %54 {offsets = [8, 0], sizes = [1, 16], strides = [1, 1]} : vector<21x16xf32> to vector<1x16xf32>
    %287 = vector.broadcast %285 : vector<16x1xf32> to vector<16x16xf32>
    %288 = vector.broadcast %286 : vector<1x16xf32> to vector<16x16xf32>
    %289 = arith.mulf %287, %288 : vector<16x16xf32>
    %290 = arith.addf %281, %289 : vector<16x16xf32>
    %cst_56 = arith.constant 0.000000e+00 : f32
    %291 = vector.broadcast %cst_56 : f32 to vector<16x16xf32>
    %292 = arith.select %29, %206, %291 : vector<16x16xi1>, vector<16x16xf32>
    %cst_57 = arith.constant dense<0.000000e+00> : vector<16xf32>
    %293 = vector.multi_reduction <add>, %292, %cst_57 [1] : vector<16x16xf32> to vector<16xf32>
    %294 = vector.shape_cast %293 : vector<16xf32> to vector<16x1xf32>
    %295 = vector.extract_strided_slice %54 {offsets = [9, 0], sizes = [1, 16], strides = [1, 1]} : vector<21x16xf32> to vector<1x16xf32>
    %296 = vector.broadcast %294 : vector<16x1xf32> to vector<16x16xf32>
    %297 = vector.broadcast %295 : vector<1x16xf32> to vector<16x16xf32>
    %298 = arith.mulf %296, %297 : vector<16x16xf32>
    %299 = arith.addf %290, %298 : vector<16x16xf32>
    %cst_58 = arith.constant 0.000000e+00 : f32
    %300 = vector.broadcast %cst_58 : f32 to vector<16x16xf32>
    %301 = arith.select %31, %206, %300 : vector<16x16xi1>, vector<16x16xf32>
    %cst_59 = arith.constant dense<0.000000e+00> : vector<16xf32>
    %302 = vector.multi_reduction <add>, %301, %cst_59 [1] : vector<16x16xf32> to vector<16xf32>
    %303 = vector.shape_cast %302 : vector<16xf32> to vector<16x1xf32>
    %304 = vector.extract_strided_slice %54 {offsets = [10, 0], sizes = [1, 16], strides = [1, 1]} : vector<21x16xf32> to vector<1x16xf32>
    %305 = vector.broadcast %303 : vector<16x1xf32> to vector<16x16xf32>
    %306 = vector.broadcast %304 : vector<1x16xf32> to vector<16x16xf32>
    %307 = arith.mulf %305, %306 : vector<16x16xf32>
    %308 = arith.addf %299, %307 : vector<16x16xf32>
    %cst_60 = arith.constant 0.000000e+00 : f32
    %309 = vector.broadcast %cst_60 : f32 to vector<16x16xf32>
    %310 = arith.select %33, %206, %309 : vector<16x16xi1>, vector<16x16xf32>
    %cst_61 = arith.constant dense<0.000000e+00> : vector<16xf32>
    %311 = vector.multi_reduction <add>, %310, %cst_61 [1] : vector<16x16xf32> to vector<16xf32>
    %312 = vector.shape_cast %311 : vector<16xf32> to vector<16x1xf32>
    %313 = vector.extract_strided_slice %54 {offsets = [11, 0], sizes = [1, 16], strides = [1, 1]} : vector<21x16xf32> to vector<1x16xf32>
    %314 = vector.broadcast %312 : vector<16x1xf32> to vector<16x16xf32>
    %315 = vector.broadcast %313 : vector<1x16xf32> to vector<16x16xf32>
    %316 = arith.mulf %314, %315 : vector<16x16xf32>
    %317 = arith.addf %308, %316 : vector<16x16xf32>
    %cst_62 = arith.constant 0.000000e+00 : f32
    %318 = vector.broadcast %cst_62 : f32 to vector<16x16xf32>
    %319 = arith.select %35, %206, %318 : vector<16x16xi1>, vector<16x16xf32>
    %cst_63 = arith.constant dense<0.000000e+00> : vector<16xf32>
    %320 = vector.multi_reduction <add>, %319, %cst_63 [1] : vector<16x16xf32> to vector<16xf32>
    %321 = vector.shape_cast %320 : vector<16xf32> to vector<16x1xf32>
    %322 = vector.extract_strided_slice %54 {offsets = [12, 0], sizes = [1, 16], strides = [1, 1]} : vector<21x16xf32> to vector<1x16xf32>
    %323 = vector.broadcast %321 : vector<16x1xf32> to vector<16x16xf32>
    %324 = vector.broadcast %322 : vector<1x16xf32> to vector<16x16xf32>
    %325 = arith.mulf %323, %324 : vector<16x16xf32>
    %326 = arith.addf %317, %325 : vector<16x16xf32>
    %cst_64 = arith.constant 0.000000e+00 : f32
    %327 = vector.broadcast %cst_64 : f32 to vector<16x16xf32>
    %328 = arith.select %37, %206, %327 : vector<16x16xi1>, vector<16x16xf32>
    %cst_65 = arith.constant dense<0.000000e+00> : vector<16xf32>
    %329 = vector.multi_reduction <add>, %328, %cst_65 [1] : vector<16x16xf32> to vector<16xf32>
    %330 = vector.shape_cast %329 : vector<16xf32> to vector<16x1xf32>
    %331 = vector.extract_strided_slice %54 {offsets = [13, 0], sizes = [1, 16], strides = [1, 1]} : vector<21x16xf32> to vector<1x16xf32>
    %332 = vector.broadcast %330 : vector<16x1xf32> to vector<16x16xf32>
    %333 = vector.broadcast %331 : vector<1x16xf32> to vector<16x16xf32>
    %334 = arith.mulf %332, %333 : vector<16x16xf32>
    %335 = arith.addf %326, %334 : vector<16x16xf32>
    %cst_66 = arith.constant 0.000000e+00 : f32
    %336 = vector.broadcast %cst_66 : f32 to vector<16x16xf32>
    %337 = arith.select %39, %206, %336 : vector<16x16xi1>, vector<16x16xf32>
    %cst_67 = arith.constant dense<0.000000e+00> : vector<16xf32>
    %338 = vector.multi_reduction <add>, %337, %cst_67 [1] : vector<16x16xf32> to vector<16xf32>
    %339 = vector.shape_cast %338 : vector<16xf32> to vector<16x1xf32>
    %340 = vector.extract_strided_slice %54 {offsets = [14, 0], sizes = [1, 16], strides = [1, 1]} : vector<21x16xf32> to vector<1x16xf32>
    %341 = vector.broadcast %339 : vector<16x1xf32> to vector<16x16xf32>
    %342 = vector.broadcast %340 : vector<1x16xf32> to vector<16x16xf32>
    %343 = arith.mulf %341, %342 : vector<16x16xf32>
    %344 = arith.addf %335, %343 : vector<16x16xf32>
    %cst_68 = arith.constant 0.000000e+00 : f32
    %345 = vector.broadcast %cst_68 : f32 to vector<16x16xf32>
    %346 = arith.select %41, %206, %345 : vector<16x16xi1>, vector<16x16xf32>
    %cst_69 = arith.constant dense<0.000000e+00> : vector<16xf32>
    %347 = vector.multi_reduction <add>, %346, %cst_69 [1] : vector<16x16xf32> to vector<16xf32>
    %348 = vector.shape_cast %347 : vector<16xf32> to vector<16x1xf32>
    %349 = vector.extract_strided_slice %54 {offsets = [15, 0], sizes = [1, 16], strides = [1, 1]} : vector<21x16xf32> to vector<1x16xf32>
    %350 = vector.broadcast %348 : vector<16x1xf32> to vector<16x16xf32>
    %351 = vector.broadcast %349 : vector<1x16xf32> to vector<16x16xf32>
    %352 = arith.mulf %350, %351 : vector<16x16xf32>
    %353 = arith.addf %344, %352 : vector<16x16xf32>
    %cst_70 = arith.constant 0.000000e+00 : f32
    %354 = vector.broadcast %cst_70 : f32 to vector<16x16xf32>
    %355 = arith.select %43, %206, %354 : vector<16x16xi1>, vector<16x16xf32>
    %cst_71 = arith.constant dense<0.000000e+00> : vector<16xf32>
    %356 = vector.multi_reduction <add>, %355, %cst_71 [1] : vector<16x16xf32> to vector<16xf32>
    %357 = vector.shape_cast %356 : vector<16xf32> to vector<16x1xf32>
    %358 = vector.extract_strided_slice %54 {offsets = [16, 0], sizes = [1, 16], strides = [1, 1]} : vector<21x16xf32> to vector<1x16xf32>
    %359 = vector.broadcast %357 : vector<16x1xf32> to vector<16x16xf32>
    %360 = vector.broadcast %358 : vector<1x16xf32> to vector<16x16xf32>
    %361 = arith.mulf %359, %360 : vector<16x16xf32>
    %362 = arith.addf %353, %361 : vector<16x16xf32>
    %cst_72 = arith.constant 0.000000e+00 : f32
    %363 = vector.broadcast %cst_72 : f32 to vector<16x16xf32>
    %364 = arith.select %45, %206, %363 : vector<16x16xi1>, vector<16x16xf32>
    %cst_73 = arith.constant dense<0.000000e+00> : vector<16xf32>
    %365 = vector.multi_reduction <add>, %364, %cst_73 [1] : vector<16x16xf32> to vector<16xf32>
    %366 = vector.shape_cast %365 : vector<16xf32> to vector<16x1xf32>
    %367 = vector.extract_strided_slice %54 {offsets = [17, 0], sizes = [1, 16], strides = [1, 1]} : vector<21x16xf32> to vector<1x16xf32>
    %368 = vector.broadcast %366 : vector<16x1xf32> to vector<16x16xf32>
    %369 = vector.broadcast %367 : vector<1x16xf32> to vector<16x16xf32>
    %370 = arith.mulf %368, %369 : vector<16x16xf32>
    %371 = arith.addf %362, %370 : vector<16x16xf32>
    %cst_74 = arith.constant 0.000000e+00 : f32
    %372 = vector.broadcast %cst_74 : f32 to vector<16x16xf32>
    %373 = arith.select %47, %206, %372 : vector<16x16xi1>, vector<16x16xf32>
    %cst_75 = arith.constant dense<0.000000e+00> : vector<16xf32>
    %374 = vector.multi_reduction <add>, %373, %cst_75 [1] : vector<16x16xf32> to vector<16xf32>
    %375 = vector.shape_cast %374 : vector<16xf32> to vector<16x1xf32>
    %376 = vector.extract_strided_slice %54 {offsets = [18, 0], sizes = [1, 16], strides = [1, 1]} : vector<21x16xf32> to vector<1x16xf32>
    %377 = vector.broadcast %375 : vector<16x1xf32> to vector<16x16xf32>
    %378 = vector.broadcast %376 : vector<1x16xf32> to vector<16x16xf32>
    %379 = arith.mulf %377, %378 : vector<16x16xf32>
    %380 = arith.addf %371, %379 : vector<16x16xf32>
    %cst_76 = arith.constant 0.000000e+00 : f32
    %381 = vector.broadcast %cst_76 : f32 to vector<16x16xf32>
    %382 = arith.select %49, %206, %381 : vector<16x16xi1>, vector<16x16xf32>
    %cst_77 = arith.constant dense<0.000000e+00> : vector<16xf32>
    %383 = vector.multi_reduction <add>, %382, %cst_77 [1] : vector<16x16xf32> to vector<16xf32>
    %384 = vector.shape_cast %383 : vector<16xf32> to vector<16x1xf32>
    %385 = vector.extract_strided_slice %54 {offsets = [19, 0], sizes = [1, 16], strides = [1, 1]} : vector<21x16xf32> to vector<1x16xf32>
    %386 = vector.broadcast %384 : vector<16x1xf32> to vector<16x16xf32>
    %387 = vector.broadcast %385 : vector<1x16xf32> to vector<16x16xf32>
    %388 = arith.mulf %386, %387 : vector<16x16xf32>
    %389 = arith.addf %380, %388 : vector<16x16xf32>
    %cst_78 = arith.constant 0.000000e+00 : f32
    %390 = vector.broadcast %cst_78 : f32 to vector<16x16xf32>
    %391 = arith.select %51, %206, %390 : vector<16x16xi1>, vector<16x16xf32>
    %cst_79 = arith.constant dense<0.000000e+00> : vector<16xf32>
    %392 = vector.multi_reduction <add>, %391, %cst_79 [1] : vector<16x16xf32> to vector<16xf32>
    %393 = vector.shape_cast %392 : vector<16xf32> to vector<16x1xf32>
    %394 = vector.extract_strided_slice %54 {offsets = [20, 0], sizes = [1, 16], strides = [1, 1]} : vector<21x16xf32> to vector<1x16xf32>
    %395 = vector.broadcast %393 : vector<16x1xf32> to vector<16x16xf32>
    %396 = vector.broadcast %394 : vector<1x16xf32> to vector<16x16xf32>
    %397 = arith.mulf %395, %396 : vector<16x16xf32>
    %398 = arith.addf %389, %397 : vector<16x16xf32>
    %c0_80 = arith.constant 0 : index
    %c0_81 = arith.constant 0 : index
    %c16 = arith.constant 16 : index
    %399 = vector.load %arg2[%c0_80, %c0_81, %c16] : memref<1x16x96xf32, #tpu.memory_space<vmem>>, vector<1x16x16xf32>
    %400 = vector.shape_cast %399 : vector<1x16x16xf32> to vector<16x16xf32>
    %c0_82 = arith.constant 0 : index
    %c0_83 = arith.constant 0 : index
    %c48 = arith.constant 48 : index
    %401 = vector.load %arg2[%c0_82, %c0_83, %c48] : memref<1x16x96xf32, #tpu.memory_space<vmem>>, vector<1x16x16xf32>
    %402 = vector.shape_cast %401 : vector<1x16x16xf32> to vector<16x16xf32>
    %c0_84 = arith.constant 0 : index
    %c0_85 = arith.constant 0 : index
    %c80 = arith.constant 80 : index
    %403 = vector.load %arg2[%c0_84, %c0_85, %c80] : memref<1x16x96xf32, #tpu.memory_space<vmem>>, vector<1x16x16xf32>
    %404 = vector.shape_cast %403 : vector<1x16x16xf32> to vector<16x16xf32>
    %405 = arith.truncf %400 : vector<16x16xf32> to vector<16x16xbf16>
    %406 = arith.truncf %402 : vector<16x16xf32> to vector<16x16xbf16>
    %cst_86 = arith.constant dense<0.000000e+00> : vector<16x16xf32>
    %407 = tpu.matmul %405, %406, %cst_86 {dimension_numbers = #tpu.dot_dimension_numbers<[1], [1], [0], [0], [0, 0, 1, 0], [], []>} : vector<16x16xbf16>, vector<16x16xbf16>, vector<16x16xf32> -> vector<16x16xf32>
    %cst_87 = arith.constant 2.500000e-01 : f32
    %408 = vector.broadcast %cst_87 : f32 to vector<16x16xf32>
    %409 = arith.mulf %407, %408 : vector<16x16xf32>
    %cst_88 = arith.constant dense<0.000000e+00> : vector<16x21xf32>
    %410 = tpu.matmul %405, %53, %cst_88 {dimension_numbers = #tpu.dot_dimension_numbers<[1], [1], [0], [0], [0, 0, 1, 0], [], []>} : vector<16x16xbf16>, vector<21x16xbf16>, vector<16x21xf32> -> vector<16x21xf32>
    %cst_89 = arith.constant 2.500000e-01 : f32
    %411 = vector.broadcast %cst_89 : f32 to vector<16x21xf32>
    %412 = arith.mulf %410, %411 : vector<16x21xf32>
    %413 = vector.extract_strided_slice %412 {offsets = [0, 0], sizes = [16, 1], strides = [1, 1]} : vector<16x21xf32> to vector<16x1xf32>
    %cst_90 = arith.constant 0.000000e+00 : f32
    %414 = vector.shape_cast %413 : vector<16x1xf32> to vector<16x1xf32>
    %415 = vector.broadcast %414 : vector<16x1xf32> to vector<16x16xf32>
    %416 = vector.broadcast %cst_90 : f32 to vector<16x16xf32>
    %417 = arith.select %11, %415, %416 : vector<16x16xi1>, vector<16x16xf32>
    %418 = arith.addf %409, %417 : vector<16x16xf32>
    %419 = vector.extract_strided_slice %412 {offsets = [0, 1], sizes = [16, 1], strides = [1, 1]} : vector<16x21xf32> to vector<16x1xf32>
    %cst_91 = arith.constant 0.000000e+00 : f32
    %420 = vector.shape_cast %419 : vector<16x1xf32> to vector<16x1xf32>
    %421 = vector.broadcast %420 : vector<16x1xf32> to vector<16x16xf32>
    %422 = vector.broadcast %cst_91 : f32 to vector<16x16xf32>
    %423 = arith.select %13, %421, %422 : vector<16x16xi1>, vector<16x16xf32>
    %424 = arith.addf %418, %423 : vector<16x16xf32>
    %425 = vector.extract_strided_slice %412 {offsets = [0, 2], sizes = [16, 1], strides = [1, 1]} : vector<16x21xf32> to vector<16x1xf32>
    %cst_92 = arith.constant 0.000000e+00 : f32
    %426 = vector.shape_cast %425 : vector<16x1xf32> to vector<16x1xf32>
    %427 = vector.broadcast %426 : vector<16x1xf32> to vector<16x16xf32>
    %428 = vector.broadcast %cst_92 : f32 to vector<16x16xf32>
    %429 = arith.select %15, %427, %428 : vector<16x16xi1>, vector<16x16xf32>
    %430 = arith.addf %424, %429 : vector<16x16xf32>
    %431 = vector.extract_strided_slice %412 {offsets = [0, 3], sizes = [16, 1], strides = [1, 1]} : vector<16x21xf32> to vector<16x1xf32>
    %cst_93 = arith.constant 0.000000e+00 : f32
    %432 = vector.shape_cast %431 : vector<16x1xf32> to vector<16x1xf32>
    %433 = vector.broadcast %432 : vector<16x1xf32> to vector<16x16xf32>
    %434 = vector.broadcast %cst_93 : f32 to vector<16x16xf32>
    %435 = arith.select %17, %433, %434 : vector<16x16xi1>, vector<16x16xf32>
    %436 = arith.addf %430, %435 : vector<16x16xf32>
    %437 = vector.extract_strided_slice %412 {offsets = [0, 4], sizes = [16, 1], strides = [1, 1]} : vector<16x21xf32> to vector<16x1xf32>
    %cst_94 = arith.constant 0.000000e+00 : f32
    %438 = vector.shape_cast %437 : vector<16x1xf32> to vector<16x1xf32>
    %439 = vector.broadcast %438 : vector<16x1xf32> to vector<16x16xf32>
    %440 = vector.broadcast %cst_94 : f32 to vector<16x16xf32>
    %441 = arith.select %19, %439, %440 : vector<16x16xi1>, vector<16x16xf32>
    %442 = arith.addf %436, %441 : vector<16x16xf32>
    %443 = vector.extract_strided_slice %412 {offsets = [0, 5], sizes = [16, 1], strides = [1, 1]} : vector<16x21xf32> to vector<16x1xf32>
    %cst_95 = arith.constant 0.000000e+00 : f32
    %444 = vector.shape_cast %443 : vector<16x1xf32> to vector<16x1xf32>
    %445 = vector.broadcast %444 : vector<16x1xf32> to vector<16x16xf32>
    %446 = vector.broadcast %cst_95 : f32 to vector<16x16xf32>
    %447 = arith.select %21, %445, %446 : vector<16x16xi1>, vector<16x16xf32>
    %448 = arith.addf %442, %447 : vector<16x16xf32>
    %449 = vector.extract_strided_slice %412 {offsets = [0, 6], sizes = [16, 1], strides = [1, 1]} : vector<16x21xf32> to vector<16x1xf32>
    %cst_96 = arith.constant 0.000000e+00 : f32
    %450 = vector.shape_cast %449 : vector<16x1xf32> to vector<16x1xf32>
    %451 = vector.broadcast %450 : vector<16x1xf32> to vector<16x16xf32>
    %452 = vector.broadcast %cst_96 : f32 to vector<16x16xf32>
    %453 = arith.select %23, %451, %452 : vector<16x16xi1>, vector<16x16xf32>
    %454 = arith.addf %448, %453 : vector<16x16xf32>
    %455 = vector.extract_strided_slice %412 {offsets = [0, 7], sizes = [16, 1], strides = [1, 1]} : vector<16x21xf32> to vector<16x1xf32>
    %cst_97 = arith.constant 0.000000e+00 : f32
    %456 = vector.shape_cast %455 : vector<16x1xf32> to vector<16x1xf32>
    %457 = vector.broadcast %456 : vector<16x1xf32> to vector<16x16xf32>
    %458 = vector.broadcast %cst_97 : f32 to vector<16x16xf32>
    %459 = arith.select %25, %457, %458 : vector<16x16xi1>, vector<16x16xf32>
    %460 = arith.addf %454, %459 : vector<16x16xf32>
    %461 = vector.extract_strided_slice %412 {offsets = [0, 8], sizes = [16, 1], strides = [1, 1]} : vector<16x21xf32> to vector<16x1xf32>
    %cst_98 = arith.constant 0.000000e+00 : f32
    %462 = vector.shape_cast %461 : vector<16x1xf32> to vector<16x1xf32>
    %463 = vector.broadcast %462 : vector<16x1xf32> to vector<16x16xf32>
    %464 = vector.broadcast %cst_98 : f32 to vector<16x16xf32>
    %465 = arith.select %27, %463, %464 : vector<16x16xi1>, vector<16x16xf32>
    %466 = arith.addf %460, %465 : vector<16x16xf32>
    %467 = vector.extract_strided_slice %412 {offsets = [0, 9], sizes = [16, 1], strides = [1, 1]} : vector<16x21xf32> to vector<16x1xf32>
    %cst_99 = arith.constant 0.000000e+00 : f32
    %468 = vector.shape_cast %467 : vector<16x1xf32> to vector<16x1xf32>
    %469 = vector.broadcast %468 : vector<16x1xf32> to vector<16x16xf32>
    %470 = vector.broadcast %cst_99 : f32 to vector<16x16xf32>
    %471 = arith.select %29, %469, %470 : vector<16x16xi1>, vector<16x16xf32>
    %472 = arith.addf %466, %471 : vector<16x16xf32>
    %473 = vector.extract_strided_slice %412 {offsets = [0, 10], sizes = [16, 1], strides = [1, 1]} : vector<16x21xf32> to vector<16x1xf32>
    %cst_100 = arith.constant 0.000000e+00 : f32
    %474 = vector.shape_cast %473 : vector<16x1xf32> to vector<16x1xf32>
    %475 = vector.broadcast %474 : vector<16x1xf32> to vector<16x16xf32>
    %476 = vector.broadcast %cst_100 : f32 to vector<16x16xf32>
    %477 = arith.select %31, %475, %476 : vector<16x16xi1>, vector<16x16xf32>
    %478 = arith.addf %472, %477 : vector<16x16xf32>
    %479 = vector.extract_strided_slice %412 {offsets = [0, 11], sizes = [16, 1], strides = [1, 1]} : vector<16x21xf32> to vector<16x1xf32>
    %cst_101 = arith.constant 0.000000e+00 : f32
    %480 = vector.shape_cast %479 : vector<16x1xf32> to vector<16x1xf32>
    %481 = vector.broadcast %480 : vector<16x1xf32> to vector<16x16xf32>
    %482 = vector.broadcast %cst_101 : f32 to vector<16x16xf32>
    %483 = arith.select %33, %481, %482 : vector<16x16xi1>, vector<16x16xf32>
    %484 = arith.addf %478, %483 : vector<16x16xf32>
    %485 = vector.extract_strided_slice %412 {offsets = [0, 12], sizes = [16, 1], strides = [1, 1]} : vector<16x21xf32> to vector<16x1xf32>
    %cst_102 = arith.constant 0.000000e+00 : f32
    %486 = vector.shape_cast %485 : vector<16x1xf32> to vector<16x1xf32>
    %487 = vector.broadcast %486 : vector<16x1xf32> to vector<16x16xf32>
    %488 = vector.broadcast %cst_102 : f32 to vector<16x16xf32>
    %489 = arith.select %35, %487, %488 : vector<16x16xi1>, vector<16x16xf32>
    %490 = arith.addf %484, %489 : vector<16x16xf32>
    %491 = vector.extract_strided_slice %412 {offsets = [0, 13], sizes = [16, 1], strides = [1, 1]} : vector<16x21xf32> to vector<16x1xf32>
    %cst_103 = arith.constant 0.000000e+00 : f32
    %492 = vector.shape_cast %491 : vector<16x1xf32> to vector<16x1xf32>
    %493 = vector.broadcast %492 : vector<16x1xf32> to vector<16x16xf32>
    %494 = vector.broadcast %cst_103 : f32 to vector<16x16xf32>
    %495 = arith.select %37, %493, %494 : vector<16x16xi1>, vector<16x16xf32>
    %496 = arith.addf %490, %495 : vector<16x16xf32>
    %497 = vector.extract_strided_slice %412 {offsets = [0, 14], sizes = [16, 1], strides = [1, 1]} : vector<16x21xf32> to vector<16x1xf32>
    %cst_104 = arith.constant 0.000000e+00 : f32
    %498 = vector.shape_cast %497 : vector<16x1xf32> to vector<16x1xf32>
    %499 = vector.broadcast %498 : vector<16x1xf32> to vector<16x16xf32>
    %500 = vector.broadcast %cst_104 : f32 to vector<16x16xf32>
    %501 = arith.select %39, %499, %500 : vector<16x16xi1>, vector<16x16xf32>
    %502 = arith.addf %496, %501 : vector<16x16xf32>
    %503 = vector.extract_strided_slice %412 {offsets = [0, 15], sizes = [16, 1], strides = [1, 1]} : vector<16x21xf32> to vector<16x1xf32>
    %cst_105 = arith.constant 0.000000e+00 : f32
    %504 = vector.shape_cast %503 : vector<16x1xf32> to vector<16x1xf32>
    %505 = vector.broadcast %504 : vector<16x1xf32> to vector<16x16xf32>
    %506 = vector.broadcast %cst_105 : f32 to vector<16x16xf32>
    %507 = arith.select %41, %505, %506 : vector<16x16xi1>, vector<16x16xf32>
    %508 = arith.addf %502, %507 : vector<16x16xf32>
    %509 = vector.extract_strided_slice %412 {offsets = [0, 16], sizes = [16, 1], strides = [1, 1]} : vector<16x21xf32> to vector<16x1xf32>
    %cst_106 = arith.constant 0.000000e+00 : f32
    %510 = vector.shape_cast %509 : vector<16x1xf32> to vector<16x1xf32>
    %511 = vector.broadcast %510 : vector<16x1xf32> to vector<16x16xf32>
    %512 = vector.broadcast %cst_106 : f32 to vector<16x16xf32>
    %513 = arith.select %43, %511, %512 : vector<16x16xi1>, vector<16x16xf32>
    %514 = arith.addf %508, %513 : vector<16x16xf32>
    %515 = vector.extract_strided_slice %412 {offsets = [0, 17], sizes = [16, 1], strides = [1, 1]} : vector<16x21xf32> to vector<16x1xf32>
    %cst_107 = arith.constant 0.000000e+00 : f32
    %516 = vector.shape_cast %515 : vector<16x1xf32> to vector<16x1xf32>
    %517 = vector.broadcast %516 : vector<16x1xf32> to vector<16x16xf32>
    %518 = vector.broadcast %cst_107 : f32 to vector<16x16xf32>
    %519 = arith.select %45, %517, %518 : vector<16x16xi1>, vector<16x16xf32>
    %520 = arith.addf %514, %519 : vector<16x16xf32>
    %521 = vector.extract_strided_slice %412 {offsets = [0, 18], sizes = [16, 1], strides = [1, 1]} : vector<16x21xf32> to vector<16x1xf32>
    %cst_108 = arith.constant 0.000000e+00 : f32
    %522 = vector.shape_cast %521 : vector<16x1xf32> to vector<16x1xf32>
    %523 = vector.broadcast %522 : vector<16x1xf32> to vector<16x16xf32>
    %524 = vector.broadcast %cst_108 : f32 to vector<16x16xf32>
    %525 = arith.select %47, %523, %524 : vector<16x16xi1>, vector<16x16xf32>
    %526 = arith.addf %520, %525 : vector<16x16xf32>
    %527 = vector.extract_strided_slice %412 {offsets = [0, 19], sizes = [16, 1], strides = [1, 1]} : vector<16x21xf32> to vector<16x1xf32>
    %cst_109 = arith.constant 0.000000e+00 : f32
    %528 = vector.shape_cast %527 : vector<16x1xf32> to vector<16x1xf32>
    %529 = vector.broadcast %528 : vector<16x1xf32> to vector<16x16xf32>
    %530 = vector.broadcast %cst_109 : f32 to vector<16x16xf32>
    %531 = arith.select %49, %529, %530 : vector<16x16xi1>, vector<16x16xf32>
    %532 = arith.addf %526, %531 : vector<16x16xf32>
    %533 = vector.extract_strided_slice %412 {offsets = [0, 20], sizes = [16, 1], strides = [1, 1]} : vector<16x21xf32> to vector<16x1xf32>
    %cst_110 = arith.constant 0.000000e+00 : f32
    %534 = vector.shape_cast %533 : vector<16x1xf32> to vector<16x1xf32>
    %535 = vector.broadcast %534 : vector<16x1xf32> to vector<16x16xf32>
    %536 = vector.broadcast %cst_110 : f32 to vector<16x16xf32>
    %537 = arith.select %51, %535, %536 : vector<16x16xi1>, vector<16x16xf32>
    %538 = arith.addf %532, %537 : vector<16x16xf32>
    %cst_111 = arith.constant -1.000000e+04 : f32
    %539 = vector.broadcast %cst_111 : f32 to vector<16x16xf32>
    %540 = arith.select %8, %538, %539 : vector<16x16xi1>, vector<16x16xf32>
    %cst_112 = arith.constant dense<0xFF800000> : vector<16xf32>
    %541 = vector.multi_reduction <maximumf>, %540, %cst_112 [1] : vector<16x16xf32> to vector<16xf32>
    %542 = vector.shape_cast %541 : vector<16xf32> to vector<16x1xf32>
    %543 = vector.broadcast %542 : vector<16x1xf32> to vector<16x16xf32>
    %544 = arith.subf %540, %543 : vector<16x16xf32>
    %545 = math.exp %544 : vector<16x16xf32>
    %cst_113 = arith.constant dense<0.000000e+00> : vector<16xf32>
    %546 = vector.multi_reduction <add>, %545, %cst_113 [1] : vector<16x16xf32> to vector<16xf32>
    %547 = vector.shape_cast %546 : vector<16xf32> to vector<16x1xf32>
    %548 = tpu.reciprocal %547 {approx = true} : vector<16x1xf32> -> vector<16x1xf32>
    %549 = vector.broadcast %548 : vector<16x1xf32> to vector<16x16xf32>
    %550 = arith.mulf %545, %549 : vector<16x16xf32>
    %551 = arith.truncf %550 : vector<16x16xf32> to vector<16x16xbf16>
    %552 = arith.truncf %404 : vector<16x16xf32> to vector<16x16xbf16>
    %cst_114 = arith.constant dense<0.000000e+00> : vector<16x16xf32>
    %553 = tpu.matmul %551, %552, %cst_114 {dimension_numbers = #tpu.dot_dimension_numbers<[1], [0], [0], [1], [0, 0, 1, 1], [], []>} : vector<16x16xbf16>, vector<16x16xbf16>, vector<16x16xf32> -> vector<16x16xf32>
    %cst_115 = arith.constant 0.000000e+00 : f32
    %554 = vector.broadcast %cst_115 : f32 to vector<16x16xf32>
    %555 = arith.select %11, %550, %554 : vector<16x16xi1>, vector<16x16xf32>
    %cst_116 = arith.constant dense<0.000000e+00> : vector<16xf32>
    %556 = vector.multi_reduction <add>, %555, %cst_116 [1] : vector<16x16xf32> to vector<16xf32>
    %557 = vector.shape_cast %556 : vector<16xf32> to vector<16x1xf32>
    %558 = vector.extract_strided_slice %54 {offsets = [0, 0], sizes = [1, 16], strides = [1, 1]} : vector<21x16xf32> to vector<1x16xf32>
    %559 = vector.broadcast %557 : vector<16x1xf32> to vector<16x16xf32>
    %560 = vector.broadcast %558 : vector<1x16xf32> to vector<16x16xf32>
    %561 = arith.mulf %559, %560 : vector<16x16xf32>
    %562 = arith.addf %553, %561 : vector<16x16xf32>
    %cst_117 = arith.constant 0.000000e+00 : f32
    %563 = vector.broadcast %cst_117 : f32 to vector<16x16xf32>
    %564 = arith.select %13, %550, %563 : vector<16x16xi1>, vector<16x16xf32>
    %cst_118 = arith.constant dense<0.000000e+00> : vector<16xf32>
    %565 = vector.multi_reduction <add>, %564, %cst_118 [1] : vector<16x16xf32> to vector<16xf32>
    %566 = vector.shape_cast %565 : vector<16xf32> to vector<16x1xf32>
    %567 = vector.extract_strided_slice %54 {offsets = [1, 0], sizes = [1, 16], strides = [1, 1]} : vector<21x16xf32> to vector<1x16xf32>
    %568 = vector.broadcast %566 : vector<16x1xf32> to vector<16x16xf32>
    %569 = vector.broadcast %567 : vector<1x16xf32> to vector<16x16xf32>
    %570 = arith.mulf %568, %569 : vector<16x16xf32>
    %571 = arith.addf %562, %570 : vector<16x16xf32>
    %cst_119 = arith.constant 0.000000e+00 : f32
    %572 = vector.broadcast %cst_119 : f32 to vector<16x16xf32>
    %573 = arith.select %15, %550, %572 : vector<16x16xi1>, vector<16x16xf32>
    %cst_120 = arith.constant dense<0.000000e+00> : vector<16xf32>
    %574 = vector.multi_reduction <add>, %573, %cst_120 [1] : vector<16x16xf32> to vector<16xf32>
    %575 = vector.shape_cast %574 : vector<16xf32> to vector<16x1xf32>
    %576 = vector.extract_strided_slice %54 {offsets = [2, 0], sizes = [1, 16], strides = [1, 1]} : vector<21x16xf32> to vector<1x16xf32>
    %577 = vector.broadcast %575 : vector<16x1xf32> to vector<16x16xf32>
    %578 = vector.broadcast %576 : vector<1x16xf32> to vector<16x16xf32>
    %579 = arith.mulf %577, %578 : vector<16x16xf32>
    %580 = arith.addf %571, %579 : vector<16x16xf32>
    %cst_121 = arith.constant 0.000000e+00 : f32
    %581 = vector.broadcast %cst_121 : f32 to vector<16x16xf32>
    %582 = arith.select %17, %550, %581 : vector<16x16xi1>, vector<16x16xf32>
    %cst_122 = arith.constant dense<0.000000e+00> : vector<16xf32>
    %583 = vector.multi_reduction <add>, %582, %cst_122 [1] : vector<16x16xf32> to vector<16xf32>
    %584 = vector.shape_cast %583 : vector<16xf32> to vector<16x1xf32>
    %585 = vector.extract_strided_slice %54 {offsets = [3, 0], sizes = [1, 16], strides = [1, 1]} : vector<21x16xf32> to vector<1x16xf32>
    %586 = vector.broadcast %584 : vector<16x1xf32> to vector<16x16xf32>
    %587 = vector.broadcast %585 : vector<1x16xf32> to vector<16x16xf32>
    %588 = arith.mulf %586, %587 : vector<16x16xf32>
    %589 = arith.addf %580, %588 : vector<16x16xf32>
    %cst_123 = arith.constant 0.000000e+00 : f32
    %590 = vector.broadcast %cst_123 : f32 to vector<16x16xf32>
    %591 = arith.select %19, %550, %590 : vector<16x16xi1>, vector<16x16xf32>
    %cst_124 = arith.constant dense<0.000000e+00> : vector<16xf32>
    %592 = vector.multi_reduction <add>, %591, %cst_124 [1] : vector<16x16xf32> to vector<16xf32>
    %593 = vector.shape_cast %592 : vector<16xf32> to vector<16x1xf32>
    %594 = vector.extract_strided_slice %54 {offsets = [4, 0], sizes = [1, 16], strides = [1, 1]} : vector<21x16xf32> to vector<1x16xf32>
    %595 = vector.broadcast %593 : vector<16x1xf32> to vector<16x16xf32>
    %596 = vector.broadcast %594 : vector<1x16xf32> to vector<16x16xf32>
    %597 = arith.mulf %595, %596 : vector<16x16xf32>
    %598 = arith.addf %589, %597 : vector<16x16xf32>
    %cst_125 = arith.constant 0.000000e+00 : f32
    %599 = vector.broadcast %cst_125 : f32 to vector<16x16xf32>
    %600 = arith.select %21, %550, %599 : vector<16x16xi1>, vector<16x16xf32>
    %cst_126 = arith.constant dense<0.000000e+00> : vector<16xf32>
    %601 = vector.multi_reduction <add>, %600, %cst_126 [1] : vector<16x16xf32> to vector<16xf32>
    %602 = vector.shape_cast %601 : vector<16xf32> to vector<16x1xf32>
    %603 = vector.extract_strided_slice %54 {offsets = [5, 0], sizes = [1, 16], strides = [1, 1]} : vector<21x16xf32> to vector<1x16xf32>
    %604 = vector.broadcast %602 : vector<16x1xf32> to vector<16x16xf32>
    %605 = vector.broadcast %603 : vector<1x16xf32> to vector<16x16xf32>
    %606 = arith.mulf %604, %605 : vector<16x16xf32>
    %607 = arith.addf %598, %606 : vector<16x16xf32>
    %cst_127 = arith.constant 0.000000e+00 : f32
    %608 = vector.broadcast %cst_127 : f32 to vector<16x16xf32>
    %609 = arith.select %23, %550, %608 : vector<16x16xi1>, vector<16x16xf32>
    %cst_128 = arith.constant dense<0.000000e+00> : vector<16xf32>
    %610 = vector.multi_reduction <add>, %609, %cst_128 [1] : vector<16x16xf32> to vector<16xf32>
    %611 = vector.shape_cast %610 : vector<16xf32> to vector<16x1xf32>
    %612 = vector.extract_strided_slice %54 {offsets = [6, 0], sizes = [1, 16], strides = [1, 1]} : vector<21x16xf32> to vector<1x16xf32>
    %613 = vector.broadcast %611 : vector<16x1xf32> to vector<16x16xf32>
    %614 = vector.broadcast %612 : vector<1x16xf32> to vector<16x16xf32>
    %615 = arith.mulf %613, %614 : vector<16x16xf32>
    %616 = arith.addf %607, %615 : vector<16x16xf32>
    %cst_129 = arith.constant 0.000000e+00 : f32
    %617 = vector.broadcast %cst_129 : f32 to vector<16x16xf32>
    %618 = arith.select %25, %550, %617 : vector<16x16xi1>, vector<16x16xf32>
    %cst_130 = arith.constant dense<0.000000e+00> : vector<16xf32>
    %619 = vector.multi_reduction <add>, %618, %cst_130 [1] : vector<16x16xf32> to vector<16xf32>
    %620 = vector.shape_cast %619 : vector<16xf32> to vector<16x1xf32>
    %621 = vector.extract_strided_slice %54 {offsets = [7, 0], sizes = [1, 16], strides = [1, 1]} : vector<21x16xf32> to vector<1x16xf32>
    %622 = vector.broadcast %620 : vector<16x1xf32> to vector<16x16xf32>
    %623 = vector.broadcast %621 : vector<1x16xf32> to vector<16x16xf32>
    %624 = arith.mulf %622, %623 : vector<16x16xf32>
    %625 = arith.addf %616, %624 : vector<16x16xf32>
    %cst_131 = arith.constant 0.000000e+00 : f32
    %626 = vector.broadcast %cst_131 : f32 to vector<16x16xf32>
    %627 = arith.select %27, %550, %626 : vector<16x16xi1>, vector<16x16xf32>
    %cst_132 = arith.constant dense<0.000000e+00> : vector<16xf32>
    %628 = vector.multi_reduction <add>, %627, %cst_132 [1] : vector<16x16xf32> to vector<16xf32>
    %629 = vector.shape_cast %628 : vector<16xf32> to vector<16x1xf32>
    %630 = vector.extract_strided_slice %54 {offsets = [8, 0], sizes = [1, 16], strides = [1, 1]} : vector<21x16xf32> to vector<1x16xf32>
    %631 = vector.broadcast %629 : vector<16x1xf32> to vector<16x16xf32>
    %632 = vector.broadcast %630 : vector<1x16xf32> to vector<16x16xf32>
    %633 = arith.mulf %631, %632 : vector<16x16xf32>
    %634 = arith.addf %625, %633 : vector<16x16xf32>
    %cst_133 = arith.constant 0.000000e+00 : f32
    %635 = vector.broadcast %cst_133 : f32 to vector<16x16xf32>
    %636 = arith.select %29, %550, %635 : vector<16x16xi1>, vector<16x16xf32>
    %cst_134 = arith.constant dense<0.000000e+00> : vector<16xf32>
    %637 = vector.multi_reduction <add>, %636, %cst_134 [1] : vector<16x16xf32> to vector<16xf32>
    %638 = vector.shape_cast %637 : vector<16xf32> to vector<16x1xf32>
    %639 = vector.extract_strided_slice %54 {offsets = [9, 0], sizes = [1, 16], strides = [1, 1]} : vector<21x16xf32> to vector<1x16xf32>
    %640 = vector.broadcast %638 : vector<16x1xf32> to vector<16x16xf32>
    %641 = vector.broadcast %639 : vector<1x16xf32> to vector<16x16xf32>
    %642 = arith.mulf %640, %641 : vector<16x16xf32>
    %643 = arith.addf %634, %642 : vector<16x16xf32>
    %cst_135 = arith.constant 0.000000e+00 : f32
    %644 = vector.broadcast %cst_135 : f32 to vector<16x16xf32>
    %645 = arith.select %31, %550, %644 : vector<16x16xi1>, vector<16x16xf32>
    %cst_136 = arith.constant dense<0.000000e+00> : vector<16xf32>
    %646 = vector.multi_reduction <add>, %645, %cst_136 [1] : vector<16x16xf32> to vector<16xf32>
    %647 = vector.shape_cast %646 : vector<16xf32> to vector<16x1xf32>
    %648 = vector.extract_strided_slice %54 {offsets = [10, 0], sizes = [1, 16], strides = [1, 1]} : vector<21x16xf32> to vector<1x16xf32>
    %649 = vector.broadcast %647 : vector<16x1xf32> to vector<16x16xf32>
    %650 = vector.broadcast %648 : vector<1x16xf32> to vector<16x16xf32>
    %651 = arith.mulf %649, %650 : vector<16x16xf32>
    %652 = arith.addf %643, %651 : vector<16x16xf32>
    %cst_137 = arith.constant 0.000000e+00 : f32
    %653 = vector.broadcast %cst_137 : f32 to vector<16x16xf32>
    %654 = arith.select %33, %550, %653 : vector<16x16xi1>, vector<16x16xf32>
    %cst_138 = arith.constant dense<0.000000e+00> : vector<16xf32>
    %655 = vector.multi_reduction <add>, %654, %cst_138 [1] : vector<16x16xf32> to vector<16xf32>
    %656 = vector.shape_cast %655 : vector<16xf32> to vector<16x1xf32>
    %657 = vector.extract_strided_slice %54 {offsets = [11, 0], sizes = [1, 16], strides = [1, 1]} : vector<21x16xf32> to vector<1x16xf32>
    %658 = vector.broadcast %656 : vector<16x1xf32> to vector<16x16xf32>
    %659 = vector.broadcast %657 : vector<1x16xf32> to vector<16x16xf32>
    %660 = arith.mulf %658, %659 : vector<16x16xf32>
    %661 = arith.addf %652, %660 : vector<16x16xf32>
    %cst_139 = arith.constant 0.000000e+00 : f32
    %662 = vector.broadcast %cst_139 : f32 to vector<16x16xf32>
    %663 = arith.select %35, %550, %662 : vector<16x16xi1>, vector<16x16xf32>
    %cst_140 = arith.constant dense<0.000000e+00> : vector<16xf32>
    %664 = vector.multi_reduction <add>, %663, %cst_140 [1] : vector<16x16xf32> to vector<16xf32>
    %665 = vector.shape_cast %664 : vector<16xf32> to vector<16x1xf32>
    %666 = vector.extract_strided_slice %54 {offsets = [12, 0], sizes = [1, 16], strides = [1, 1]} : vector<21x16xf32> to vector<1x16xf32>
    %667 = vector.broadcast %665 : vector<16x1xf32> to vector<16x16xf32>
    %668 = vector.broadcast %666 : vector<1x16xf32> to vector<16x16xf32>
    %669 = arith.mulf %667, %668 : vector<16x16xf32>
    %670 = arith.addf %661, %669 : vector<16x16xf32>
    %cst_141 = arith.constant 0.000000e+00 : f32
    %671 = vector.broadcast %cst_141 : f32 to vector<16x16xf32>
    %672 = arith.select %37, %550, %671 : vector<16x16xi1>, vector<16x16xf32>
    %cst_142 = arith.constant dense<0.000000e+00> : vector<16xf32>
    %673 = vector.multi_reduction <add>, %672, %cst_142 [1] : vector<16x16xf32> to vector<16xf32>
    %674 = vector.shape_cast %673 : vector<16xf32> to vector<16x1xf32>
    %675 = vector.extract_strided_slice %54 {offsets = [13, 0], sizes = [1, 16], strides = [1, 1]} : vector<21x16xf32> to vector<1x16xf32>
    %676 = vector.broadcast %674 : vector<16x1xf32> to vector<16x16xf32>
    %677 = vector.broadcast %675 : vector<1x16xf32> to vector<16x16xf32>
    %678 = arith.mulf %676, %677 : vector<16x16xf32>
    %679 = arith.addf %670, %678 : vector<16x16xf32>
    %cst_143 = arith.constant 0.000000e+00 : f32
    %680 = vector.broadcast %cst_143 : f32 to vector<16x16xf32>
    %681 = arith.select %39, %550, %680 : vector<16x16xi1>, vector<16x16xf32>
    %cst_144 = arith.constant dense<0.000000e+00> : vector<16xf32>
    %682 = vector.multi_reduction <add>, %681, %cst_144 [1] : vector<16x16xf32> to vector<16xf32>
    %683 = vector.shape_cast %682 : vector<16xf32> to vector<16x1xf32>
    %684 = vector.extract_strided_slice %54 {offsets = [14, 0], sizes = [1, 16], strides = [1, 1]} : vector<21x16xf32> to vector<1x16xf32>
    %685 = vector.broadcast %683 : vector<16x1xf32> to vector<16x16xf32>
    %686 = vector.broadcast %684 : vector<1x16xf32> to vector<16x16xf32>
    %687 = arith.mulf %685, %686 : vector<16x16xf32>
    %688 = arith.addf %679, %687 : vector<16x16xf32>
    %cst_145 = arith.constant 0.000000e+00 : f32
    %689 = vector.broadcast %cst_145 : f32 to vector<16x16xf32>
    %690 = arith.select %41, %550, %689 : vector<16x16xi1>, vector<16x16xf32>
    %cst_146 = arith.constant dense<0.000000e+00> : vector<16xf32>
    %691 = vector.multi_reduction <add>, %690, %cst_146 [1] : vector<16x16xf32> to vector<16xf32>
    %692 = vector.shape_cast %691 : vector<16xf32> to vector<16x1xf32>
    %693 = vector.extract_strided_slice %54 {offsets = [15, 0], sizes = [1, 16], strides = [1, 1]} : vector<21x16xf32> to vector<1x16xf32>
    %694 = vector.broadcast %692 : vector<16x1xf32> to vector<16x16xf32>
    %695 = vector.broadcast %693 : vector<1x16xf32> to vector<16x16xf32>
    %696 = arith.mulf %694, %695 : vector<16x16xf32>
    %697 = arith.addf %688, %696 : vector<16x16xf32>
    %cst_147 = arith.constant 0.000000e+00 : f32
    %698 = vector.broadcast %cst_147 : f32 to vector<16x16xf32>
    %699 = arith.select %43, %550, %698 : vector<16x16xi1>, vector<16x16xf32>
    %cst_148 = arith.constant dense<0.000000e+00> : vector<16xf32>
    %700 = vector.multi_reduction <add>, %699, %cst_148 [1] : vector<16x16xf32> to vector<16xf32>
    %701 = vector.shape_cast %700 : vector<16xf32> to vector<16x1xf32>
    %702 = vector.extract_strided_slice %54 {offsets = [16, 0], sizes = [1, 16], strides = [1, 1]} : vector<21x16xf32> to vector<1x16xf32>
    %703 = vector.broadcast %701 : vector<16x1xf32> to vector<16x16xf32>
    %704 = vector.broadcast %702 : vector<1x16xf32> to vector<16x16xf32>
    %705 = arith.mulf %703, %704 : vector<16x16xf32>
    %706 = arith.addf %697, %705 : vector<16x16xf32>
    %cst_149 = arith.constant 0.000000e+00 : f32
    %707 = vector.broadcast %cst_149 : f32 to vector<16x16xf32>
    %708 = arith.select %45, %550, %707 : vector<16x16xi1>, vector<16x16xf32>
    %cst_150 = arith.constant dense<0.000000e+00> : vector<16xf32>
    %709 = vector.multi_reduction <add>, %708, %cst_150 [1] : vector<16x16xf32> to vector<16xf32>
    %710 = vector.shape_cast %709 : vector<16xf32> to vector<16x1xf32>
    %711 = vector.extract_strided_slice %54 {offsets = [17, 0], sizes = [1, 16], strides = [1, 1]} : vector<21x16xf32> to vector<1x16xf32>
    %712 = vector.broadcast %710 : vector<16x1xf32> to vector<16x16xf32>
    %713 = vector.broadcast %711 : vector<1x16xf32> to vector<16x16xf32>
    %714 = arith.mulf %712, %713 : vector<16x16xf32>
    %715 = arith.addf %706, %714 : vector<16x16xf32>
    %cst_151 = arith.constant 0.000000e+00 : f32
    %716 = vector.broadcast %cst_151 : f32 to vector<16x16xf32>
    %717 = arith.select %47, %550, %716 : vector<16x16xi1>, vector<16x16xf32>
    %cst_152 = arith.constant dense<0.000000e+00> : vector<16xf32>
    %718 = vector.multi_reduction <add>, %717, %cst_152 [1] : vector<16x16xf32> to vector<16xf32>
    %719 = vector.shape_cast %718 : vector<16xf32> to vector<16x1xf32>
    %720 = vector.extract_strided_slice %54 {offsets = [18, 0], sizes = [1, 16], strides = [1, 1]} : vector<21x16xf32> to vector<1x16xf32>
    %721 = vector.broadcast %719 : vector<16x1xf32> to vector<16x16xf32>
    %722 = vector.broadcast %720 : vector<1x16xf32> to vector<16x16xf32>
    %723 = arith.mulf %721, %722 : vector<16x16xf32>
    %724 = arith.addf %715, %723 : vector<16x16xf32>
    %cst_153 = arith.constant 0.000000e+00 : f32
    %725 = vector.broadcast %cst_153 : f32 to vector<16x16xf32>
    %726 = arith.select %49, %550, %725 : vector<16x16xi1>, vector<16x16xf32>
    %cst_154 = arith.constant dense<0.000000e+00> : vector<16xf32>
    %727 = vector.multi_reduction <add>, %726, %cst_154 [1] : vector<16x16xf32> to vector<16xf32>
    %728 = vector.shape_cast %727 : vector<16xf32> to vector<16x1xf32>
    %729 = vector.extract_strided_slice %54 {offsets = [19, 0], sizes = [1, 16], strides = [1, 1]} : vector<21x16xf32> to vector<1x16xf32>
    %730 = vector.broadcast %728 : vector<16x1xf32> to vector<16x16xf32>
    %731 = vector.broadcast %729 : vector<1x16xf32> to vector<16x16xf32>
    %732 = arith.mulf %730, %731 : vector<16x16xf32>
    %733 = arith.addf %724, %732 : vector<16x16xf32>
    %cst_155 = arith.constant 0.000000e+00 : f32
    %734 = vector.broadcast %cst_155 : f32 to vector<16x16xf32>
    %735 = arith.select %51, %550, %734 : vector<16x16xi1>, vector<16x16xf32>
    %cst_156 = arith.constant dense<0.000000e+00> : vector<16xf32>
    %736 = vector.multi_reduction <add>, %735, %cst_156 [1] : vector<16x16xf32> to vector<16xf32>
    %737 = vector.shape_cast %736 : vector<16xf32> to vector<16x1xf32>
    %738 = vector.extract_strided_slice %54 {offsets = [20, 0], sizes = [1, 16], strides = [1, 1]} : vector<21x16xf32> to vector<1x16xf32>
    %739 = vector.broadcast %737 : vector<16x1xf32> to vector<16x16xf32>
    %740 = vector.broadcast %738 : vector<1x16xf32> to vector<16x16xf32>
    %741 = arith.mulf %739, %740 : vector<16x16xf32>
    %742 = arith.addf %733, %741 : vector<16x16xf32>
    %743 = tpu.concatenate %398, %742 in 1 : vector<16x16xf32>, vector<16x16xf32> -> vector<16x32xf32>
    %c0_157 = arith.constant 0 : index
    %c0_158 = arith.constant 0 : index
    %c0_159 = arith.constant 0 : index
    %744 = vector.load %arg5[%c0_157, %c0_158, %c0_159] : memref<1x16x32xf32, #tpu.memory_space<vmem>>, vector<1x16x32xf32>
    %745 = vector.shape_cast %744 : vector<1x16x32xf32> to vector<16x32xf32>
    %746 = vector.shape_cast %743 : vector<16x32xf32> to vector<1x16x32xf32>
    tpu.vector_store %arg5[%c0_157, %c0_158, %c0_159], %746 {strides = array<i32>} : memref<1x16x32xf32, #tpu.memory_space<vmem>>, vector<1x16x32xf32>,
    return
  }
  func.func @transform_0(%arg0: i32, %arg1: memref<2xi32, #tpu.memory_space<smem>>) -> (i32, i32, i32) {
    %c0_i32 = arith.constant 0 : i32
    %c0_i32_0 = arith.constant 0 : i32
    %c0_i32_1 = arith.constant 0 : i32
    return %arg0, %c0_i32, %c0_i32_0 : i32, i32, i32
  }
  func.func @transform_1(%arg0: i32, %arg1: memref<2xi32, #tpu.memory_space<smem>>) -> (i32, i32) {
    %c0_i32 = arith.constant 0 : i32
    %c0_i32_0 = arith.constant 0 : i32
    %c0_i32_1 = arith.constant 0 : i32
    return %c0_i32, %c0_i32_0 : i32, i32
  }
  func.func @transform_2(%arg0: i32, %arg1: memref<2xi32, #tpu.memory_space<smem>>) -> (i32, i32) {
    %c0_i32 = arith.constant 0 : i32
    %c0_i32_0 = arith.constant 0 : i32
    %c0_i32_1 = arith.constant 0 : i32
    return %c0_i32, %c0_i32_0 : i32, i32
  }
  func.func @transform_3(%arg0: i32, %arg1: memref<2xi32, #tpu.memory_space<smem>>) -> (i32, i32, i32) {
    %c0_i32 = arith.constant 0 : i32
    %c0_i32_0 = arith.constant 0 : i32
    %c0_i32_1 = arith.constant 0 : i32
    return %arg0, %c0_i32, %c0_i32_0 : i32, i32, i32
  }
}

module attributes {stable_mosaic.version = 11 : i64} {
  func.func @_conv_relu_kernel(%arg0: i32, %arg1: memref<1x18x32xf32, #tpu.memory_space<vmem>>, %arg2: memref<3x32x64xf32, #tpu.memory_space<vmem>>, %arg3: memref<1x64xf32, #tpu.memory_space<vmem>>, %arg4: memref<1x16x1xf32, #tpu.memory_space<vmem>>, %arg5: memref<1x16x64xf32, #tpu.memory_space<vmem>>) attributes {dimension_semantics = [#tpu.dimension_semantics<parallel>], iteration_bounds = array<i64: 2>, scalar_prefetch = 0 : i64, scratch_operands = 0 : i64, tpu.core_type = #tpu.core_type<tc>, window_params = [{transform_indices = @transform_0, window_bounds = array<i64: 1, 18, 32>}, {pipeline_mode = #tpu.pipeline_mode<synchronous>, transform_indices = @transform_1, window_bounds = array<i64: 3, 32, 64>}, {pipeline_mode = #tpu.pipeline_mode<synchronous>, transform_indices = @transform_2, window_bounds = array<i64: 1, 64>}, {transform_indices = @transform_3, window_bounds = array<i64: 1, 16, 1>}, {transform_indices = @transform_4, window_bounds = array<i64: 1, 16, 64>}]} {
    %cst = arith.constant 0.000000e+00 : f32
    %0 = vector.broadcast %cst : f32 to vector<16x64xf32>
    %c0 = arith.constant 0 : index
    %c0_0 = arith.constant 0 : index
    %c0_1 = arith.constant 0 : index
    %1 = vector.load %arg1[%c0, %c0_0, %c0_1] : memref<1x18x32xf32, #tpu.memory_space<vmem>>, vector<1x16x32xf32>
    %2 = vector.shape_cast %1 : vector<1x16x32xf32> to vector<16x32xf32>
    %3 = arith.truncf %2 : vector<16x32xf32> to vector<16x32xbf16>
    %c0_2 = arith.constant 0 : index
    %c0_3 = arith.constant 0 : index
    %c0_4 = arith.constant 0 : index
    %4 = vector.load %arg2[%c0_2, %c0_3, %c0_4] : memref<3x32x64xf32, #tpu.memory_space<vmem>>, vector<1x32x64xf32>
    %5 = vector.shape_cast %4 : vector<1x32x64xf32> to vector<32x64xf32>
    %6 = arith.truncf %5 : vector<32x64xf32> to vector<32x64xbf16>
    %cst_5 = arith.constant dense<0.000000e+00> : vector<16x64xf32>
    %7 = tpu.matmul %3, %6, %cst_5 {dimension_numbers = #tpu.dot_dimension_numbers<[1], [0], [0], [1], [0, 0, 1, 1], [], []>} : vector<16x32xbf16>, vector<32x64xbf16>, vector<16x64xf32> -> vector<16x64xf32>
    %8 = arith.addf %0, %7 : vector<16x64xf32>
    %c0_6 = arith.constant 0 : index
    %c1 = arith.constant 1 : index
    %c0_7 = arith.constant 0 : index
    %9 = vector.load %arg1[%c0_6, %c1, %c0_7] : memref<1x18x32xf32, #tpu.memory_space<vmem>>, vector<1x16x32xf32>
    %10 = vector.shape_cast %9 : vector<1x16x32xf32> to vector<16x32xf32>
    %11 = arith.truncf %10 : vector<16x32xf32> to vector<16x32xbf16>
    %c1_8 = arith.constant 1 : index
    %c0_9 = arith.constant 0 : index
    %c0_10 = arith.constant 0 : index
    %12 = vector.load %arg2[%c1_8, %c0_9, %c0_10] : memref<3x32x64xf32, #tpu.memory_space<vmem>>, vector<1x32x64xf32>
    %13 = vector.shape_cast %12 : vector<1x32x64xf32> to vector<32x64xf32>
    %14 = arith.truncf %13 : vector<32x64xf32> to vector<32x64xbf16>
    %cst_11 = arith.constant dense<0.000000e+00> : vector<16x64xf32>
    %15 = tpu.matmul %11, %14, %cst_11 {dimension_numbers = #tpu.dot_dimension_numbers<[1], [0], [0], [1], [0, 0, 1, 1], [], []>} : vector<16x32xbf16>, vector<32x64xbf16>, vector<16x64xf32> -> vector<16x64xf32>
    %16 = arith.addf %8, %15 : vector<16x64xf32>
    %c0_12 = arith.constant 0 : index
    %c2 = arith.constant 2 : index
    %c0_13 = arith.constant 0 : index
    %17 = vector.load %arg1[%c0_12, %c2, %c0_13] : memref<1x18x32xf32, #tpu.memory_space<vmem>>, vector<1x16x32xf32>
    %18 = vector.shape_cast %17 : vector<1x16x32xf32> to vector<16x32xf32>
    %19 = arith.truncf %18 : vector<16x32xf32> to vector<16x32xbf16>
    %c2_14 = arith.constant 2 : index
    %c0_15 = arith.constant 0 : index
    %c0_16 = arith.constant 0 : index
    %20 = vector.load %arg2[%c2_14, %c0_15, %c0_16] : memref<3x32x64xf32, #tpu.memory_space<vmem>>, vector<1x32x64xf32>
    %21 = vector.shape_cast %20 : vector<1x32x64xf32> to vector<32x64xf32>
    %22 = arith.truncf %21 : vector<32x64xf32> to vector<32x64xbf16>
    %cst_17 = arith.constant dense<0.000000e+00> : vector<16x64xf32>
    %23 = tpu.matmul %19, %22, %cst_17 {dimension_numbers = #tpu.dot_dimension_numbers<[1], [0], [0], [1], [0, 0, 1, 1], [], []>} : vector<16x32xbf16>, vector<32x64xbf16>, vector<16x64xf32> -> vector<16x64xf32>
    %24 = arith.addf %16, %23 : vector<16x64xf32>
    %c0_18 = arith.constant 0 : index
    %c0_19 = arith.constant 0 : index
    %25 = vector.load %arg3[%c0_18, %c0_19] : memref<1x64xf32, #tpu.memory_space<vmem>>, vector<1x64xf32>
    %26 = vector.broadcast %25 : vector<1x64xf32> to vector<16x64xf32>
    %27 = arith.addf %24, %26 : vector<16x64xf32>
    %cst_20 = arith.constant 0.000000e+00 : f32
    %28 = vector.broadcast %cst_20 : f32 to vector<16x64xf32>
    %29 = arith.maximumf %27, %28 : vector<16x64xf32>
    %c0_21 = arith.constant 0 : index
    %c0_22 = arith.constant 0 : index
    %c0_23 = arith.constant 0 : index
    %30 = vector.load %arg4[%c0_21, %c0_22, %c0_23] : memref<1x16x1xf32, #tpu.memory_space<vmem>>, vector<1x16x1xf32>
    %31 = vector.shape_cast %30 : vector<1x16x1xf32> to vector<16x1xf32>
    %32 = vector.broadcast %31 : vector<16x1xf32> to vector<16x64xf32>
    %33 = arith.mulf %29, %32 : vector<16x64xf32>
    %c0_24 = arith.constant 0 : index
    %c0_25 = arith.constant 0 : index
    %c0_26 = arith.constant 0 : index
    %34 = vector.load %arg5[%c0_24, %c0_25, %c0_26] : memref<1x16x64xf32, #tpu.memory_space<vmem>>, vector<1x16x64xf32>
    %35 = vector.shape_cast %34 : vector<1x16x64xf32> to vector<16x64xf32>
    %36 = vector.shape_cast %33 : vector<16x64xf32> to vector<1x16x64xf32>
    tpu.vector_store %arg5[%c0_24, %c0_25, %c0_26], %36 {strides = array<i32>} : memref<1x16x64xf32, #tpu.memory_space<vmem>>, vector<1x16x64xf32>,
    return
  }
  func.func @transform_0(%arg0: i32) -> (i32, i32, i32) {
    %c0_i32 = arith.constant 0 : i32
    %c0_i32_0 = arith.constant 0 : i32
    %c0_i32_1 = arith.constant 0 : i32
    return %arg0, %c0_i32, %c0_i32_0 : i32, i32, i32
  }
  func.func @transform_1(%arg0: i32) -> (i32, i32, i32) {
    %c0_i32 = arith.constant 0 : i32
    %c0_i32_0 = arith.constant 0 : i32
    %c0_i32_1 = arith.constant 0 : i32
    %c0_i32_2 = arith.constant 0 : i32
    return %c0_i32, %c0_i32_0, %c0_i32_1 : i32, i32, i32
  }
  func.func @transform_2(%arg0: i32) -> (i32, i32) {
    %c0_i32 = arith.constant 0 : i32
    %c0_i32_0 = arith.constant 0 : i32
    %c0_i32_1 = arith.constant 0 : i32
    return %c0_i32, %c0_i32_0 : i32, i32
  }
  func.func @transform_3(%arg0: i32) -> (i32, i32, i32) {
    %c0_i32 = arith.constant 0 : i32
    %c0_i32_0 = arith.constant 0 : i32
    %c0_i32_1 = arith.constant 0 : i32
    return %arg0, %c0_i32, %c0_i32_0 : i32, i32, i32
  }
  func.func @transform_4(%arg0: i32) -> (i32, i32, i32) {
    %c0_i32 = arith.constant 0 : i32
    %c0_i32_0 = arith.constant 0 : i32
    %c0_i32_1 = arith.constant 0 : i32
    return %arg0, %c0_i32, %c0_i32_0 : i32, i32, i32
  }
}

module attributes {stable_mosaic.version = 11 : i64} {
  func.func @_conv_add_ln_kernel(%arg0: i32, %arg1: memref<1x18x64xf32, #tpu.memory_space<vmem>>, %arg2: memref<3x64x32xf32, #tpu.memory_space<vmem>>, %arg3: memref<1x32xf32, #tpu.memory_space<vmem>>, %arg4: memref<1x16x32xf32, #tpu.memory_space<vmem>>, %arg5: memref<1x32xf32, #tpu.memory_space<vmem>>, %arg6: memref<1x32xf32, #tpu.memory_space<vmem>>, %arg7: memref<1x16x1xf32, #tpu.memory_space<vmem>>, %arg8: memref<1x16x32xf32, #tpu.memory_space<vmem>>) attributes {dimension_semantics = [#tpu.dimension_semantics<parallel>], iteration_bounds = array<i64: 2>, scalar_prefetch = 0 : i64, scratch_operands = 0 : i64, tpu.core_type = #tpu.core_type<tc>, window_params = [{transform_indices = @transform_0, window_bounds = array<i64: 1, 18, 64>}, {pipeline_mode = #tpu.pipeline_mode<synchronous>, transform_indices = @transform_1, window_bounds = array<i64: 3, 64, 32>}, {pipeline_mode = #tpu.pipeline_mode<synchronous>, transform_indices = @transform_2, window_bounds = array<i64: 1, 32>}, {transform_indices = @transform_3, window_bounds = array<i64: 1, 16, 32>}, {pipeline_mode = #tpu.pipeline_mode<synchronous>, transform_indices = @transform_4, window_bounds = array<i64: 1, 32>}, {pipeline_mode = #tpu.pipeline_mode<synchronous>, transform_indices = @transform_5, window_bounds = array<i64: 1, 32>}, {transform_indices = @transform_6, window_bounds = array<i64: 1, 16, 1>}, {transform_indices = @transform_7, window_bounds = array<i64: 1, 16, 32>}]} {
    %cst = arith.constant 0.000000e+00 : f32
    %0 = vector.broadcast %cst : f32 to vector<16x32xf32>
    %c0 = arith.constant 0 : index
    %c0_0 = arith.constant 0 : index
    %c0_1 = arith.constant 0 : index
    %1 = vector.load %arg1[%c0, %c0_0, %c0_1] : memref<1x18x64xf32, #tpu.memory_space<vmem>>, vector<1x16x64xf32>
    %2 = vector.shape_cast %1 : vector<1x16x64xf32> to vector<16x64xf32>
    %3 = arith.truncf %2 : vector<16x64xf32> to vector<16x64xbf16>
    %c0_2 = arith.constant 0 : index
    %c0_3 = arith.constant 0 : index
    %c0_4 = arith.constant 0 : index
    %4 = vector.load %arg2[%c0_2, %c0_3, %c0_4] : memref<3x64x32xf32, #tpu.memory_space<vmem>>, vector<1x64x32xf32>
    %5 = vector.shape_cast %4 : vector<1x64x32xf32> to vector<64x32xf32>
    %6 = arith.truncf %5 : vector<64x32xf32> to vector<64x32xbf16>
    %cst_5 = arith.constant dense<0.000000e+00> : vector<16x32xf32>
    %7 = tpu.matmul %3, %6, %cst_5 {dimension_numbers = #tpu.dot_dimension_numbers<[1], [0], [0], [1], [0, 0, 1, 1], [], []>} : vector<16x64xbf16>, vector<64x32xbf16>, vector<16x32xf32> -> vector<16x32xf32>
    %8 = arith.addf %0, %7 : vector<16x32xf32>
    %c0_6 = arith.constant 0 : index
    %c1 = arith.constant 1 : index
    %c0_7 = arith.constant 0 : index
    %9 = vector.load %arg1[%c0_6, %c1, %c0_7] : memref<1x18x64xf32, #tpu.memory_space<vmem>>, vector<1x16x64xf32>
    %10 = vector.shape_cast %9 : vector<1x16x64xf32> to vector<16x64xf32>
    %11 = arith.truncf %10 : vector<16x64xf32> to vector<16x64xbf16>
    %c1_8 = arith.constant 1 : index
    %c0_9 = arith.constant 0 : index
    %c0_10 = arith.constant 0 : index
    %12 = vector.load %arg2[%c1_8, %c0_9, %c0_10] : memref<3x64x32xf32, #tpu.memory_space<vmem>>, vector<1x64x32xf32>
    %13 = vector.shape_cast %12 : vector<1x64x32xf32> to vector<64x32xf32>
    %14 = arith.truncf %13 : vector<64x32xf32> to vector<64x32xbf16>
    %cst_11 = arith.constant dense<0.000000e+00> : vector<16x32xf32>
    %15 = tpu.matmul %11, %14, %cst_11 {dimension_numbers = #tpu.dot_dimension_numbers<[1], [0], [0], [1], [0, 0, 1, 1], [], []>} : vector<16x64xbf16>, vector<64x32xbf16>, vector<16x32xf32> -> vector<16x32xf32>
    %16 = arith.addf %8, %15 : vector<16x32xf32>
    %c0_12 = arith.constant 0 : index
    %c2 = arith.constant 2 : index
    %c0_13 = arith.constant 0 : index
    %17 = vector.load %arg1[%c0_12, %c2, %c0_13] : memref<1x18x64xf32, #tpu.memory_space<vmem>>, vector<1x16x64xf32>
    %18 = vector.shape_cast %17 : vector<1x16x64xf32> to vector<16x64xf32>
    %19 = arith.truncf %18 : vector<16x64xf32> to vector<16x64xbf16>
    %c2_14 = arith.constant 2 : index
    %c0_15 = arith.constant 0 : index
    %c0_16 = arith.constant 0 : index
    %20 = vector.load %arg2[%c2_14, %c0_15, %c0_16] : memref<3x64x32xf32, #tpu.memory_space<vmem>>, vector<1x64x32xf32>
    %21 = vector.shape_cast %20 : vector<1x64x32xf32> to vector<64x32xf32>
    %22 = arith.truncf %21 : vector<64x32xf32> to vector<64x32xbf16>
    %cst_17 = arith.constant dense<0.000000e+00> : vector<16x32xf32>
    %23 = tpu.matmul %19, %22, %cst_17 {dimension_numbers = #tpu.dot_dimension_numbers<[1], [0], [0], [1], [0, 0, 1, 1], [], []>} : vector<16x64xbf16>, vector<64x32xbf16>, vector<16x32xf32> -> vector<16x32xf32>
    %24 = arith.addf %16, %23 : vector<16x32xf32>
    %c0_18 = arith.constant 0 : index
    %c0_19 = arith.constant 0 : index
    %c0_20 = arith.constant 0 : index
    %25 = vector.load %arg4[%c0_18, %c0_19, %c0_20] : memref<1x16x32xf32, #tpu.memory_space<vmem>>, vector<1x16x32xf32>
    %26 = vector.shape_cast %25 : vector<1x16x32xf32> to vector<16x32xf32>
    %27 = arith.addf %26, %24 : vector<16x32xf32>
    %c0_21 = arith.constant 0 : index
    %c0_22 = arith.constant 0 : index
    %28 = vector.load %arg3[%c0_21, %c0_22] : memref<1x32xf32, #tpu.memory_space<vmem>>, vector<1x32xf32>
    %29 = vector.broadcast %28 : vector<1x32xf32> to vector<16x32xf32>
    %30 = arith.addf %27, %29 : vector<16x32xf32>
    %cst_23 = arith.constant dense<0.000000e+00> : vector<16xf32>
    %31 = vector.multi_reduction <add>, %30, %cst_23 [1] : vector<16x32xf32> to vector<16xf32>
    %32 = vector.shape_cast %31 : vector<16xf32> to vector<16x1xf32>
    %cst_24 = arith.constant 3.200000e+01 : f32
    %33 = vector.broadcast %cst_24 : f32 to vector<16x1xf32>
    %34 = arith.divf %32, %33 : vector<16x1xf32>
    %35 = vector.broadcast %34 : vector<16x1xf32> to vector<16x32xf32>
    %36 = arith.subf %30, %35 : vector<16x32xf32>
    %37 = arith.mulf %36, %36 : vector<16x32xf32>
    %cst_25 = arith.constant dense<0.000000e+00> : vector<16xf32>
    %38 = vector.multi_reduction <add>, %37, %cst_25 [1] : vector<16x32xf32> to vector<16xf32>
    %39 = vector.shape_cast %38 : vector<16xf32> to vector<16x1xf32>
    %cst_26 = arith.constant 3.200000e+01 : f32
    %40 = vector.broadcast %cst_26 : f32 to vector<16x1xf32>
    %41 = arith.divf %39, %40 : vector<16x1xf32>
    %42 = vector.broadcast %34 : vector<16x1xf32> to vector<16x32xf32>
    %43 = arith.subf %30, %42 : vector<16x32xf32>
    %cst_27 = arith.constant 9.99999974E-6 : f32
    %44 = vector.broadcast %cst_27 : f32 to vector<16x1xf32>
    %45 = arith.addf %41, %44 : vector<16x1xf32>
    %46 = math.rsqrt %45 : vector<16x1xf32>
    %47 = vector.broadcast %46 : vector<16x1xf32> to vector<16x32xf32>
    %48 = arith.mulf %43, %47 : vector<16x32xf32>
    %c0_28 = arith.constant 0 : index
    %c0_29 = arith.constant 0 : index
    %49 = vector.load %arg5[%c0_28, %c0_29] : memref<1x32xf32, #tpu.memory_space<vmem>>, vector<1x32xf32>
    %50 = vector.broadcast %49 : vector<1x32xf32> to vector<16x32xf32>
    %51 = arith.mulf %48, %50 : vector<16x32xf32>
    %c0_30 = arith.constant 0 : index
    %c0_31 = arith.constant 0 : index
    %52 = vector.load %arg6[%c0_30, %c0_31] : memref<1x32xf32, #tpu.memory_space<vmem>>, vector<1x32xf32>
    %53 = vector.broadcast %52 : vector<1x32xf32> to vector<16x32xf32>
    %54 = arith.addf %51, %53 : vector<16x32xf32>
    %c0_32 = arith.constant 0 : index
    %c0_33 = arith.constant 0 : index
    %c0_34 = arith.constant 0 : index
    %55 = vector.load %arg7[%c0_32, %c0_33, %c0_34] : memref<1x16x1xf32, #tpu.memory_space<vmem>>, vector<1x16x1xf32>
    %56 = vector.shape_cast %55 : vector<1x16x1xf32> to vector<16x1xf32>
    %57 = vector.broadcast %56 : vector<16x1xf32> to vector<16x32xf32>
    %58 = arith.mulf %54, %57 : vector<16x32xf32>
    %c0_35 = arith.constant 0 : index
    %c0_36 = arith.constant 0 : index
    %c0_37 = arith.constant 0 : index
    %59 = vector.load %arg8[%c0_35, %c0_36, %c0_37] : memref<1x16x32xf32, #tpu.memory_space<vmem>>, vector<1x16x32xf32>
    %60 = vector.shape_cast %59 : vector<1x16x32xf32> to vector<16x32xf32>
    %61 = vector.shape_cast %58 : vector<16x32xf32> to vector<1x16x32xf32>
    tpu.vector_store %arg8[%c0_35, %c0_36, %c0_37], %61 {strides = array<i32>} : memref<1x16x32xf32, #tpu.memory_space<vmem>>, vector<1x16x32xf32>,
    return
  }
  func.func @transform_0(%arg0: i32) -> (i32, i32, i32) {
    %c0_i32 = arith.constant 0 : i32
    %c0_i32_0 = arith.constant 0 : i32
    %c0_i32_1 = arith.constant 0 : i32
    return %arg0, %c0_i32, %c0_i32_0 : i32, i32, i32
  }
  func.func @transform_1(%arg0: i32) -> (i32, i32, i32) {
    %c0_i32 = arith.constant 0 : i32
    %c0_i32_0 = arith.constant 0 : i32
    %c0_i32_1 = arith.constant 0 : i32
    %c0_i32_2 = arith.constant 0 : i32
    return %c0_i32, %c0_i32_0, %c0_i32_1 : i32, i32, i32
  }
  func.func @transform_2(%arg0: i32) -> (i32, i32) {
    %c0_i32 = arith.constant 0 : i32
    %c0_i32_0 = arith.constant 0 : i32
    %c0_i32_1 = arith.constant 0 : i32
    return %c0_i32, %c0_i32_0 : i32, i32
  }
  func.func @transform_3(%arg0: i32) -> (i32, i32, i32) {
    %c0_i32 = arith.constant 0 : i32
    %c0_i32_0 = arith.constant 0 : i32
    %c0_i32_1 = arith.constant 0 : i32
    return %arg0, %c0_i32, %c0_i32_0 : i32, i32, i32
  }
  func.func @transform_4(%arg0: i32) -> (i32, i32) {
    %c0_i32 = arith.constant 0 : i32
    %c0_i32_0 = arith.constant 0 : i32
    %c0_i32_1 = arith.constant 0 : i32
    return %c0_i32, %c0_i32_0 : i32, i32
  }
  func.func @transform_5(%arg0: i32) -> (i32, i32) {
    %c0_i32 = arith.constant 0 : i32
    %c0_i32_0 = arith.constant 0 : i32
    %c0_i32_1 = arith.constant 0 : i32
    return %c0_i32, %c0_i32_0 : i32, i32
  }
  func.func @transform_6(%arg0: i32) -> (i32, i32, i32) {
    %c0_i32 = arith.constant 0 : i32
    %c0_i32_0 = arith.constant 0 : i32
    %c0_i32_1 = arith.constant 0 : i32
    return %arg0, %c0_i32, %c0_i32_0 : i32, i32, i32
  }
  func.func @transform_7(%arg0: i32) -> (i32, i32, i32) {
    %c0_i32 = arith.constant 0 : i32
    %c0_i32_0 = arith.constant 0 : i32
    %c0_i32_1 = arith.constant 0 : i32
    return %arg0, %c0_i32, %c0_i32_0 : i32, i32, i32
  }
}

module attributes {stable_mosaic.version = 11 : i64} {
  func.func @_matmul_kernel(%arg0: i32, %arg1: i32, %arg2: i32, %arg3: memref<32x32xf32, #tpu.memory_space<vmem>>, %arg4: memref<32x8xf32, #tpu.memory_space<vmem>>, %arg5: memref<1x8xf32, #tpu.memory_space<vmem>>, %arg6: memref<32x1xf32, #tpu.memory_space<vmem>>, %arg7: memref<32x8xf32, #tpu.memory_space<vmem>>, %arg8: memref<32x8xf32, #tpu.memory_space<vmem>>) attributes {dimension_semantics = [#tpu.dimension_semantics<parallel>, #tpu.dimension_semantics<parallel>, #tpu.dimension_semantics<arbitrary>], iteration_bounds = array<i64: 1, 1, 1>, scalar_prefetch = 0 : i64, scratch_operands = 1 : i64, tpu.core_type = #tpu.core_type<tc>, window_params = [{transform_indices = @transform_0, window_bounds = array<i64: 32, 32>}, {transform_indices = @transform_1, window_bounds = array<i64: 32, 8>}, {transform_indices = @transform_2, window_bounds = array<i64: 1, 8>}, {transform_indices = @transform_3, window_bounds = array<i64: 32, 1>}, {transform_indices = @transform_4, window_bounds = array<i64: 32, 8>}]} {
    %c0_i32 = arith.constant 0 : i32
    %0 = arith.cmpi eq, %arg2, %c0_i32 : i32
    %1 = arith.extui %0 : i1 to i32
    %c0_i32_0 = arith.constant 0 : i32
    %2 = arith.cmpi ne, %1, %c0_i32_0 : i32
    scf.if %2 {
      %cst_10 = arith.constant 0.000000e+00 : f32
      %14 = vector.broadcast %cst_10 : f32 to vector<32x8xf32>
      %c0_11 = arith.constant 0 : index
      %c0_12 = arith.constant 0 : index
      %15 = vector.load %arg8[%c0_11, %c0_12] : memref<32x8xf32, #tpu.memory_space<vmem>>, vector<32x8xf32>
      tpu.vector_store %arg8[%c0_11, %c0_12], %14 {strides = array<i32>} : memref<32x8xf32, #tpu.memory_space<vmem>>, vector<32x8xf32>,
    } else {
    }
    %c0 = arith.constant 0 : index
    %c0_1 = arith.constant 0 : index
    %3 = vector.load %arg8[%c0, %c0_1] : memref<32x8xf32, #tpu.memory_space<vmem>>, vector<32x8xf32>
    %c0_2 = arith.constant 0 : index
    %c0_3 = arith.constant 0 : index
    %4 = vector.load %arg3[%c0_2, %c0_3] : memref<32x32xf32, #tpu.memory_space<vmem>>, vector<32x32xf32>
    %5 = arith.truncf %4 : vector<32x32xf32> to vector<32x32xbf16>
    %c0_4 = arith.constant 0 : index
    %c0_5 = arith.constant 0 : index
    %6 = vector.load %arg4[%c0_4, %c0_5] : memref<32x8xf32, #tpu.memory_space<vmem>>, vector<32x8xf32>
    %7 = arith.truncf %6 : vector<32x8xf32> to vector<32x8xbf16>
    %cst = arith.constant dense<0.000000e+00> : vector<32x8xf32>
    %8 = tpu.matmul %5, %7, %cst {dimension_numbers = #tpu.dot_dimension_numbers<[1], [0], [0], [1], [0, 0, 1, 1], [], []>} : vector<32x32xbf16>, vector<32x8xbf16>, vector<32x8xf32> -> vector<32x8xf32>
    %9 = arith.addf %3, %8 : vector<32x8xf32>
    %c0_6 = arith.constant 0 : index
    %c0_7 = arith.constant 0 : index
    %10 = vector.load %arg8[%c0_6, %c0_7] : memref<32x8xf32, #tpu.memory_space<vmem>>, vector<32x8xf32>
    tpu.vector_store %arg8[%c0_6, %c0_7], %9 {strides = array<i32>} : memref<32x8xf32, #tpu.memory_space<vmem>>, vector<32x8xf32>,
    %c0_i32_8 = arith.constant 0 : i32
    %11 = arith.cmpi eq, %arg2, %c0_i32_8 : i32
    %12 = arith.extui %11 : i1 to i32
    %c0_i32_9 = arith.constant 0 : i32
    %13 = arith.cmpi ne, %12, %c0_i32_9 : i32
    scf.if %13 {
      %c0_10 = arith.constant 0 : index
      %c0_11 = arith.constant 0 : index
      %14 = vector.load %arg8[%c0_10, %c0_11] : memref<32x8xf32, #tpu.memory_space<vmem>>, vector<32x8xf32>
      %c0_12 = arith.constant 0 : index
      %c0_13 = arith.constant 0 : index
      %15 = vector.load %arg5[%c0_12, %c0_13] : memref<1x8xf32, #tpu.memory_space<vmem>>, vector<1x8xf32>
      %16 = vector.broadcast %15 : vector<1x8xf32> to vector<32x8xf32>
      %17 = arith.addf %14, %16 : vector<32x8xf32>
      %cst_14 = arith.constant 1.000000e+00 : f32
      %18 = vector.broadcast %cst_14 : f32 to vector<32x8xf32>
      %19 = arith.mulf %17, %18 : vector<32x8xf32>
      %c0_15 = arith.constant 0 : index
      %c0_16 = arith.constant 0 : index
      %20 = vector.load %arg6[%c0_15, %c0_16] : memref<32x1xf32, #tpu.memory_space<vmem>>, vector<32x1xf32>
      %21 = vector.broadcast %20 : vector<32x1xf32> to vector<32x8xf32>
      %22 = arith.mulf %19, %21 : vector<32x8xf32>
      %c0_17 = arith.constant 0 : index
      %c0_18 = arith.constant 0 : index
      %23 = vector.load %arg7[%c0_17, %c0_18] : memref<32x8xf32, #tpu.memory_space<vmem>>, vector<32x8xf32>
      tpu.vector_store %arg7[%c0_17, %c0_18], %22 {strides = array<i32>} : memref<32x8xf32, #tpu.memory_space<vmem>>, vector<32x8xf32>,
    } else {
    }
    return
  }
  func.func @transform_0(%arg0: i32, %arg1: i32, %arg2: i32) -> (i32, i32) {
    %c0_i32 = arith.constant 0 : i32
    return %arg0, %arg2 : i32, i32
  }
  func.func @transform_1(%arg0: i32, %arg1: i32, %arg2: i32) -> (i32, i32) {
    %c0_i32 = arith.constant 0 : i32
    return %arg2, %arg1 : i32, i32
  }
  func.func @transform_2(%arg0: i32, %arg1: i32, %arg2: i32) -> (i32, i32) {
    %c0_i32 = arith.constant 0 : i32
    %c0_i32_0 = arith.constant 0 : i32
    return %c0_i32, %arg1 : i32, i32
  }
  func.func @transform_3(%arg0: i32, %arg1: i32, %arg2: i32) -> (i32, i32) {
    %c0_i32 = arith.constant 0 : i32
    %c0_i32_0 = arith.constant 0 : i32
    return %arg0, %c0_i32 : i32, i32
  }
  func.func @transform_4(%arg0: i32, %arg1: i32, %arg2: i32) -> (i32, i32) {
    %c0_i32 = arith.constant 0 : i32
    return %arg0, %arg1 : i32, i32
  }
}

</mosaic_0001>

<llo_original>
// kernel: _lambda_.13
$region0: #{_lambda_.13}
  #allocation0 [shape = 'u32[]', space=smem, size = 0x4, offset = 0x4, fixed_abs, tag = 'smem constant byte address 0x4 - core index']
  #allocation1 [shape = 'u32[144,128]{1,0:T(1,128)}', space=vmem, size = 0x12000, scoped, tag = 'internal scratch']
  #allocation2 [shape = 'f32[32,96]{1,0:T(8,128)}', space=vmem, size = 0x4000, scoped, tag = 'scratch operand']
  %s0 = inlined_call_operand.vmem [shape: f32[32,32], index: 0, kind: input, shape index: {}]
  %s1 = inlined_call_operand.vmem [shape: f32[32,96], index: 1, kind: input, shape index: {}]
  %s2 = inlined_call_operand.vmem [shape: f32[1,96], index: 2, kind: input, shape index: {}]
  %s3 = inlined_call_operand.vmem [shape: f32[32,1], index: 3, kind: input, shape index: {}]
  %s4 = inlined_call_operand.vmem [shape: f32[32,96], index: 4, kind: output, shape index: {}]
  %s5 = sld [smem:[#allocation0]]
  $region34: #{_lambda_.13} parent=0
    _
  %s7 = ssub.s32 1, %s5
  %s8 = scalar_select 0, %s7, %s5
  // Predicated region
  $region2: #{_lambda_.13} parent=0 // pred_check
    _
  $region3: #{_lambda_.13} parent=0 // pred_check_branch
    %10 = sbr.rel (0) target = $region5
  $region4: #{_lambda_.13} parent=0 // pred_region
    _
  $region5: #{_lambda_.13} parent=0 // pred_fallthru
    _
  // Predicated region
  $region6: #{_lambda_.13} parent=0 // pred_check
    _
  $region7: #{_lambda_.13} parent=0 // pred_check_branch
    %12 = sbr.rel (0) target = $region9
  $region8: #{_lambda_.13} parent=0 // pred_region
    _
  $region9: #{_lambda_.13} parent=0 // pred_fallthru
    _
  // Predicated region
  $region10: #{_lambda_.13} parent=0 // pred_check
    _
  $region11: #{_lambda_.13} parent=0 // pred_check_branch
    %14 = sbr.rel (0) target = $region13
  $region12: #{_lambda_.13} parent=0 // pred_region
    _
  $region13: #{_lambda_.13} parent=0 // pred_fallthru
    _
  // Predicated region
  $region14: #{_lambda_.13} parent=0 // pred_check
    _
  $region15: #{_lambda_.13} parent=0 // pred_check_branch
    %16 = sbr.rel (0) target = $region17
  $region16: #{_lambda_.13} parent=0 // pred_region
    _
  $region17: #{_lambda_.13} parent=0 // pred_fallthru
    _
  %p18 = scmp.eq.s32.totalorder 0, 0
  // Predicated region
  $region18: #{_lambda_.13} parent=0 // pred_check
    %p19 = pneg %p18
  $region19: #{_lambda_.13} parent=0 // pred_check_branch
    %21 = sbr.rel (%p19) target = $region21
  $region20: #{_lambda_.13} parent=0 // pred_region
    %vm22 = vcmask 785408
    %23 = vst.msk [vmem:[#allocation2] sm:$0xff] %vm22, 0.0
    %24 = vst.msk [vmem:[#allocation2 + $0x8] sm:$0xff] %vm22, 0.0
    %25 = vst.msk [vmem:[#allocation2 + $0x10] sm:$0xff] %vm22, 0.0
    %26 = vst.msk [vmem:[#allocation2 + $0x18] sm:$0xff] %vm22, 0.0
  $region21: #{_lambda_.13} parent=0 // pred_fallthru
    _
  %v27 = vld [vmem:[#allocation2] sm:$0xff]
  %v28 = vld [vmem:[#allocation2 + $0x8] sm:$0xff]
  %v29 = vld [vmem:[#allocation2 + $0x10] sm:$0xff]
  %v30 = vld [vmem:[#allocation2 + $0x18] sm:$0xff]
  %v31 = vld [vmem:[%s0] sm:$0xff]
  %v32 = vld [vmem:[%s0 + $0x8] sm:$0xff]
  %v33 = vld [vmem:[%s0 + $0x10] sm:$0xff]
  %v34 = vld [vmem:[%s0 + $0x18] sm:$0xff]
  %v35 = vpack.c.bf16 %v32, %v31
  %v36 = vpack.c.bf16 %v34, %v33
  %v37 = vld [vmem:[%s1] sm:$0xff]
  %v38 = vld [vmem:[%s1 + $0x8] sm:$0xff]
  %v39 = vld [vmem:[%s1 + $0x10] sm:$0xff]
  %v40 = vld [vmem:[%s1 + $0x18] sm:$0xff]
  %v41 = vpack.c.bf16 %v38, %v37
  %v42 = vpack.c.bf16 %v40, %v39
  %vm43 = vcmask 261120
  %v45 = vsel %vm43, %v35, 0
  %v48 = vsel %vm43, %v36, 0
  %50 = vmatprep.subr.bf16.mxu0 0
  %51 = vmatpush1.bf16.msra.mxu0 0
  %52 = vmatprep.subr.bf16.mxu0 0
  %53 = vmatpush1.bf16.msra.mxu0 0
  %54 = vmatprep.subr.bf16.mxu0 0
  %55 = vmatpush1.bf16.msra.mxu0 0
  %56 = vmatprep.subr.bf16.mxu0 0
  %57 = vmatpush1.bf16.msra.mxu0 0
  %58 = vmatprep.subr.bf16.mxu0 0
  %59 = vmatpush1.bf16.msra.mxu0 0
  %60 = vmatprep.subr.bf16.mxu0 0
  %61 = vmatpush1.bf16.msra.mxu0 0
  %62 = vmatprep.subr.bf16.mxu0 0
  %63 = vmatpush1.bf16.msra.mxu0 %v42
  %64 = vmatprep.subr.bf16.mxu0 0
  %65 = vmatpush1.bf16.msra.mxu0 %v41
  %66 = vmatprep.subr.bf16.mxu0 0
  %67 = vmatpush2.bf16.msra.mxu0 0
  %68 = vmatprep.subr.bf16.mxu0 0
  %69 = vmatpush2.bf16.msra.mxu0 0
  %70 = vmatprep.subr.bf16.mxu0 0
  %71 = vmatpush2.bf16.msra.mxu0 0
  %72 = vmatprep.subr.bf16.mxu0 0
  %73 = vmatpush2.bf16.msra.mxu0 0
  %74 = vmatprep.subr.bf16.mxu0 0
  %75 = vmatpush2.bf16.msra.mxu0 0
  %76 = vmatprep.subr.bf16.mxu0 0
  %77 = vmatpush2.bf16.msra.mxu0 0
  %78 = vmatprep.subr.bf16.mxu0 0
  %79 = vmatpush2.bf16.msra.mxu0 0
  %80 = vmatprep.subr.bf16.mxu0 0
  %81 = vmatpush2.bf16.msra.mxu0 0
  %82 = vmatprep.mubr.bf16.mxu0 0
  %83 = vmatmul.mubr.bf16.gmra.mxu0 %v45
  %v84 = vpop.f32.mrf.mxu0
  %v85 = vadd.f32 0.0, %v84
  %v86 = vpop.f32.mrf.mxu0
  %v87 = vpop.f32.mrf.mxu0
  %v88 = vadd.f32 0.0, %v87
  %v89 = vpop.f32.mrf.mxu0
  %90 = vmatprep.mubr.bf16.mxu0 0
  %91 = vmatmul.mubr.bf16.gmra.mxu0 %v48
  %v92 = vpop.f32.mrf.mxu0
  %v93 = vadd.f32 0.0, %v92
  %v94 = vpop.f32.mrf.mxu0
  %v95 = vpop.f32.mrf.mxu0
  %v96 = vadd.f32 0.0, %v95
  %v97 = vpop.f32.mrf.mxu0
  %98 = vdwg.mxu0
  %v99 = vadd.f32 %v27, %v85
  %v100 = vadd.f32 %v28, %v88
  %v101 = vadd.f32 %v29, %v93
  %v102 = vadd.f32 %v30, %v96
  %vm103 = vcmask 785408
  %104 = vst.msk [vmem:[#allocation2] sm:$0xff] %vm103, %v99
  %105 = vst.msk [vmem:[#allocation2 + $0x8] sm:$0xff] %vm103, %v100
  %106 = vst.msk [vmem:[#allocation2 + $0x10] sm:$0xff] %vm103, %v101
  %107 = vst.msk [vmem:[#allocation2 + $0x18] sm:$0xff] %vm103, %v102
  // Predicated region
  $region22: #{_lambda_.13} parent=0 // pred_check
    %p108 = pneg %p18
  $region23: #{_lambda_.13} parent=0 // pred_check_branch
    %110 = sbr.rel (%p108) target = $region25
  $region24: #{_lambda_.13} parent=0 // pred_region
    %v111 = vld [vmem:[#allocation2] sm:$0xff]
    %v112 = vld [vmem:[#allocation2 + $0x8] sm:$0xff]
    %v113 = vld [vmem:[#allocation2 + $0x10] sm:$0xff]
    %v114 = vld [vmem:[#allocation2 + $0x18] sm:$0xff]
    %v115 = vld [vmem:[%s2] sm:$0x1]
    %v117 = vlaneseq
    %v118 = vshrl.u32 %v117, 7
    %v119 = vsub.s32 0, %v118
    %v120 = vrot.slane %v115, %v119
    %v122 = vadd.f32 %v111, %v120
    %v123 = vadd.f32 %v112, %v120
    %v124 = vadd.f32 %v113, %v120
    %v125 = vadd.f32 %v114, %v120
    %v126 = vld [vmem:[%s3] sm:$0xff]
    %v127 = vld [vmem:[%s3 + $0x8] sm:$0xff]
    %v128 = vld [vmem:[%s3 + $0x10] sm:$0xff]
    %v129 = vld [vmem:[%s3 + $0x18] sm:$0xff]
    %131 = vset.pattern.permute.xlu0 0
    %132 = vperm.xlu0 %131, %v126
    %v133 = vpop.permute.xlu0 %132
    %136 = vset.pattern.permute.xlu0 0
    %137 = vperm.xlu0 %136, %v127
    %v138 = vpop.permute.xlu0 %137
    %141 = vset.pattern.permute.xlu0 0
    %142 = vperm.xlu0 %141, %v128
    %v143 = vpop.permute.xlu0 %142
    %146 = vset.pattern.permute.xlu0 0
    %147 = vperm.xlu0 %146, %v129
    %v148 = vpop.permute.xlu0 %147
    %v150 = vmul.f32 %v122, %v133
    %v151 = vmul.f32 %v123, %v138
    %v152 = vmul.f32 %v124, %v143
    %v153 = vmul.f32 %v125, %v148
    %154 = vst.msk [vmem:[%s4] sm:$0xff] %vm103, %v150
    %155 = vst.msk [vmem:[%s4 + $0x8] sm:$0xff] %vm103, %v151
    %156 = vst.msk [vmem:[%s4 + $0x10] sm:$0xff] %vm103, %v152
    %157 = vst.msk [vmem:[%s4 + $0x18] sm:$0xff] %vm103, %v153
  $region25: #{_lambda_.13} parent=0 // pred_fallthru
    _
  // Predicated region
  $region26: #{_lambda_.13} parent=0 // pred_check
    _
  $region27: #{_lambda_.13} parent=0 // pred_check_branch
    %159 = sbr.rel (0) target = $region29
  $region28: #{_lambda_.13} parent=0 // pred_region
    _
  $region29: #{_lambda_.13} parent=0 // pred_fallthru
    _
  // Predicated region
  $region30: #{_lambda_.13} parent=0 // pred_check
    _
  $region31: #{_lambda_.13} parent=0 // pred_check_branch
    %161 = sbr.rel (0) target = $region33
  $region32: #{_lambda_.13} parent=0 // pred_region
    _
  $region33: #{_lambda_.13} parent=0 // pred_fallthru
    _

// kernel: _lambda_.12
$region0: #{_lambda_.12}
  #allocation0 [shape = 'u32[]', space=smem, size = 0x4, offset = 0x4, fixed_abs, tag = 'smem constant byte address 0x4 - core index']
  #allocation1 [shape = 'u32[144,128]{1,0:T(1,128)}', space=vmem, size = 0x12000, scoped, tag = 'internal scratch']
  #allocation2 [shape = 'f32[32,32]{1,0:T(8,128)}', space=vmem, size = 0x4000, scoped, tag = 'scratch operand']
  %s0 = inlined_call_operand.vmem [shape: f32[32,768], index: 0, kind: input, shape index: {}]
  %s1 = inlined_call_operand.vmem [shape: f32[768,32], index: 1, kind: input, shape index: {}]
  %s2 = inlined_call_operand.vmem [shape: f32[1,32], index: 2, kind: input, shape index: {}]
  %s3 = inlined_call_operand.vmem [shape: f32[32,1], index: 3, kind: input, shape index: {}]
  %s4 = inlined_call_operand.vmem [shape: f32[32,32], index: 4, kind: output, shape index: {}]
  %s5 = sld [smem:[#allocation0]]
  $region80: #{_lambda_.12} parent=0
    _
  %s7 = ssub.s32 1, %s5
  %s8 = scalar_select 0, %s7, %s5
  $region1: #{_lambda_.12} parent=0
    #allocation3 [shape = 'u8[65536]{0}', space=vmem, size = 0x10000, scoped, tag = 'input window, operand 0']
    loop: start=0, step=1, limit=5
    $region2: #{_lambda_.12} parent=1 // loop_pre_header
      _
    $region3: #{_lambda_.12} parent=1 // loop_header
      %s10 = sphi 0, %s14
      %p11 = scmp.ge.s32.totalorder %s10, 5
      %s17 = sphi 0, %s36
      %s18 = sphi 0, %s32
      %s19 = sphi 0, %s28
      %s20 = sphi 0, %s17
      %s21 = sphi 0, %s18
      %s22 = sphi 0, %s19
      %s23 = sphi 0, %s20
      %s24 = sphi 0, %s21
      %s25 = sphi 0, %s22
      %s41 = sphi 0, %s43
      %s44 = sphi 0, %s41
      %s45 = sphi 0, %s44
      %s61 = sphi 0, %s45
      %s69 = sphi 0, %s71
      %s72 = sphi 0, %s69
      %s73 = sphi 0, %s72
      %s89 = sphi 0, %s73
      %s95 = sphi 0, %s97
      %s98 = sphi 0, %s95
      %s99 = sphi 0, %s98
      %s115 = sphi 0, %s99
      %s121 = sphi 0, %s123
      %s124 = sphi 0, %s121
      %s125 = sphi 0, %s124
      %s141 = sphi 0, %s125
      %s149 = sphi 0, %s151
      %s152 = sphi 0, %s149
      %s153 = sphi 0, %s152
      %s169 = sphi 0, %s153
    $region4: #{_lambda_.12} parent=1 // loop_header_branch
      %13 = sbr.rel (%p11) target = $region8
    $region5: #{_lambda_.12} parent=1 // loop_body
      %s15 = ssub.s32 %s10, 1
      %s16 = ssub.s32 %s10, 2
      %s26 = sadd.s32 1, %s19
      %p27 = scmp.ge.s32.totalorder %s26, 3
      %s28 = scalar_select %p27, 0, %s26
      %s29 = sadd.s32 1, %s18
      %s30 = scalar_select %p27, %s29, %s18
      %p31 = scmp.ge.s32.totalorder %s30, 1
      %s32 = scalar_select %p31, 0, %s30
      %s33 = sadd.s32 1, %s17
      %s34 = scalar_select %p31, %s33, %s17
      %p35 = scmp.ge.s32.totalorder %s34, 1
      %s36 = scalar_select %p35, 0, %s34
      %s37 = ssub.s32 %s17, %s36
      %s38 = ssub.s32 %s19, %s28
      %s39 = sor.u32 %s37, %s38
      %p40 = scmp.eq.s32.totalorder %s39, 0
      %s42 = sadd.s32 %s41, 1
      %s43 = scalar_select %p40, %s41, %s42
      %p46 = pneg %p40
      %p47 = scmp.eq.s32.totalorder %s10, 2
      %p48 = por %p46, %p47
      %p49 = scmp.ne.s32.totalorder %s41, %s44
      %p50 = scmp.eq.s32.totalorder %s10, 0
      %p51 = por %p49, %p50
      %p52 = scmp.ne.s32.totalorder %s41, %s44
      %p53 = scmp.eq.s32.totalorder %s15, 2
      %p54 = por %p52, %p53
      %p55 = scmp.ne.s32.totalorder %s44, %s45
      %p56 = scmp.eq.s32.totalorder %s15, 0
      %p57 = por %p55, %p56
      %p58 = scmp.ne.s32.totalorder %s44, %s45
      %p59 = scmp.eq.s32.totalorder %s16, 2
      %p60 = por %p58, %p59
      %p62 = scmp.ne.s32.totalorder %s45, %s61
      %p63 = scmp.eq.s32.totalorder %s16, 0
      %p64 = por %p62, %p63
      %s65 = ssub.s32 %s19, %s28
      %s66 = ssub.s32 %s18, %s32
      %s67 = sor.u32 %s65, %s66
      %p68 = scmp.eq.s32.totalorder %s67, 0
      %s70 = sadd.s32 %s69, 1
      %s71 = scalar_select %p68, %s69, %s70
      %p74 = pneg %p68
      %p75 = scmp.eq.s32.totalorder %s10, 2
      %p76 = por %p74, %p75
      %p77 = scmp.ne.s32.totalorder %s69, %s72
      %p78 = scmp.eq.s32.totalorder %s10, 0
      %p79 = por %p77, %p78
      %p80 = scmp.ne.s32.totalorder %s69, %s72
      %p81 = scmp.eq.s32.totalorder %s15, 2
      %p82 = por %p80, %p81
      %p83 = scmp.ne.s32.totalorder %s72, %s73
      %p84 = scmp.eq.s32.totalorder %s15, 0
      %p85 = por %p83, %p84
      %p86 = scmp.ne.s32.totalorder %s72, %s73
      %p87 = scmp.eq.s32.totalorder %s16, 2
      %p88 = por %p86, %p87
      %p90 = scmp.ne.s32.totalorder %s73, %s89
      %p91 = scmp.eq.s32.totalorder %s16, 0
      %p92 = por %p90, %p91
      %s93 = ssub.s32 %s18, %s32
      %p94 = scmp.eq.s32.totalorder %s93, 0
      %s96 = sadd.s32 %s95, 1
      %s97 = scalar_select %p94, %s95, %s96
      %p100 = pneg %p94
      %p101 = scmp.eq.s32.totalorder %s10, 2
      %p102 = por %p100, %p101
      %p103 = scmp.ne.s32.totalorder %s95, %s98
      %p104 = scmp.eq.s32.totalorder %s10, 0
      %p105 = por %p103, %p104
      %p106 = scmp.ne.s32.totalorder %s95, %s98
      %p107 = scmp.eq.s32.totalorder %s15, 2
      %p108 = por %p106, %p107
      %p109 = scmp.ne.s32.totalorder %s98, %s99
      %p110 = scmp.eq.s32.totalorder %s15, 0
      %p111 = por %p109, %p110
      %p112 = scmp.ne.s32.totalorder %s98, %s99
      %p113 = scmp.eq.s32.totalorder %s16, 2
      %p114 = por %p112, %p113
      %p116 = scmp.ne.s32.totalorder %s99, %s115
      %p117 = scmp.eq.s32.totalorder %s16, 0
      %p118 = por %p116, %p117
      %s119 = ssub.s32 %s17, %s36
      %p120 = scmp.eq.s32.totalorder %s119, 0
      %s122 = sadd.s32 %s121, 1
      %s123 = scalar_select %p120, %s121, %s122
      %p126 = pneg %p120
      %p127 = scmp.eq.s32.totalorder %s10, 2
      %p128 = por %p126, %p127
      %p129 = scmp.ne.s32.totalorder %s121, %s124
      %p130 = scmp.eq.s32.totalorder %s10, 0
      %p131 = por %p129, %p130
      %p132 = scmp.ne.s32.totalorder %s121, %s124
      %p133 = scmp.eq.s32.totalorder %s15, 2
      %p134 = por %p132, %p133
      %p135 = scmp.ne.s32.totalorder %s124, %s125
      %p136 = scmp.eq.s32.totalorder %s15, 0
      %p137 = por %p135, %p136
      %p138 = scmp.ne.s32.totalorder %s124, %s125
      %p139 = scmp.eq.s32.totalorder %s16, 2
      %p140 = por %p138, %p139
      %p142 = scmp.ne.s32.totalorder %s125, %s141
      %p143 = scmp.eq.s32.totalorder %s16, 0
      %p144 = por %p142, %p143
      %s145 = ssub.s32 %s17, %s36
      %s146 = ssub.s32 %s18, %s32
      %s147 = sor.u32 %s145, %s146
      %p148 = scmp.eq.s32.totalorder %s147, 0
      %s150 = sadd.s32 %s149, 1
      %s151 = scalar_select %p148, %s149, %s150
      %p154 = pneg %p148
      %p155 = scmp.eq.s32.totalorder %s10, 2
      %p156 = por %p154, %p155
      %p157 = scmp.ne.s32.totalorder %s149, %s152
      %p158 = scmp.eq.s32.totalorder %s10, 0
      %p159 = por %p157, %p158
      %p160 = scmp.ne.s32.totalorder %s149, %s152
      %p161 = scmp.eq.s32.totalorder %s15, 2
      %p162 = por %p160, %p161
      %p163 = scmp.ne.s32.totalorder %s152, %s153
      %p164 = scmp.eq.s32.totalorder %s15, 0
      %p165 = por %p163, %p164
      %p166 = scmp.ne.s32.totalorder %s152, %s153
      %p167 = scmp.eq.s32.totalorder %s16, 2
      %p168 = por %p166, %p167
      %p170 = scmp.ne.s32.totalorder %s153, %s169
      %p171 = scmp.eq.s32.totalorder %s16, 0
      %p172 = por %p170, %p171
      %p173 = scmp.le.s32.totalorder 1, %s10
      %p174 = scmp.lt.s32.totalorder %s10, 4
      %p175 = pnand %p173, %p174
      %p176 = pneg %p175
      // Predicated region
      $region9: #{_lambda_.12} parent=5 // pred_check
        _
      $region10: #{_lambda_.12} parent=5 // pred_check_branch
        %178 = sbr.rel (%p175) target = $region12
      $region11: #{_lambda_.12} parent=5 // pred_region
        %s179 = ssub.s32 %s10, 1
        // Predicated region
        $region13: #{_lambda_.12} parent=11 // pred_check
          %p180 = pneg %p111
        $region14: #{_lambda_.12} parent=11 // pred_check_branch
          %182 = sbr.rel (%p180) target = $region16
        $region15: #{_lambda_.12} parent=11 // pred_region
          %p183 = scmp.lt.s32.totalorder %s21, 0
          %s184 = scalar_select %p183, %s21, 0
          %s185 = scalar_lea.vmem %s2, %s184
        $region16: #{_lambda_.12} parent=11 // pred_fallthru
          _
        // Predicated region
        $region17: #{_lambda_.12} parent=11 // pred_check
          %p186 = pneg %p137
        $region18: #{_lambda_.12} parent=11 // pred_check_branch
          %188 = sbr.rel (%p186) target = $region20
        $region19: #{_lambda_.12} parent=11 // pred_region
          %s189 = smul.u32 4, %s20
          %p190 = scmp.lt.s32.totalorder %s189, 3
          %s191 = scalar_select %p190, %s189, 3
          %s192 = smul.addr %s191, 8
          %s193 = scalar_lea.vmem %s3, %s192
          %s194 = smul.u32 4, %s20
        $region20: #{_lambda_.12} parent=11 // pred_fallthru
          _
      $region12: #{_lambda_.12} parent=5 // pred_fallthru
        _
      %p195 = scmp.lt.s32.totalorder %s10, 3
      // Predicated region
      $region21: #{_lambda_.12} parent=5 // pred_check
        %p196 = pneg %p195
      $region22: #{_lambda_.12} parent=5 // pred_check_branch
        %198 = sbr.rel (%p196) target = $region24
      $region23: #{_lambda_.12} parent=5 // pred_region
        // Predicated region
        $region25: #{_lambda_.12} parent=23 // pred_check
          %p199 = pneg %p51
        $region26: #{_lambda_.12} parent=23 // pred_check_branch
          %201 = sbr.rel (%p199) target = $region28
        $region27: #{_lambda_.12} parent=23 // pred_region
          %s202 = sand.u32 %s41, 1
          %s203 = sand.u32 %s41, 1
          %s204 = smul.addr %s203, 64
          %s205 = scalar_lea.vmem [#allocation3], %s204
          %s206 = smul.u32 4, %s17
          %s207 = smul.u32 2, %s19
          %s208 = smul.addr %s206, 6
          %s209 = sadd.s32 %s207, %s208
          %s210 = smul.addr %s209, 8
          %s211 = scalar_lea.vmem %s0, %s210
          // Predicated region
          $region29: #{_lambda_.12} parent=27 // pred_check
            _
          $region30: #{_lambda_.12} parent=27 // pred_check_branch
            %213 = sbr.rel (0) target = $region32
          $region31: #{_lambda_.12} parent=27 // pred_region
            // Predicated region
            $region33: #{_lambda_.12} parent=31 // pred_check
              _
            $region34: #{_lambda_.12} parent=31 // pred_check_branch
              %215 = sbr.rel (0) target = $region36
            $region35: #{_lambda_.12} parent=31 // pred_region
              loop: start=0, step=1, limit=1
              $region37: #{_lambda_.12} parent=35 // loop_pre_header
                _
              $region38: #{_lambda_.12} parent=35 // loop_header
                %s217 = sphi 0, %s221
                %p218 = scmp.ge.s32.totalorder %s217, 1
                %s222 = sphi %s211, %s211
                %s223 = sphi %s205, %s205
              $region39: #{_lambda_.12} parent=35 // loop_header_branch
                %220 = sbr.rel (%p218) target = $region43
              $region40: #{_lambda_.12} parent=35 // loop_body
                %v224 = vld [vmem:[%s222] sm:$0xff]
                %225 = vst [vmem:[%s223] sm:$0xff] %v224
                %v226 = vld [vmem:[%s222 + $0x8] sm:$0xff]
                %227 = vst [vmem:[%s223 + $0x8] sm:$0xff] %v226
                %v228 = vld [vmem:[%s222 + $0x30] sm:$0xff]
                %229 = vst [vmem:[%s223 + $0x10] sm:$0xff] %v228
                %v230 = vld [vmem:[%s222 + $0x38] sm:$0xff]
                %231 = vst [vmem:[%s223 + $0x18] sm:$0xff] %v230
                %v232 = vld [vmem:[%s222 + $0x60] sm:$0xff]
                %233 = vst [vmem:[%s223 + $0x20] sm:$0xff] %v232
                %v234 = vld [vmem:[%s222 + $0x68] sm:$0xff]
                %235 = vst [vmem:[%s223 + $0x28] sm:$0xff] %v234
                %v236 = vld [vmem:[%s222 + $0x90] sm:$0xff]
                %237 = vst [vmem:[%s223 + $0x30] sm:$0xff] %v236
                %v238 = vld [vmem:[%s222 + $0x98] sm:$0xff]
                %239 = vst [vmem:[%s223 + $0x38] sm:$0xff] %v238
              $region41: #{_lambda_.12} parent=35 // loop_footer
                %s221 = sadd.s32 1, %s217
              $region42: #{_lambda_.12} parent=35 // loop_footer_branch
                %216 = sbr.rel target = $region38
              $region43: #{_lambda_.12} parent=35 // loop_exit
                _
            $region36: #{_lambda_.12} parent=31 // pred_fallthru
              _
            // Predicated region
            $region44: #{_lambda_.12} parent=31 // pred_check
              _
            $region45: #{_lambda_.12} parent=31 // pred_check_branch
              %241 = sbr.rel target = $region47
            $region46: #{_lambda_.12} parent=31 // pred_region
              _
            $region47: #{_lambda_.12} parent=31 // pred_fallthru
              _
          $region32: #{_lambda_.12} parent=27 // pred_fallthru
            _
          %242 = vnop
        $region28: #{_lambda_.12} parent=23 // pred_fallthru
          _
        // Predicated region
        $region48: #{_lambda_.12} parent=23 // pred_check
          %p243 = pneg %p79
        $region49: #{_lambda_.12} parent=23 // pred_check_branch
          %245 = sbr.rel (%p243) target = $region51
        $region50: #{_lambda_.12} parent=23 // pred_region
          %s246 = smul.u32 32, %s19
          %p247 = scmp.lt.s32.totalorder %s246, 95
          %s248 = scalar_select %p247, %s246, 95
          %p249 = scmp.lt.s32.totalorder %s18, 0
          %s250 = scalar_select %p249, %s18, 0
          %s251 = sadd.s32 %s250, %s248
          %s252 = smul.addr %s251, 8
          %s253 = scalar_lea.vmem %s1, %s252
          %s254 = smul.u32 32, %s19
        $region51: #{_lambda_.12} parent=23 // pred_fallthru
          _
      $region24: #{_lambda_.12} parent=5 // pred_fallthru
        _
      %p255 = scmp.le.s32.totalorder 1, %s10
      %p256 = scmp.lt.s32.totalorder %s10, 4
      %p257 = pnand %p255, %p256
      %p258 = pneg %p257
      // Predicated region
      $region52: #{_lambda_.12} parent=5 // pred_check
        _
      $region53: #{_lambda_.12} parent=5 // pred_check_branch
        %260 = sbr.rel (%p257) target = $region55
      $region54: #{_lambda_.12} parent=5 // pred_region
        %s261 = ssub.s32 %s10, 1
        %s262 = sand.u32 %s44, 1
        %s263 = sand.u32 %s44, 1
        %s264 = smul.addr %s263, 64
        %s265 = scalar_lea.vmem [#allocation3], %s264
        // Predicated region
        $region56: #{_lambda_.12} parent=54 // pred_check
          %p266 = pneg %p57
        $region57: #{_lambda_.12} parent=54 // pred_check_branch
          %268 = sbr.rel (%p266) target = $region59
        $region58: #{_lambda_.12} parent=54 // pred_region
          _
        $region59: #{_lambda_.12} parent=54 // pred_fallthru
          _
        %s269 = sand.u32 %s44, 1
        %s270 = sand.u32 %s44, 1
        %s271 = smul.addr %s270, 64
        %s272 = scalar_lea.vmem [#allocation3], %s271
        %p273 = pneg %p57
        %p274 = pneg %p54
        %s275 = smul.u32 32, %s22
        %p276 = scmp.lt.s32.totalorder %s275, 95
        %s277 = scalar_select %p276, %s275, 95
        %p278 = scmp.lt.s32.totalorder %s21, 0
        %s279 = scalar_select %p278, %s21, 0
        %s280 = sadd.s32 %s279, %s277
        %s281 = smul.addr %s280, 8
        %s282 = scalar_lea.vmem %s1, %s281
        %p283 = pneg %p85
        %p284 = pneg %p82
        %p285 = scmp.lt.s32.totalorder %s21, 0
        %s286 = scalar_select %p285, %s21, 0
        %s287 = scalar_lea.vmem %s2, %s286
        %p288 = pneg %p111
        %p289 = pneg %p108
        %s290 = smul.u32 4, %s20
        %p291 = scmp.lt.s32.totalorder %s290, 3
        %s292 = scalar_select %p291, %s290, 3
        %s293 = smul.addr %s292, 8
        %s294 = scalar_lea.vmem %s3, %s293
        %p295 = pneg %p137
        %p296 = pneg %p134
        %p297 = pneg %p165
        %p298 = pneg %p162
        %s299 = smul.u32 4, %s20
        %p300 = scmp.lt.s32.totalorder %s299, 3
        %s301 = scalar_select %p300, %s299, 3
        %p302 = scmp.lt.s32.totalorder %s21, 0
        %s303 = scalar_select %p302, %s21, 0
        %s304 = sadd.s32 %s303, %s301
        %s305 = smul.addr %s304, 8
        %s306 = scalar_lea.vmem %s4, %s305
        %s307 = smul.u32 4, %s20
        %s308 = smul.u32 2, %s22
        %s309 = smul.u32 32, %s22
        %p310 = scmp.lt.s32.totalorder %s309, 95
        %s311 = scalar_select %p310, %s309, 95
        %p312 = scmp.lt.s32.totalorder %s21, 0
        %s313 = scalar_select %p312, %s21, 0
        %s314 = sadd.s32 %s313, %s311
        %s315 = smul.addr %s314, 8
        %s316 = scalar_lea.vmem %s1, %s315
        %s317 = smul.u32 32, %s22
        %p318 = scmp.lt.s32.totalorder %s21, 0
        %s319 = scalar_select %p318, %s21, 0
        %s320 = scalar_lea.vmem %s2, %s319
        %s321 = smul.u32 4, %s20
        %p322 = scmp.lt.s32.totalorder %s321, 3
        %s323 = scalar_select %p322, %s321, 3
        %s324 = smul.addr %s323, 8
        %s325 = scalar_lea.vmem %s3, %s324
        %s326 = smul.u32 4, %s20
        %s327 = smul.u32 4, %s20
        %p328 = scmp.lt.s32.totalorder %s327, 3
        %s329 = scalar_select %p328, %s327, 3
        %p330 = scmp.lt.s32.totalorder %s21, 0
        %s331 = scalar_select %p330, %s21, 0
        %s332 = sadd.s32 %s331, %s329
        %s333 = smul.addr %s332, 8
        %s334 = scalar_lea.vmem %s4, %s333
        %s335 = smul.u32 4, %s20
        %p337 = scmp.eq.s32.totalorder %s22, 0
        // Predicated region
        $region60: #{_lambda_.12} parent=54 // pred_check
          %p338 = pneg %p337
        $region61: #{_lambda_.12} parent=54 // pred_check_branch
          %340 = sbr.rel (%p338) target = $region63
        $region62: #{_lambda_.12} parent=54 // pred_region
          %vm341 = vcmask 261120
          %342 = vst.msk [vmem:[#allocation2] sm:$0xff] %vm341, 0.0
          %343 = vst.msk [vmem:[#allocation2 + $0x8] sm:$0xff] %vm341, 0.0
          %344 = vst.msk [vmem:[#allocation2 + $0x10] sm:$0xff] %vm341, 0.0
          %345 = vst.msk [vmem:[#allocation2 + $0x18] sm:$0xff] %vm341, 0.0
        $region63: #{_lambda_.12} parent=54 // pred_fallthru
          _
        %v346 = vld [vmem:[#allocation2] sm:$0xff]
        %v347 = vld [vmem:[#allocation2 + $0x8] sm:$0xff]
        %v348 = vld [vmem:[#allocation2 + $0x10] sm:$0xff]
        %v349 = vld [vmem:[#allocation2 + $0x18] sm:$0xff]
        %v350 = vld [vmem:[%s265] sm:$0xff]
        %v351 = vld [vmem:[%s265 + $0x8] sm:$0xff]
        %v352 = vld [vmem:[%s265 + $0x10] sm:$0xff]
        %v353 = vld [vmem:[%s265 + $0x18] sm:$0xff]
        %v354 = vld [vmem:[%s265 + $0x20] sm:$0xff]
        %v355 = vld [vmem:[%s265 + $0x28] sm:$0xff]
        %v356 = vld [vmem:[%s265 + $0x30] sm:$0xff]
        %v357 = vld [vmem:[%s265 + $0x38] sm:$0xff]
        %v358 = vpack.c.bf16 %v352, %v350
        %v359 = vpack.c.bf16 %v353, %v351
        %v360 = vpack.c.bf16 %v356, %v354
        %v361 = vpack.c.bf16 %v357, %v355
        %v362 = vld [vmem:[%s316] sm:$0xff]
        %v363 = vld [vmem:[%s316 + $0x8] sm:$0xff]
        %v364 = vld [vmem:[%s316 + $0x10] sm:$0xff]
        %v365 = vld [vmem:[%s316 + $0x18] sm:$0xff]
        %v366 = vld [vmem:[%s316 + $0x20] sm:$0xff]
        %v367 = vld [vmem:[%s316 + $0x28] sm:$0xff]
        %v368 = vld [vmem:[%s316 + $0x30] sm:$0xff]
        %v369 = vld [vmem:[%s316 + $0x38] sm:$0xff]
        %v370 = vld [vmem:[%s316 + $0x40] sm:$0xff]
        %v371 = vld [vmem:[%s316 + $0x48] sm:$0xff]
        %v372 = vld [vmem:[%s316 + $0x50] sm:$0xff]
        %v373 = vld [vmem:[%s316 + $0x58] sm:$0xff]
        %v374 = vld [vmem:[%s316 + $0x60] sm:$0xff]
        %v375 = vld [vmem:[%s316 + $0x68] sm:$0xff]
        %v376 = vld [vmem:[%s316 + $0x70] sm:$0xff]
        %v377 = vld [vmem:[%s316 + $0x78] sm:$0xff]
        %v378 = vld [vmem:[%s316 + $0x80] sm:$0xff]
        %v379 = vld [vmem:[%s316 + $0x88] sm:$0xff]
        %v380 = vld [vmem:[%s316 + $0x90] sm:$0xff]
        %v381 = vld [vmem:[%s316 + $0x98] sm:$0xff]
        %v382 = vld [vmem:[%s316 + $0xa0] sm:$0xff]
        %v383 = vld [vmem:[%s316 + $0xa8] sm:$0xff]
        %v384 = vld [vmem:[%s316 + $0xb0] sm:$0xff]
        %v385 = vld [vmem:[%s316 + $0xb8] sm:$0xff]
        %v386 = vld [vmem:[%s316 + $0xc0] sm:$0xff]
        %v387 = vld [vmem:[%s316 + $0xc8] sm:$0xff]
        %v388 = vld [vmem:[%s316 + $0xd0] sm:$0xff]
        %v389 = vld [vmem:[%s316 + $0xd8] sm:$0xff]
        %v390 = vld [vmem:[%s316 + $0xe0] sm:$0xff]
        %v391 = vld [vmem:[%s316 + $0xe8] sm:$0xff]
        %v392 = vld [vmem:[%s316 + $0xf0] sm:$0xff]
        %v393 = vld [vmem:[%s316 + $0xf8] sm:$0xff]
        %v394 = vpack.c.bf16 %v363, %v362
        %v395 = vpack.c.bf16 %v365, %v364
        %v396 = vpack.c.bf16 %v367, %v366
        %v397 = vpack.c.bf16 %v369, %v368
        %v398 = vpack.c.bf16 %v371, %v370
        %v399 = vpack.c.bf16 %v373, %v372
        %v400 = vpack.c.bf16 %v375, %v374
        %v401 = vpack.c.bf16 %v377, %v376
        %v402 = vpack.c.bf16 %v379, %v378
        %v403 = vpack.c.bf16 %v381, %v380
        %v404 = vpack.c.bf16 %v383, %v382
        %v405 = vpack.c.bf16 %v385, %v384
        %v406 = vpack.c.bf16 %v387, %v386
        %v407 = vpack.c.bf16 %v389, %v388
        %v408 = vpack.c.bf16 %v391, %v390
        %v409 = vpack.c.bf16 %v393, %v392
        %410 = vmatprep.subr.bf16.mxu0 0
        %411 = vmatpush1.bf16.msra.mxu0 %v401
        %412 = vmatprep.subr.bf16.mxu0 0
        %413 = vmatpush1.bf16.msra.mxu0 %v400
        %414 = vmatprep.subr.bf16.mxu0 0
        %415 = vmatpush1.bf16.msra.mxu0 %v399
        %416 = vmatprep.subr.bf16.mxu0 0
        %417 = vmatpush1.bf16.msra.mxu0 %v398
        %418 = vmatprep.subr.bf16.mxu0 0
        %419 = vmatpush1.bf16.msra.mxu0 %v397
        %420 = vmatprep.subr.bf16.mxu0 0
        %421 = vmatpush1.bf16.msra.mxu0 %v396
        %422 = vmatprep.subr.bf16.mxu0 0
        %423 = vmatpush1.bf16.msra.mxu0 %v395
        %424 = vmatprep.subr.bf16.mxu0 0
        %425 = vmatpush1.bf16.msra.mxu0 %v394
        %426 = vmatprep.subr.bf16.mxu0 0
        %427 = vmatpush2.bf16.msra.mxu0 %v409
        %428 = vmatprep.subr.bf16.mxu0 0
        %429 = vmatpush2.bf16.msra.mxu0 %v408
        %430 = vmatprep.subr.bf16.mxu0 0
        %431 = vmatpush2.bf16.msra.mxu0 %v407
        %432 = vmatprep.subr.bf16.mxu0 0
        %433 = vmatpush2.bf16.msra.mxu0 %v406
        %434 = vmatprep.subr.bf16.mxu0 0
        %435 = vmatpush2.bf16.msra.mxu0 %v405
        %436 = vmatprep.subr.bf16.mxu0 0
        %437 = vmatpush2.bf16.msra.mxu0 %v404
        %438 = vmatprep.subr.bf16.mxu0 0
        %439 = vmatpush2.bf16.msra.mxu0 %v403
        %440 = vmatprep.subr.bf16.mxu0 0
        %441 = vmatpush2.bf16.msra.mxu0 %v402
        %442 = vmatprep.mubr.bf16.mxu0 %v359
        %443 = vmatmul.mubr.bf16.gmra.mxu0 %v358
        %v444 = vpop.f32.mrf.mxu0
        %v445 = vadd.f32 0.0, %v444
        %v446 = vpop.f32.mrf.mxu0
        %v447 = vpop.f32.mrf.mxu0
        %v448 = vadd.f32 0.0, %v447
        %v449 = vpop.f32.mrf.mxu0
        %450 = vmatprep.mubr.bf16.mxu0 %v361
        %451 = vmatmul.mubr.bf16.gmra.mxu0 %v360
        %v452 = vpop.f32.mrf.mxu0
        %v453 = vadd.f32 0.0, %v452
        %v454 = vpop.f32.mrf.mxu0
        %v455 = vpop.f32.mrf.mxu0
        %v456 = vadd.f32 0.0, %v455
        %v457 = vpop.f32.mrf.mxu0
        %458 = vdwg.mxu0
        %v459 = vadd.f32 %v346, %v445
        %v460 = vadd.f32 %v347, %v448
        %v461 = vadd.f32 %v348, %v453
        %v462 = vadd.f32 %v349, %v456
        %vm463 = vcmask 261120
        %464 = vst.msk [vmem:[#allocation2] sm:$0xff] %vm463, %v459
        %465 = vst.msk [vmem:[#allocation2 + $0x8] sm:$0xff] %vm463, %v460
        %466 = vst.msk [vmem:[#allocation2 + $0x10] sm:$0xff] %vm463, %v461
        %467 = vst.msk [vmem:[#allocation2 + $0x18] sm:$0xff] %vm463, %v462
        %p468 = scmp.eq.s32.totalorder %s22, 2
        // Predicated region
        $region64: #{_lambda_.12} parent=54 // pred_check
          %p469 = pneg %p468
        $region65: #{_lambda_.12} parent=54 // pred_check_branch
          %471 = sbr.rel (%p469) target = $region67
        $region66: #{_lambda_.12} parent=54 // pred_region
          %v472 = vld [vmem:[#allocation2] sm:$0xff]
          %v473 = vld [vmem:[#allocation2 + $0x8] sm:$0xff]
          %v474 = vld [vmem:[#allocation2 + $0x10] sm:$0xff]
          %v475 = vld [vmem:[#allocation2 + $0x18] sm:$0xff]
          %v476 = vld [vmem:[%s320] sm:$0x1]
          %v478 = vlaneseq
          %v479 = vshrl.u32 %v478, 7
          %v480 = vsub.s32 0, %v479
          %v481 = vrot.slane %v476, %v480
          %v483 = vadd.f32 %v472, %v481
          %v484 = vadd.f32 %v473, %v481
          %v485 = vadd.f32 %v474, %v481
          %v486 = vadd.f32 %v475, %v481
          %v487 = vmul.f32 %v483, 5.656854
          %v488 = vmul.f32 %v484, 5.656854
          %v489 = vmul.f32 %v485, 5.656854
          %v490 = vmul.f32 %v486, 5.656854
          %vm491 = vcmp.ge.f32.partialorder %v487, 0.0
          %vm492 = vcmp.ge.f32.partialorder %v488, 0.0
          %vm493 = vcmp.ge.f32.partialorder %v489, 0.0
          %vm494 = vcmp.ge.f32.partialorder %v490, 0.0
          %v495 = vmul.f32 %v487, 0.1
          %v496 = vmul.f32 %v488, 0.1
          %v497 = vmul.f32 %v489, 0.1
          %v498 = vmul.f32 %v490, 0.1
          %v499 = vsel %vm491, %v487, %v495
          %v500 = vsel %vm492, %v488, %v496
          %v501 = vsel %vm493, %v489, %v497
          %v502 = vsel %vm494, %v490, %v498
          %v503 = vld [vmem:[%s325] sm:$0xff]
          %v504 = vld [vmem:[%s325 + $0x8] sm:$0xff]
          %v505 = vld [vmem:[%s325 + $0x10] sm:$0xff]
          %v506 = vld [vmem:[%s325 + $0x18] sm:$0xff]
          %508 = vset.pattern.permute.xlu0 0
          %509 = vperm.xlu0 %508, %v503
          %v510 = vpop.permute.xlu0 %509
          %513 = vset.pattern.permute.xlu0 0
          %514 = vperm.xlu0 %513, %v504
          %v515 = vpop.permute.xlu0 %514
          %518 = vset.pattern.permute.xlu0 0
          %519 = vperm.xlu0 %518, %v505
          %v520 = vpop.permute.xlu0 %519
          %523 = vset.pattern.permute.xlu0 0
          %524 = vperm.xlu0 %523, %v506
          %v525 = vpop.permute.xlu0 %524
          %v527 = vmul.f32 %v499, %v510
          %v528 = vmul.f32 %v500, %v515
          %v529 = vmul.f32 %v501, %v520
          %v530 = vmul.f32 %v502, %v525
          %531 = vst.msk [vmem:[%s334] sm:$0xff] %vm463, %v527
          %532 = vst.msk [vmem:[%s334 + $0x8] sm:$0xff] %vm463, %v528
          %533 = vst.msk [vmem:[%s334 + $0x10] sm:$0xff] %vm463, %v529
          %534 = vst.msk [vmem:[%s334 + $0x18] sm:$0xff] %vm463, %v530
        $region67: #{_lambda_.12} parent=54 // pred_fallthru
          _
        %s535 = smul.u32 4, %s20
        %p536 = scmp.lt.s32.totalorder %s535, 3
        %s537 = scalar_select %p536, %s535, 3
        %p538 = scmp.lt.s32.totalorder %s21, 0
        %s539 = scalar_select %p538, %s21, 0
        %s540 = sadd.s32 %s539, %s537
        %s541 = smul.addr %s540, 8
        %s542 = scalar_lea.vmem %s4, %s541
        // Predicated region
        $region68: #{_lambda_.12} parent=54 // pred_check
          %p543 = pneg %p162
        $region69: #{_lambda_.12} parent=54 // pred_check_branch
          %545 = sbr.rel (%p543) target = $region71
        $region70: #{_lambda_.12} parent=54 // pred_region
          %s546 = smul.u32 4, %s20
        $region71: #{_lambda_.12} parent=54 // pred_fallthru
          _
        // Predicated region
        $region72: #{_lambda_.12} parent=54 // pred_check
          %p547 = pneg %p162
        $region73: #{_lambda_.12} parent=54 // pred_check_branch
          %549 = sbr.rel (%p547) target = $region75
        $region74: #{_lambda_.12} parent=54 // pred_region
          %s550 = smul.u32 4, %s20
          %p551 = scmp.lt.s32.totalorder %s550, 3
          %s552 = scalar_select %p551, %s550, 3
          %p553 = scmp.lt.s32.totalorder %s21, 0
          %s554 = scalar_select %p553, %s21, 0
          %s555 = sadd.s32 %s554, %s552
          %s556 = smul.addr %s555, 8
          %s557 = scalar_lea.vmem %s4, %s556
        $region75: #{_lambda_.12} parent=54 // pred_fallthru
          _
      $region55: #{_lambda_.12} parent=5 // pred_fallthru
        _
      %p558 = scmp.le.s32.totalorder 2, %s10
      // Predicated region
      $region76: #{_lambda_.12} parent=5 // pred_check
        %p559 = pneg %p558
      $region77: #{_lambda_.12} parent=5 // pred_check_branch
        %561 = sbr.rel (%p559) target = $region79
      $region78: #{_lambda_.12} parent=5 // pred_region
        %s562 = ssub.s32 %s10, 2
      $region79: #{_lambda_.12} parent=5 // pred_fallthru
        _
    $region6: #{_lambda_.12} parent=1 // loop_footer
      %s14 = sadd.s32 1, %s10
    $region7: #{_lambda_.12} parent=1 // loop_footer_branch
      %9 = sbr.rel target = $region3
    $region8: #{_lambda_.12} parent=1 // loop_exit
      _

// kernel: _lambda_.15
$region0: #{_lambda_.15}
  #allocation0 [shape = 'u32[]', space=smem, size = 0x4, offset = 0x4, fixed_abs, tag = 'smem constant byte address 0x4 - core index']
  #allocation1 [shape = 'u32[144,128]{1,0:T(1,128)}', space=vmem, size = 0x12000, scoped, tag = 'internal scratch']
  %s0 = inlined_call_operand.vmem [shape: f32[32,32], index: 0, kind: input, shape index: {}]
  %s1 = inlined_call_operand.vmem [shape: f32[32,32], index: 1, kind: input, shape index: {}]
  %s2 = inlined_call_operand.vmem [shape: f32[1,32], index: 2, kind: input, shape index: {}]
  %s3 = inlined_call_operand.vmem [shape: f32[32,32], index: 3, kind: input, shape index: {}]
  %s4 = inlined_call_operand.vmem [shape: f32[1,32], index: 4, kind: input, shape index: {}]
  %s5 = inlined_call_operand.vmem [shape: f32[1,32], index: 5, kind: input, shape index: {}]
  %s6 = inlined_call_operand.vmem [shape: f32[32,1], index: 6, kind: input, shape index: {}]
  %s7 = inlined_call_operand.vmem [shape: f32[32,32], index: 7, kind: output, shape index: {}]
  %s8 = sld [smem:[#allocation0]]
  $region38: #{_lambda_.15} parent=0
    _
  %s10 = ssub.s32 1, %s8
  %s11 = scalar_select 0, %s10, %s8
  // Predicated region
  $region2: #{_lambda_.15} parent=0 // pred_check
    _
  $region3: #{_lambda_.15} parent=0 // pred_check_branch
    %13 = sbr.rel (0) target = $region5
  $region4: #{_lambda_.15} parent=0 // pred_region
    _
  $region5: #{_lambda_.15} parent=0 // pred_fallthru
    _
  // Predicated region
  $region6: #{_lambda_.15} parent=0 // pred_check
    _
  $region7: #{_lambda_.15} parent=0 // pred_check_branch
    %15 = sbr.rel (0) target = $region9
  $region8: #{_lambda_.15} parent=0 // pred_region
    _
  $region9: #{_lambda_.15} parent=0 // pred_fallthru
    _
  // Predicated region
  $region10: #{_lambda_.15} parent=0 // pred_check
    _
  $region11: #{_lambda_.15} parent=0 // pred_check_branch
    %17 = sbr.rel (0) target = $region13
  $region12: #{_lambda_.15} parent=0 // pred_region
    _
  $region13: #{_lambda_.15} parent=0 // pred_fallthru
    _
  // Predicated region
  $region14: #{_lambda_.15} parent=0 // pred_check
    _
  $region15: #{_lambda_.15} parent=0 // pred_check_branch
    %19 = sbr.rel (0) target = $region17
  $region16: #{_lambda_.15} parent=0 // pred_region
    _
  $region17: #{_lambda_.15} parent=0 // pred_fallthru
    _
  // Predicated region
  $region18: #{_lambda_.15} parent=0 // pred_check
    _
  $region19: #{_lambda_.15} parent=0 // pred_check_branch
    %21 = sbr.rel (0) target = $region21
  $region20: #{_lambda_.15} parent=0 // pred_region
    _
  $region21: #{_lambda_.15} parent=0 // pred_fallthru
    _
  // Predicated region
  $region22: #{_lambda_.15} parent=0 // pred_check
    _
  $region23: #{_lambda_.15} parent=0 // pred_check_branch
    %23 = sbr.rel (0) target = $region25
  $region24: #{_lambda_.15} parent=0 // pred_region
    _
  $region25: #{_lambda_.15} parent=0 // pred_fallthru
    _
  // Predicated region
  $region26: #{_lambda_.15} parent=0 // pred_check
    _
  $region27: #{_lambda_.15} parent=0 // pred_check_branch
    %25 = sbr.rel (0) target = $region29
  $region28: #{_lambda_.15} parent=0 // pred_region
    _
  $region29: #{_lambda_.15} parent=0 // pred_fallthru
    _
  %v27 = vld [vmem:[%s0] sm:$0xff]
  %v28 = vld [vmem:[%s0 + $0x8] sm:$0xff]
  %v29 = vld [vmem:[%s0 + $0x10] sm:$0xff]
  %v30 = vld [vmem:[%s0 + $0x18] sm:$0xff]
  %v31 = vpack.c.bf16 %v28, %v27
  %v32 = vpack.c.bf16 %v30, %v29
  %v33 = vld [vmem:[%s1] sm:$0xff]
  %v34 = vld [vmem:[%s1 + $0x8] sm:$0xff]
  %v35 = vld [vmem:[%s1 + $0x10] sm:$0xff]
  %v36 = vld [vmem:[%s1 + $0x18] sm:$0xff]
  %v37 = vpack.c.bf16 %v34, %v33
  %v38 = vpack.c.bf16 %v36, %v35
  %vm39 = vcmask 261120
  %v41 = vsel %vm39, %v31, 0
  %v44 = vsel %vm39, %v32, 0
  %46 = vmatprep.subr.bf16.mxu0 0
  %47 = vmatpush1.bf16.msra.mxu0 0
  %48 = vmatprep.subr.bf16.mxu0 0
  %49 = vmatpush1.bf16.msra.mxu0 0
  %50 = vmatprep.subr.bf16.mxu0 0
  %51 = vmatpush1.bf16.msra.mxu0 0
  %52 = vmatprep.subr.bf16.mxu0 0
  %53 = vmatpush1.bf16.msra.mxu0 0
  %54 = vmatprep.subr.bf16.mxu0 0
  %55 = vmatpush1.bf16.msra.mxu0 0
  %56 = vmatprep.subr.bf16.mxu0 0
  %57 = vmatpush1.bf16.msra.mxu0 0
  %58 = vmatprep.subr.bf16.mxu0 0
  %59 = vmatpush1.bf16.msra.mxu0 %v38
  %60 = vmatprep.subr.bf16.mxu0 0
  %61 = vmatpush1.bf16.msra.mxu0 %v37
  %62 = vmatprep.subr.bf16.mxu0 0
  %63 = vmatpush2.bf16.msra.mxu0 0
  %64 = vmatprep.subr.bf16.mxu0 0
  %65 = vmatpush2.bf16.msra.mxu0 0
  %66 = vmatprep.subr.bf16.mxu0 0
  %67 = vmatpush2.bf16.msra.mxu0 0
  %68 = vmatprep.subr.bf16.mxu0 0
  %69 = vmatpush2.bf16.msra.mxu0 0
  %70 = vmatprep.subr.bf16.mxu0 0
  %71 = vmatpush2.bf16.msra.mxu0 0
  %72 = vmatprep.subr.bf16.mxu0 0
  %73 = vmatpush2.bf16.msra.mxu0 0
  %74 = vmatprep.subr.bf16.mxu0 0
  %75 = vmatpush2.bf16.msra.mxu0 0
  %76 = vmatprep.subr.bf16.mxu0 0
  %77 = vmatpush2.bf16.msra.mxu0 0
  %78 = vmatprep.mubr.bf16.mxu0 0
  %79 = vmatmul.mubr.bf16.gmra.mxu0 %v41
  %v80 = vpop.f32.mrf.mxu0
  %v81 = vadd.f32 0.0, %v80
  %v82 = vpop.f32.mrf.mxu0
  %v83 = vpop.f32.mrf.mxu0
  %v84 = vadd.f32 0.0, %v83
  %v85 = vpop.f32.mrf.mxu0
  %86 = vmatprep.mubr.bf16.mxu0 0
  %87 = vmatmul.mubr.bf16.gmra.mxu0 %v44
  %v88 = vpop.f32.mrf.mxu0
  %v89 = vadd.f32 0.0, %v88
  %v90 = vpop.f32.mrf.mxu0
  %v91 = vpop.f32.mrf.mxu0
  %v92 = vadd.f32 0.0, %v91
  %v93 = vpop.f32.mrf.mxu0
  %94 = vdwg.mxu0
  %v95 = vld [vmem:[%s3] sm:$0xff]
  %v96 = vld [vmem:[%s3 + $0x8] sm:$0xff]
  %v97 = vld [vmem:[%s3 + $0x10] sm:$0xff]
  %v98 = vld [vmem:[%s3 + $0x18] sm:$0xff]
  %v99 = vadd.f32 %v95, %v81
  %v100 = vadd.f32 %v96, %v84
  %v101 = vadd.f32 %v97, %v89
  %v102 = vadd.f32 %v98, %v92
  %v103 = vld [vmem:[%s2] sm:$0x1]
  %v105 = vlaneseq
  %v106 = vshrl.u32 %v105, 7
  %v107 = vsub.s32 0, %v106
  %v108 = vrot.slane %v103, %v107
  %v110 = vadd.f32 %v99, %v108
  %v111 = vadd.f32 %v100, %v108
  %v112 = vadd.f32 %v101, %v108
  %v113 = vadd.f32 %v102, %v108
  %v114 = vsel %vm39, %v110, 0.0
  %115 = vadd.xlane.f32.xlu0 %v114
  %v116 = vpop.xlane.xlu0 %115
  %v117 = vsel %vm39, %v111, 0.0
  %118 = vadd.xlane.f32.xlu0 %v117
  %v119 = vpop.xlane.xlu0 %118
  %v120 = vsel %vm39, %v112, 0.0
  %121 = vadd.xlane.f32.xlu0 %v120
  %v122 = vpop.xlane.xlu0 %121
  %v123 = vsel %vm39, %v113, 0.0
  %124 = vadd.xlane.f32.xlu0 %v123
  %v125 = vpop.xlane.xlu0 %124
  %v126 = vrcp.pop 32.0
  %v127 = vmul.f32 %v116, %v126
  %v128 = vmul.f32 %v119, %v126
  %v129 = vmul.f32 %v122, %v126
  %v130 = vmul.f32 %v125, %v126
  %v131 = vsub.f32 %v110, %v127
  %v132 = vsub.f32 %v111, %v128
  %v133 = vsub.f32 %v112, %v129
  %v134 = vsub.f32 %v113, %v130
  %v135 = vmul.f32 %v131, %v131
  %v136 = vmul.f32 %v132, %v132
  %v137 = vmul.f32 %v133, %v133
  %v138 = vmul.f32 %v134, %v134
  %v139 = vsel %vm39, %v135, 0.0
  %140 = vadd.xlane.f32.xlu0 %v139
  %v141 = vpop.xlane.xlu0 %140
  %v142 = vsel %vm39, %v136, 0.0
  %143 = vadd.xlane.f32.xlu0 %v142
  %v144 = vpop.xlane.xlu0 %143
  %v145 = vsel %vm39, %v137, 0.0
  %146 = vadd.xlane.f32.xlu0 %v145
  %v147 = vpop.xlane.xlu0 %146
  %v148 = vsel %vm39, %v138, 0.0
  %149 = vadd.xlane.f32.xlu0 %v148
  %v150 = vpop.xlane.xlu0 %149
  %v151 = vmul.f32 %v141, %v126
  %v152 = vmul.f32 %v144, %v126
  %v153 = vmul.f32 %v147, %v126
  %v154 = vmul.f32 %v150, %v126
  %v155 = vadd.f32 %v151, 1e-05
  %v156 = vadd.f32 %v152, 1e-05
  %v157 = vadd.f32 %v153, 1e-05
  %v158 = vadd.f32 %v154, 1e-05
  %v159 = vrsqrt.pop %v155
  %v160 = vrsqrt.pop %v156
  %v161 = vrsqrt.pop %v157
  %v162 = vrsqrt.pop %v158
  %v163 = vmul.f32 %v131, %v159
  %v164 = vmul.f32 %v132, %v160
  %v165 = vmul.f32 %v133, %v161
  %v166 = vmul.f32 %v134, %v162
  %v167 = vld [vmem:[%s4] sm:$0x1]
  %v169 = vlaneseq
  %v170 = vshrl.u32 %v169, 7
  %v171 = vsub.s32 0, %v170
  %v172 = vrot.slane %v167, %v171
  %v174 = vmul.f32 %v163, %v172
  %v175 = vmul.f32 %v164, %v172
  %v176 = vmul.f32 %v165, %v172
  %v177 = vmul.f32 %v166, %v172
  %v178 = vld [vmem:[%s5] sm:$0x1]
  %v180 = vlaneseq
  %v181 = vshrl.u32 %v180, 7
  %v182 = vsub.s32 0, %v181
  %v183 = vrot.slane %v178, %v182
  %v185 = vadd.f32 %v174, %v183
  %v186 = vadd.f32 %v175, %v183
  %v187 = vadd.f32 %v176, %v183
  %v188 = vadd.f32 %v177, %v183
  %v189 = vld [vmem:[%s6] sm:$0xff]
  %v190 = vld [vmem:[%s6 + $0x8] sm:$0xff]
  %v191 = vld [vmem:[%s6 + $0x10] sm:$0xff]
  %v192 = vld [vmem:[%s6 + $0x18] sm:$0xff]
  %194 = vset.pattern.permute.xlu0 0
  %195 = vperm.xlu0 %194, %v189
  %v196 = vpop.permute.xlu0 %195
  %199 = vset.pattern.permute.xlu0 0
  %200 = vperm.xlu0 %199, %v190
  %v201 = vpop.permute.xlu0 %200
  %204 = vset.pattern.permute.xlu0 0
  %205 = vperm.xlu0 %204, %v191
  %v206 = vpop.permute.xlu0 %205
  %209 = vset.pattern.permute.xlu0 0
  %210 = vperm.xlu0 %209, %v192
  %v211 = vpop.permute.xlu0 %210
  %v213 = vmul.f32 %v185, %v196
  %v214 = vmul.f32 %v186, %v201
  %v215 = vmul.f32 %v187, %v206
  %v216 = vmul.f32 %v188, %v211
  %217 = vst.msk [vmem:[%s7] sm:$0xff] %vm39, %v213
  %218 = vst.msk [vmem:[%s7 + $0x8] sm:$0xff] %vm39, %v214
  %219 = vst.msk [vmem:[%s7 + $0x10] sm:$0xff] %vm39, %v215
  %220 = vst.msk [vmem:[%s7 + $0x18] sm:$0xff] %vm39, %v216
  // Predicated region
  $region30: #{_lambda_.15} parent=0 // pred_check
    _
  $region31: #{_lambda_.15} parent=0 // pred_check_branch
    %222 = sbr.rel (0) target = $region33
  $region32: #{_lambda_.15} parent=0 // pred_region
    _
  $region33: #{_lambda_.15} parent=0 // pred_fallthru
    _
  // Predicated region
  $region34: #{_lambda_.15} parent=0 // pred_check
    _
  $region35: #{_lambda_.15} parent=0 // pred_check_branch
    %224 = sbr.rel (0) target = $region37
  $region36: #{_lambda_.15} parent=0 // pred_region
    _
  $region37: #{_lambda_.15} parent=0 // pred_fallthru
    _

// kernel: _lambda_.16
$region0: #{_lambda_.16}
  #allocation0 [shape = 'u32[]', space=smem, size = 0x4, offset = 0x4, fixed_abs, tag = 'smem constant byte address 0x4 - core index']
  #allocation1 [shape = 'u32[144,128]{1,0:T(1,128)}', space=vmem, size = 0x12000, scoped, tag = 'internal scratch']
  %s0 = inlined_call_operand.vmem [shape: f32[2,18,32], index: 0, kind: input, shape index: {}]
  %s1 = inlined_call_operand.vmem [shape: f32[3,32,64], index: 1, kind: input, shape index: {}]
  %s2 = inlined_call_operand.vmem [shape: f32[1,64], index: 2, kind: input, shape index: {}]
  %s3 = inlined_call_operand.vmem [shape: f32[2,16,1], index: 3, kind: input, shape index: {}]
  %s4 = inlined_call_operand.vmem [shape: f32[2,16,64], index: 4, kind: output, shape index: {}]
  %s5 = sld [smem:[#allocation0]]
  $region49: #{_lambda_.16} parent=0
    _
  %s7 = ssub.s32 1, %s5
  %s8 = scalar_select 0, %s7, %s5
  loop: start=0, step=1, limit=4
  $region2: #{_lambda_.16} parent=0 // loop_pre_header
    _
  $region3: #{_lambda_.16} parent=0 // loop_header
    %s10 = sphi 0, %s14
    %p11 = scmp.ge.s32.totalorder %s10, 4
    %s20 = sphi 0, %s22
    %s23 = sphi 0, %s20
    %s24 = sphi 0, %s23
    %s40 = sphi 0, %s24
    %s44 = sphi 0, %s44
    %s46 = sphi 0, %s44
    %s47 = sphi 0, %s46
    %s61 = sphi 0, %s47
    %s65 = sphi 0, %s65
    %s67 = sphi 0, %s65
    %s68 = sphi 0, %s67
    %s82 = sphi 0, %s68
    %s88 = sphi 0, %s90
    %s91 = sphi 0, %s88
    %s92 = sphi 0, %s91
    %s108 = sphi 0, %s92
    %s114 = sphi 0, %s116
    %s117 = sphi 0, %s114
    %s118 = sphi 0, %s117
    %s134 = sphi 0, %s118
  $region4: #{_lambda_.16} parent=0 // loop_header_branch
    %13 = sbr.rel (%p11) target = $region8
  $region5: #{_lambda_.16} parent=0 // loop_body
    %s15 = ssub.s32 %s10, 1
    %s16 = ssub.s32 %s10, 2
    %s17 = sadd.s32 %s10, 1
    %s18 = ssub.s32 %s10, %s17
    %p19 = scmp.eq.s32.totalorder %s18, 0
    %s21 = sadd.s32 %s20, 1
    %s22 = scalar_select %p19, %s20, %s21
    %p25 = pneg %p19
    %p26 = scmp.eq.s32.totalorder %s10, 1
    %p27 = por %p25, %p26
    %p28 = scmp.ne.s32.totalorder %s20, %s23
    %p29 = scmp.eq.s32.totalorder %s10, 0
    %p30 = por %p28, %p29
    %p31 = scmp.ne.s32.totalorder %s20, %s23
    %p32 = scmp.eq.s32.totalorder %s15, 1
    %p33 = por %p31, %p32
    %p34 = scmp.ne.s32.totalorder %s23, %s24
    %p35 = scmp.eq.s32.totalorder %s15, 0
    %p36 = por %p34, %p35
    %p37 = scmp.ne.s32.totalorder %s23, %s24
    %p38 = scmp.eq.s32.totalorder %s16, 1
    %p39 = por %p37, %p38
    %p41 = scmp.ne.s32.totalorder %s24, %s40
    %p42 = scmp.eq.s32.totalorder %s16, 0
    %p43 = por %p41, %p42
    %s45 = sadd.s32 %s44, 1
    %p48 = scmp.eq.s32.totalorder %s10, 1
    %p49 = scmp.ne.s32.totalorder %s44, %s46
    %p50 = scmp.eq.s32.totalorder %s10, 0
    %p51 = por %p49, %p50
    %p52 = scmp.ne.s32.totalorder %s44, %s46
    %p53 = scmp.eq.s32.totalorder %s15, 1
    %p54 = por %p52, %p53
    %p55 = scmp.ne.s32.totalorder %s46, %s47
    %p56 = scmp.eq.s32.totalorder %s15, 0
    %p57 = por %p55, %p56
    %p58 = scmp.ne.s32.totalorder %s46, %s47
    %p59 = scmp.eq.s32.totalorder %s16, 1
    %p60 = por %p58, %p59
    %p62 = scmp.ne.s32.totalorder %s47, %s61
    %p63 = scmp.eq.s32.totalorder %s16, 0
    %p64 = por %p62, %p63
    %s66 = sadd.s32 %s65, 1
    %p69 = scmp.eq.s32.totalorder %s10, 1
    %p70 = scmp.ne.s32.totalorder %s65, %s67
    %p71 = scmp.eq.s32.totalorder %s10, 0
    %p72 = por %p70, %p71
    %p73 = scmp.ne.s32.totalorder %s65, %s67
    %p74 = scmp.eq.s32.totalorder %s15, 1
    %p75 = por %p73, %p74
    %p76 = scmp.ne.s32.totalorder %s67, %s68
    %p77 = scmp.eq.s32.totalorder %s15, 0
    %p78 = por %p76, %p77
    %p79 = scmp.ne.s32.totalorder %s67, %s68
    %p80 = scmp.eq.s32.totalorder %s16, 1
    %p81 = por %p79, %p80
    %p83 = scmp.ne.s32.totalorder %s68, %s82
    %p84 = scmp.eq.s32.totalorder %s16, 0
    %p85 = por %p83, %p84
    %s86 = ssub.s32 %s10, %s17
    %p87 = scmp.eq.s32.totalorder %s86, 0
    %s89 = sadd.s32 %s88, 1
    %s90 = scalar_select %p87, %s88, %s89
    %p93 = pneg %p87
    %p94 = scmp.eq.s32.totalorder %s10, 1
    %p95 = por %p93, %p94
    %p96 = scmp.ne.s32.totalorder %s88, %s91
    %p97 = scmp.eq.s32.totalorder %s10, 0
    %p98 = por %p96, %p97
    %p99 = scmp.ne.s32.totalorder %s88, %s91
    %p100 = scmp.eq.s32.totalorder %s15, 1
    %p101 = por %p99, %p100
    %p102 = scmp.ne.s32.totalorder %s91, %s92
    %p103 = scmp.eq.s32.totalorder %s15, 0
    %p104 = por %p102, %p103
    %p105 = scmp.ne.s32.totalorder %s91, %s92
    %p106 = scmp.eq.s32.totalorder %s16, 1
    %p107 = por %p105, %p106
    %p109 = scmp.ne.s32.totalorder %s92, %s108
    %p110 = scmp.eq.s32.totalorder %s16, 0
    %p111 = por %p109, %p110
    %s112 = ssub.s32 %s10, %s17
    %p113 = scmp.eq.s32.totalorder %s112, 0
    %s115 = sadd.s32 %s114, 1
    %s116 = scalar_select %p113, %s114, %s115
    %p119 = pneg %p113
    %p120 = scmp.eq.s32.totalorder %s10, 1
    %p121 = por %p119, %p120
    %p122 = scmp.ne.s32.totalorder %s114, %s117
    %p123 = scmp.eq.s32.totalorder %s10, 0
    %p124 = por %p122, %p123
    %p125 = scmp.ne.s32.totalorder %s114, %s117
    %p126 = scmp.eq.s32.totalorder %s15, 1
    %p127 = por %p125, %p126
    %p128 = scmp.ne.s32.totalorder %s117, %s118
    %p129 = scmp.eq.s32.totalorder %s15, 0
    %p130 = por %p128, %p129
    %p131 = scmp.ne.s32.totalorder %s117, %s118
    %p132 = scmp.eq.s32.totalorder %s16, 1
    %p133 = por %p131, %p132
    %p135 = scmp.ne.s32.totalorder %s118, %s134
    %p136 = scmp.eq.s32.totalorder %s16, 0
    %p137 = por %p135, %p136
    %p138 = scmp.le.s32.totalorder 1, %s10
    %p139 = scmp.lt.s32.totalorder %s10, 3
    %p140 = pnand %p138, %p139
    %p141 = pneg %p140
    // Predicated region
    $region9: #{_lambda_.16} parent=5 // pred_check
      _
    $region10: #{_lambda_.16} parent=5 // pred_check_branch
      %143 = sbr.rel (%p140) target = $region12
    $region11: #{_lambda_.16} parent=5 // pred_region
      %s144 = ssub.s32 %s10, 1
      // Predicated region
      $region13: #{_lambda_.16} parent=11 // pred_check
        %p145 = pneg %p57
      $region14: #{_lambda_.16} parent=11 // pred_check_branch
        %147 = sbr.rel (%p145) target = $region16
      $region15: #{_lambda_.16} parent=11 // pred_region
        _
      $region16: #{_lambda_.16} parent=11 // pred_fallthru
        _
      // Predicated region
      $region17: #{_lambda_.16} parent=11 // pred_check
        %p148 = pneg %p78
      $region18: #{_lambda_.16} parent=11 // pred_check_branch
        %150 = sbr.rel (%p148) target = $region20
      $region19: #{_lambda_.16} parent=11 // pred_region
        _
      $region20: #{_lambda_.16} parent=11 // pred_fallthru
        _
    $region12: #{_lambda_.16} parent=5 // pred_fallthru
      _
    %p151 = scmp.lt.s32.totalorder %s10, 2
    // Predicated region
    $region21: #{_lambda_.16} parent=5 // pred_check
      %p152 = pneg %p151
    $region22: #{_lambda_.16} parent=5 // pred_check_branch
      %154 = sbr.rel (%p152) target = $region24
    $region23: #{_lambda_.16} parent=5 // pred_region
      // Predicated region
      $region25: #{_lambda_.16} parent=23 // pred_check
        %p155 = pneg %p30
      $region26: #{_lambda_.16} parent=23 // pred_check_branch
        %157 = sbr.rel (%p155) target = $region28
      $region27: #{_lambda_.16} parent=23 // pred_region
        %p158 = scmp.lt.s32.totalorder %s10, 1
        %s159 = scalar_select %p158, %s10, 1
        %s160 = smul.addr %s159, 3
        %s161 = smul.addr %s160, 8
        %s162 = scalar_lea.vmem %s0, %s161
      $region28: #{_lambda_.16} parent=23 // pred_fallthru
        _
      // Predicated region
      $region29: #{_lambda_.16} parent=23 // pred_check
        %p163 = pneg %p98
      $region30: #{_lambda_.16} parent=23 // pred_check_branch
        %165 = sbr.rel (%p163) target = $region32
      $region31: #{_lambda_.16} parent=23 // pred_region
        %p166 = scmp.lt.s32.totalorder %s10, 1
        %s167 = scalar_select %p166, %s10, 1
        %s168 = smul.addr %s167, 2
        %s169 = smul.addr %s168, 8
        %s170 = scalar_lea.vmem %s3, %s169
      $region32: #{_lambda_.16} parent=23 // pred_fallthru
        _
    $region24: #{_lambda_.16} parent=5 // pred_fallthru
      _
    %p171 = scmp.le.s32.totalorder 1, %s10
    %p172 = scmp.lt.s32.totalorder %s10, 3
    %p173 = pnand %p171, %p172
    %p174 = pneg %p173
    // Predicated region
    $region33: #{_lambda_.16} parent=5 // pred_check
      _
    $region34: #{_lambda_.16} parent=5 // pred_check_branch
      %176 = sbr.rel (%p173) target = $region36
    $region35: #{_lambda_.16} parent=5 // pred_region
      %s177 = ssub.s32 %s10, 1
      %p178 = scmp.lt.s32.totalorder %s15, 1
      %s179 = scalar_select %p178, %s15, 1
      %s180 = smul.addr %s179, 3
      %s181 = smul.addr %s180, 8
      %s182 = scalar_lea.vmem %s0, %s181
      %p183 = pneg %p36
      %p184 = pneg %p33
      %p185 = pneg %p57
      %p186 = pneg %p54
      %p187 = pneg %p78
      %p188 = pneg %p75
      %p189 = scmp.lt.s32.totalorder %s15, 1
      %s190 = scalar_select %p189, %s15, 1
      %s191 = smul.addr %s190, 2
      %s192 = smul.addr %s191, 8
      %s193 = scalar_lea.vmem %s3, %s192
      %p194 = pneg %p104
      %p195 = pneg %p101
      %p196 = pneg %p130
      %p197 = pneg %p127
      %p198 = scmp.lt.s32.totalorder %s15, 1
      %s199 = scalar_select %p198, %s15, 1
      %s200 = smul.addr %s199, 2
      %s201 = smul.addr %s200, 8
      %s202 = scalar_lea.vmem %s4, %s201
      %p203 = scmp.lt.s32.totalorder %s15, 1
      %s204 = scalar_select %p203, %s15, 1
      %s205 = smul.addr %s204, 3
      %s206 = smul.addr %s205, 8
      %s207 = scalar_lea.vmem %s0, %s206
      %p208 = scmp.lt.s32.totalorder %s15, 1
      %s209 = scalar_select %p208, %s15, 1
      %s210 = smul.addr %s209, 2
      %s211 = smul.addr %s210, 8
      %s212 = scalar_lea.vmem %s3, %s211
      %p213 = scmp.lt.s32.totalorder %s15, 1
      %s214 = scalar_select %p213, %s15, 1
      %s215 = smul.addr %s214, 2
      %s216 = smul.addr %s215, 8
      %s217 = scalar_lea.vmem %s4, %s216
      %v219 = vld [vmem:[%s207] sm:$0xff]
      %v220 = vld [vmem:[%s207 + $0x8] sm:$0xff]
      %v221 = vpack.c.bf16 %v220, %v219
      %v222 = vld [vmem:[%s1] sm:$0xff]
      %v223 = vld [vmem:[%s1 + $0x8] sm:$0xff]
      %v224 = vld [vmem:[%s1 + $0x10] sm:$0xff]
      %v225 = vld [vmem:[%s1 + $0x18] sm:$0xff]
      %v226 = vpack.c.bf16 %v223, %v222
      %v227 = vpack.c.bf16 %v225, %v224
      %v228 = vld [vmem:[%s207 + $0x1] sm:$0xff]
      %v229 = vld [vmem:[%s207 + $0x9] sm:$0xff]
      %v230 = vpack.c.bf16 %v229, %v228
      %s231 = scalar_lea.vmem %s1, 32
      %v232 = vld [vmem:[%s231] sm:$0xff]
      %v233 = vld [vmem:[%s231 + $0x8] sm:$0xff]
      %v234 = vld [vmem:[%s231 + $0x10] sm:$0xff]
      %v235 = vld [vmem:[%s231 + $0x18] sm:$0xff]
      %v236 = vpack.c.bf16 %v233, %v232
      %v237 = vpack.c.bf16 %v235, %v234
      %vm238 = vcmask 261120
      %v240 = vsel %vm238, %v230, 0
      %242 = vmatprep.subr.bf16.mxu0 0
      %243 = vmatpush1.bf16.msra.mxu0 0
      %244 = vmatprep.subr.bf16.mxu0 0
      %245 = vmatpush1.bf16.msra.mxu0 0
      %246 = vmatprep.subr.bf16.mxu0 0
      %247 = vmatpush1.bf16.msra.mxu0 0
      %248 = vmatprep.subr.bf16.mxu0 0
      %249 = vmatpush1.bf16.msra.mxu0 0
      %250 = vmatprep.subr.bf16.mxu0 0
      %251 = vmatpush1.bf16.msra.mxu0 0
      %252 = vmatprep.subr.bf16.mxu0 0
      %253 = vmatpush1.bf16.msra.mxu0 0
      %254 = vmatprep.subr.bf16.mxu0 0
      %255 = vmatpush1.bf16.msra.mxu0 %v237
      %256 = vmatprep.subr.bf16.mxu0 0
      %257 = vmatpush1.bf16.msra.mxu0 %v236
      %258 = vmatprep.subr.bf16.mxu0 0
      %259 = vmatpush2.bf16.msra.mxu0 0
      %260 = vmatprep.subr.bf16.mxu0 0
      %261 = vmatpush2.bf16.msra.mxu0 0
      %262 = vmatprep.subr.bf16.mxu0 0
      %263 = vmatpush2.bf16.msra.mxu0 0
      %264 = vmatprep.subr.bf16.mxu0 0
      %265 = vmatpush2.bf16.msra.mxu0 0
      %266 = vmatprep.subr.bf16.mxu0 0
      %267 = vmatpush2.bf16.msra.mxu0 0
      %268 = vmatprep.subr.bf16.mxu0 0
      %269 = vmatpush2.bf16.msra.mxu0 0
      %270 = vmatprep.subr.bf16.mxu0 0
      %271 = vmatpush2.bf16.msra.mxu0 0
      %272 = vmatprep.subr.bf16.mxu0 0
      %273 = vmatpush2.bf16.msra.mxu0 0
      %274 = vmatprep.mubr.bf16.mxu0 0
      %275 = vmatmul.mubr.bf16.gmra.mxu0 %v240
      %v276 = vpop.f32.mrf.mxu0
      %v277 = vadd.f32 0.0, %v276
      %v278 = vpop.f32.mrf.mxu0
      %v279 = vpop.f32.mrf.mxu0
      %v280 = vadd.f32 0.0, %v279
      %v281 = vpop.f32.mrf.mxu0
      %282 = vdwg.mxu0
      %v284 = vsel %vm238, %v221, 0
      %286 = vmatprep.subr.bf16.mxu0 0
      %287 = vmatpush1.bf16.msra.mxu0 0
      %288 = vmatprep.subr.bf16.mxu0 0
      %289 = vmatpush1.bf16.msra.mxu0 0
      %290 = vmatprep.subr.bf16.mxu0 0
      %291 = vmatpush1.bf16.msra.mxu0 0
      %292 = vmatprep.subr.bf16.mxu0 0
      %293 = vmatpush1.bf16.msra.mxu0 0
      %294 = vmatprep.subr.bf16.mxu0 0
      %295 = vmatpush1.bf16.msra.mxu0 0
      %296 = vmatprep.subr.bf16.mxu0 0
      %297 = vmatpush1.bf16.msra.mxu0 0
      %298 = vmatprep.subr.bf16.mxu0 0
      %299 = vmatpush1.bf16.msra.mxu0 %v227
      %300 = vmatprep.subr.bf16.mxu0 0
      %301 = vmatpush1.bf16.msra.mxu0 %v226
      %302 = vmatprep.subr.bf16.mxu0 0
      %303 = vmatpush2.bf16.msra.mxu0 0
      %304 = vmatprep.subr.bf16.mxu0 0
      %305 = vmatpush2.bf16.msra.mxu0 0
      %306 = vmatprep.subr.bf16.mxu0 0
      %307 = vmatpush2.bf16.msra.mxu0 0
      %308 = vmatprep.subr.bf16.mxu0 0
      %309 = vmatpush2.bf16.msra.mxu0 0
      %310 = vmatprep.subr.bf16.mxu0 0
      %311 = vmatpush2.bf16.msra.mxu0 0
      %312 = vmatprep.subr.bf16.mxu0 0
      %313 = vmatpush2.bf16.msra.mxu0 0
      %314 = vmatprep.subr.bf16.mxu0 0
      %315 = vmatpush2.bf16.msra.mxu0 0
      %316 = vmatprep.subr.bf16.mxu0 0
      %317 = vmatpush2.bf16.msra.mxu0 0
      %318 = vmatprep.mubr.bf16.mxu0 0
      %319 = vmatmul.mubr.bf16.gmra.mxu0 %v284
      %v320 = vpop.f32.mrf.mxu0
      %v321 = vadd.f32 %v277, %v320
      %v322 = vpop.f32.mrf.mxu0
      %v323 = vpop.f32.mrf.mxu0
      %v324 = vadd.f32 %v280, %v323
      %v325 = vpop.f32.mrf.mxu0
      %326 = vdwg.mxu0
      %v327 = vld [vmem:[%s207 + $0x2] sm:$0xff]
      %v328 = vld [vmem:[%s207 + $0xa] sm:$0xff]
      %v329 = vpack.c.bf16 %v328, %v327
      %s330 = scalar_lea.vmem %s1, 64
      %v331 = vld [vmem:[%s330] sm:$0xff]
      %v332 = vld [vmem:[%s330 + $0x8] sm:$0xff]
      %v333 = vld [vmem:[%s330 + $0x10] sm:$0xff]
      %v334 = vld [vmem:[%s330 + $0x18] sm:$0xff]
      %v335 = vpack.c.bf16 %v332, %v331
      %v336 = vpack.c.bf16 %v334, %v333
      %v338 = vsel %vm238, %v329, 0
      %340 = vmatprep.subr.bf16.mxu0 0
      %341 = vmatpush1.bf16.msra.mxu0 0
      %342 = vmatprep.subr.bf16.mxu0 0
      %343 = vmatpush1.bf16.msra.mxu0 0
      %344 = vmatprep.subr.bf16.mxu0 0
      %345 = vmatpush1.bf16.msra.mxu0 0
      %346 = vmatprep.subr.bf16.mxu0 0
      %347 = vmatpush1.bf16.msra.mxu0 0
      %348 = vmatprep.subr.bf16.mxu0 0
      %349 = vmatpush1.bf16.msra.mxu0 0
      %350 = vmatprep.subr.bf16.mxu0 0
      %351 = vmatpush1.bf16.msra.mxu0 0
      %352 = vmatprep.subr.bf16.mxu0 0
      %353 = vmatpush1.bf16.msra.mxu0 %v336
      %354 = vmatprep.subr.bf16.mxu0 0
      %355 = vmatpush1.bf16.msra.mxu0 %v335
      %356 = vmatprep.subr.bf16.mxu0 0
      %357 = vmatpush2.bf16.msra.mxu0 0
      %358 = vmatprep.subr.bf16.mxu0 0
      %359 = vmatpush2.bf16.msra.mxu0 0
      %360 = vmatprep.subr.bf16.mxu0 0
      %361 = vmatpush2.bf16.msra.mxu0 0
      %362 = vmatprep.subr.bf16.mxu0 0
      %363 = vmatpush2.bf16.msra.mxu0 0
      %364 = vmatprep.subr.bf16.mxu0 0
      %365 = vmatpush2.bf16.msra.mxu0 0
      %366 = vmatprep.subr.bf16.mxu0 0
      %367 = vmatpush2.bf16.msra.mxu0 0
      %368 = vmatprep.subr.bf16.mxu0 0
      %369 = vmatpush2.bf16.msra.mxu0 0
      %370 = vmatprep.subr.bf16.mxu0 0
      %371 = vmatpush2.bf16.msra.mxu0 0
      %372 = vmatprep.mubr.bf16.mxu0 0
      %373 = vmatmul.mubr.bf16.gmra.mxu0 %v338
      %v374 = vpop.f32.mrf.mxu0
      %v375 = vadd.f32 0.0, %v374
      %v376 = vpop.f32.mrf.mxu0
      %v377 = vpop.f32.mrf.mxu0
      %v378 = vadd.f32 0.0, %v377
      %v379 = vpop.f32.mrf.mxu0
      %380 = vdwg.mxu0
      %v381 = vadd.f32 %v321, %v375
      %v382 = vadd.f32 %v324, %v378
      %v383 = vld [vmem:[%s2] sm:$0x1]
      %v385 = vlaneseq
      %v386 = vshrl.u32 %v385, 7
      %v387 = vsub.s32 0, %v386
      %v388 = vrot.slane %v383, %v387
      %v390 = vadd.f32 %v381, %v388
      %v391 = vadd.f32 %v382, %v388
      %v392 = vmax.f32 %v390, 0.0
      %v393 = vmax.f32 %v391, 0.0
      %v394 = vld [vmem:[%s212] sm:$0xff]
      %v395 = vld [vmem:[%s212 + $0x8] sm:$0xff]
      %397 = vset.pattern.permute.xlu0 0
      %398 = vperm.xlu0 %397, %v394
      %v399 = vpop.permute.xlu0 %398
      %402 = vset.pattern.permute.xlu0 0
      %403 = vperm.xlu0 %402, %v395
      %v404 = vpop.permute.xlu0 %403
      %v406 = vmul.f32 %v392, %v399
      %v407 = vmul.f32 %v393, %v404
      %vm408 = vcmask 523264
      %409 = vst.msk [vmem:[%s217] sm:$0xff] %vm408, %v406
      %410 = vst.msk [vmem:[%s217 + $0x8] sm:$0xff] %vm408, %v407
      %p411 = scmp.lt.s32.totalorder %s15, 1
      %s412 = scalar_select %p411, %s15, 1
      %s413 = smul.addr %s412, 2
      %s414 = smul.addr %s413, 8
      %s415 = scalar_lea.vmem %s4, %s414
      // Predicated region
      $region37: #{_lambda_.16} parent=35 // pred_check
        %p416 = pneg %p127
      $region38: #{_lambda_.16} parent=35 // pred_check_branch
        %418 = sbr.rel (%p416) target = $region40
      $region39: #{_lambda_.16} parent=35 // pred_region
        _
      $region40: #{_lambda_.16} parent=35 // pred_fallthru
        _
    $region36: #{_lambda_.16} parent=5 // pred_fallthru
      _
    %p419 = scmp.le.s32.totalorder 2, %s10
    // Predicated region
    $region41: #{_lambda_.16} parent=5 // pred_check
      %p420 = pneg %p419
    $region42: #{_lambda_.16} parent=5 // pred_check_branch
      %422 = sbr.rel (%p420) target = $region44
    $region43: #{_lambda_.16} parent=5 // pred_region
      %s423 = ssub.s32 %s10, 2
      // Predicated region
      $region45: #{_lambda_.16} parent=43 // pred_check
        %p424 = pneg %p133
      $region46: #{_lambda_.16} parent=43 // pred_check_branch
        %426 = sbr.rel (%p424) target = $region48
      $region47: #{_lambda_.16} parent=43 // pred_region
        %p427 = scmp.lt.s32.totalorder %s16, 1
        %s428 = scalar_select %p427, %s16, 1
        %s429 = smul.addr %s428, 2
        %s430 = smul.addr %s429, 8
        %s431 = scalar_lea.vmem %s4, %s430
      $region48: #{_lambda_.16} parent=43 // pred_fallthru
        _
    $region44: #{_lambda_.16} parent=5 // pred_fallthru
      _
  $region6: #{_lambda_.16} parent=0 // loop_footer
    %s14 = sadd.s32 1, %s10
  $region7: #{_lambda_.16} parent=0 // loop_footer_branch
    %9 = sbr.rel target = $region3
  $region8: #{_lambda_.16} parent=0 // loop_exit
    _

// kernel: _lambda_.17
$region0: #{_lambda_.17}
  #allocation0 [shape = 'u32[]', space=smem, size = 0x4, offset = 0x4, fixed_abs, tag = 'smem constant byte address 0x4 - core index']
  #allocation1 [shape = 'u32[144,128]{1,0:T(1,128)}', space=vmem, size = 0x12000, scoped, tag = 'internal scratch']
  %s0 = inlined_call_operand.vmem [shape: f32[2,18,64], index: 0, kind: input, shape index: {}]
  %s1 = inlined_call_operand.vmem [shape: f32[3,64,32], index: 1, kind: input, shape index: {}]
  %s2 = inlined_call_operand.vmem [shape: f32[1,32], index: 2, kind: input, shape index: {}]
  %s3 = inlined_call_operand.vmem [shape: f32[2,16,32], index: 3, kind: input, shape index: {}]
  %s4 = inlined_call_operand.vmem [shape: f32[1,32], index: 4, kind: input, shape index: {}]
  %s5 = inlined_call_operand.vmem [shape: f32[1,32], index: 5, kind: input, shape index: {}]
  %s6 = inlined_call_operand.vmem [shape: f32[2,16,1], index: 6, kind: input, shape index: {}]
  %s7 = inlined_call_operand.vmem [shape: f32[2,16,32], index: 7, kind: output, shape index: {}]
  %s8 = sld [smem:[#allocation0]]
  $region61: #{_lambda_.17} parent=0
    _
  %s10 = ssub.s32 1, %s8
  %s11 = scalar_select 0, %s10, %s8
  loop: start=0, step=1, limit=4
  $region2: #{_lambda_.17} parent=0 // loop_pre_header
    _
  $region3: #{_lambda_.17} parent=0 // loop_header
    %s13 = sphi 0, %s17
    %p14 = scmp.ge.s32.totalorder %s13, 4
    %s23 = sphi 0, %s25
    %s26 = sphi 0, %s23
    %s27 = sphi 0, %s26
    %s43 = sphi 0, %s27
    %s47 = sphi 0, %s47
    %s49 = sphi 0, %s47
    %s50 = sphi 0, %s49
    %s64 = sphi 0, %s50
    %s68 = sphi 0, %s68
    %s70 = sphi 0, %s68
    %s71 = sphi 0, %s70
    %s85 = sphi 0, %s71
    %s91 = sphi 0, %s93
    %s94 = sphi 0, %s91
    %s95 = sphi 0, %s94
    %s111 = sphi 0, %s95
    %s115 = sphi 0, %s115
    %s117 = sphi 0, %s115
    %s118 = sphi 0, %s117
    %s132 = sphi 0, %s118
    %s136 = sphi 0, %s136
    %s138 = sphi 0, %s136
    %s139 = sphi 0, %s138
    %s153 = sphi 0, %s139
    %s159 = sphi 0, %s161
    %s162 = sphi 0, %s159
    %s163 = sphi 0, %s162
    %s179 = sphi 0, %s163
    %s185 = sphi 0, %s187
    %s188 = sphi 0, %s185
    %s189 = sphi 0, %s188
    %s205 = sphi 0, %s189
  $region4: #{_lambda_.17} parent=0 // loop_header_branch
    %16 = sbr.rel (%p14) target = $region8
  $region5: #{_lambda_.17} parent=0 // loop_body
    %s18 = ssub.s32 %s13, 1
    %s19 = ssub.s32 %s13, 2
    %s20 = sadd.s32 %s13, 1
    %s21 = ssub.s32 %s13, %s20
    %p22 = scmp.eq.s32.totalorder %s21, 0
    %s24 = sadd.s32 %s23, 1
    %s25 = scalar_select %p22, %s23, %s24
    %p28 = pneg %p22
    %p29 = scmp.eq.s32.totalorder %s13, 1
    %p30 = por %p28, %p29
    %p31 = scmp.ne.s32.totalorder %s23, %s26
    %p32 = scmp.eq.s32.totalorder %s13, 0
    %p33 = por %p31, %p32
    %p34 = scmp.ne.s32.totalorder %s23, %s26
    %p35 = scmp.eq.s32.totalorder %s18, 1
    %p36 = por %p34, %p35
    %p37 = scmp.ne.s32.totalorder %s26, %s27
    %p38 = scmp.eq.s32.totalorder %s18, 0
    %p39 = por %p37, %p38
    %p40 = scmp.ne.s32.totalorder %s26, %s27
    %p41 = scmp.eq.s32.totalorder %s19, 1
    %p42 = por %p40, %p41
    %p44 = scmp.ne.s32.totalorder %s27, %s43
    %p45 = scmp.eq.s32.totalorder %s19, 0
    %p46 = por %p44, %p45
    %s48 = sadd.s32 %s47, 1
    %p51 = scmp.eq.s32.totalorder %s13, 1
    %p52 = scmp.ne.s32.totalorder %s47, %s49
    %p53 = scmp.eq.s32.totalorder %s13, 0
    %p54 = por %p52, %p53
    %p55 = scmp.ne.s32.totalorder %s47, %s49
    %p56 = scmp.eq.s32.totalorder %s18, 1
    %p57 = por %p55, %p56
    %p58 = scmp.ne.s32.totalorder %s49, %s50
    %p59 = scmp.eq.s32.totalorder %s18, 0
    %p60 = por %p58, %p59
    %p61 = scmp.ne.s32.totalorder %s49, %s50
    %p62 = scmp.eq.s32.totalorder %s19, 1
    %p63 = por %p61, %p62
    %p65 = scmp.ne.s32.totalorder %s50, %s64
    %p66 = scmp.eq.s32.totalorder %s19, 0
    %p67 = por %p65, %p66
    %s69 = sadd.s32 %s68, 1
    %p72 = scmp.eq.s32.totalorder %s13, 1
    %p73 = scmp.ne.s32.totalorder %s68, %s70
    %p74 = scmp.eq.s32.totalorder %s13, 0
    %p75 = por %p73, %p74
    %p76 = scmp.ne.s32.totalorder %s68, %s70
    %p77 = scmp.eq.s32.totalorder %s18, 1
    %p78 = por %p76, %p77
    %p79 = scmp.ne.s32.totalorder %s70, %s71
    %p80 = scmp.eq.s32.totalorder %s18, 0
    %p81 = por %p79, %p80
    %p82 = scmp.ne.s32.totalorder %s70, %s71
    %p83 = scmp.eq.s32.totalorder %s19, 1
    %p84 = por %p82, %p83
    %p86 = scmp.ne.s32.totalorder %s71, %s85
    %p87 = scmp.eq.s32.totalorder %s19, 0
    %p88 = por %p86, %p87
    %s89 = ssub.s32 %s13, %s20
    %p90 = scmp.eq.s32.totalorder %s89, 0
    %s92 = sadd.s32 %s91, 1
    %s93 = scalar_select %p90, %s91, %s92
    %p96 = pneg %p90
    %p97 = scmp.eq.s32.totalorder %s13, 1
    %p98 = por %p96, %p97
    %p99 = scmp.ne.s32.totalorder %s91, %s94
    %p100 = scmp.eq.s32.totalorder %s13, 0
    %p101 = por %p99, %p100
    %p102 = scmp.ne.s32.totalorder %s91, %s94
    %p103 = scmp.eq.s32.totalorder %s18, 1
    %p104 = por %p102, %p103
    %p105 = scmp.ne.s32.totalorder %s94, %s95
    %p106 = scmp.eq.s32.totalorder %s18, 0
    %p107 = por %p105, %p106
    %p108 = scmp.ne.s32.totalorder %s94, %s95
    %p109 = scmp.eq.s32.totalorder %s19, 1
    %p110 = por %p108, %p109
    %p112 = scmp.ne.s32.totalorder %s95, %s111
    %p113 = scmp.eq.s32.totalorder %s19, 0
    %p114 = por %p112, %p113
    %s116 = sadd.s32 %s115, 1
    %p119 = scmp.eq.s32.totalorder %s13, 1
    %p120 = scmp.ne.s32.totalorder %s115, %s117
    %p121 = scmp.eq.s32.totalorder %s13, 0
    %p122 = por %p120, %p121
    %p123 = scmp.ne.s32.totalorder %s115, %s117
    %p124 = scmp.eq.s32.totalorder %s18, 1
    %p125 = por %p123, %p124
    %p126 = scmp.ne.s32.totalorder %s117, %s118
    %p127 = scmp.eq.s32.totalorder %s18, 0
    %p128 = por %p126, %p127
    %p129 = scmp.ne.s32.totalorder %s117, %s118
    %p130 = scmp.eq.s32.totalorder %s19, 1
    %p131 = por %p129, %p130
    %p133 = scmp.ne.s32.totalorder %s118, %s132
    %p134 = scmp.eq.s32.totalorder %s19, 0
    %p135 = por %p133, %p134
    %s137 = sadd.s32 %s136, 1
    %p140 = scmp.eq.s32.totalorder %s13, 1
    %p141 = scmp.ne.s32.totalorder %s136, %s138
    %p142 = scmp.eq.s32.totalorder %s13, 0
    %p143 = por %p141, %p142
    %p144 = scmp.ne.s32.totalorder %s136, %s138
    %p145 = scmp.eq.s32.totalorder %s18, 1
    %p146 = por %p144, %p145
    %p147 = scmp.ne.s32.totalorder %s138, %s139
    %p148 = scmp.eq.s32.totalorder %s18, 0
    %p149 = por %p147, %p148
    %p150 = scmp.ne.s32.totalorder %s138, %s139
    %p151 = scmp.eq.s32.totalorder %s19, 1
    %p152 = por %p150, %p151
    %p154 = scmp.ne.s32.totalorder %s139, %s153
    %p155 = scmp.eq.s32.totalorder %s19, 0
    %p156 = por %p154, %p155
    %s157 = ssub.s32 %s13, %s20
    %p158 = scmp.eq.s32.totalorder %s157, 0
    %s160 = sadd.s32 %s159, 1
    %s161 = scalar_select %p158, %s159, %s160
    %p164 = pneg %p158
    %p165 = scmp.eq.s32.totalorder %s13, 1
    %p166 = por %p164, %p165
    %p167 = scmp.ne.s32.totalorder %s159, %s162
    %p168 = scmp.eq.s32.totalorder %s13, 0
    %p169 = por %p167, %p168
    %p170 = scmp.ne.s32.totalorder %s159, %s162
    %p171 = scmp.eq.s32.totalorder %s18, 1
    %p172 = por %p170, %p171
    %p173 = scmp.ne.s32.totalorder %s162, %s163
    %p174 = scmp.eq.s32.totalorder %s18, 0
    %p175 = por %p173, %p174
    %p176 = scmp.ne.s32.totalorder %s162, %s163
    %p177 = scmp.eq.s32.totalorder %s19, 1
    %p178 = por %p176, %p177
    %p180 = scmp.ne.s32.totalorder %s163, %s179
    %p181 = scmp.eq.s32.totalorder %s19, 0
    %p182 = por %p180, %p181
    %s183 = ssub.s32 %s13, %s20
    %p184 = scmp.eq.s32.totalorder %s183, 0
    %s186 = sadd.s32 %s185, 1
    %s187 = scalar_select %p184, %s185, %s186
    %p190 = pneg %p184
    %p191 = scmp.eq.s32.totalorder %s13, 1
    %p192 = por %p190, %p191
    %p193 = scmp.ne.s32.totalorder %s185, %s188
    %p194 = scmp.eq.s32.totalorder %s13, 0
    %p195 = por %p193, %p194
    %p196 = scmp.ne.s32.totalorder %s185, %s188
    %p197 = scmp.eq.s32.totalorder %s18, 1
    %p198 = por %p196, %p197
    %p199 = scmp.ne.s32.totalorder %s188, %s189
    %p200 = scmp.eq.s32.totalorder %s18, 0
    %p201 = por %p199, %p200
    %p202 = scmp.ne.s32.totalorder %s188, %s189
    %p203 = scmp.eq.s32.totalorder %s19, 1
    %p204 = por %p202, %p203
    %p206 = scmp.ne.s32.totalorder %s189, %s205
    %p207 = scmp.eq.s32.totalorder %s19, 0
    %p208 = por %p206, %p207
    %p209 = scmp.le.s32.totalorder 1, %s13
    %p210 = scmp.lt.s32.totalorder %s13, 3
    %p211 = pnand %p209, %p210
    %p212 = pneg %p211
    // Predicated region
    $region9: #{_lambda_.17} parent=5 // pred_check
      _
    $region10: #{_lambda_.17} parent=5 // pred_check_branch
      %214 = sbr.rel (%p211) target = $region12
    $region11: #{_lambda_.17} parent=5 // pred_region
      %s215 = ssub.s32 %s13, 1
      // Predicated region
      $region13: #{_lambda_.17} parent=11 // pred_check
        %p216 = pneg %p60
      $region14: #{_lambda_.17} parent=11 // pred_check_branch
        %218 = sbr.rel (%p216) target = $region16
      $region15: #{_lambda_.17} parent=11 // pred_region
        _
      $region16: #{_lambda_.17} parent=11 // pred_fallthru
        _
      // Predicated region
      $region17: #{_lambda_.17} parent=11 // pred_check
        %p219 = pneg %p81
      $region18: #{_lambda_.17} parent=11 // pred_check_branch
        %221 = sbr.rel (%p219) target = $region20
      $region19: #{_lambda_.17} parent=11 // pred_region
        _
      $region20: #{_lambda_.17} parent=11 // pred_fallthru
        _
      // Predicated region
      $region21: #{_lambda_.17} parent=11 // pred_check
        %p222 = pneg %p128
      $region22: #{_lambda_.17} parent=11 // pred_check_branch
        %224 = sbr.rel (%p222) target = $region24
      $region23: #{_lambda_.17} parent=11 // pred_region
        _
      $region24: #{_lambda_.17} parent=11 // pred_fallthru
        _
      // Predicated region
      $region25: #{_lambda_.17} parent=11 // pred_check
        %p225 = pneg %p149
      $region26: #{_lambda_.17} parent=11 // pred_check_branch
        %227 = sbr.rel (%p225) target = $region28
      $region27: #{_lambda_.17} parent=11 // pred_region
        _
      $region28: #{_lambda_.17} parent=11 // pred_fallthru
        _
    $region12: #{_lambda_.17} parent=5 // pred_fallthru
      _
    %p228 = scmp.lt.s32.totalorder %s13, 2
    // Predicated region
    $region29: #{_lambda_.17} parent=5 // pred_check
      %p229 = pneg %p228
    $region30: #{_lambda_.17} parent=5 // pred_check_branch
      %231 = sbr.rel (%p229) target = $region32
    $region31: #{_lambda_.17} parent=5 // pred_region
      // Predicated region
      $region33: #{_lambda_.17} parent=31 // pred_check
        %p232 = pneg %p33
      $region34: #{_lambda_.17} parent=31 // pred_check_branch
        %234 = sbr.rel (%p232) target = $region36
      $region35: #{_lambda_.17} parent=31 // pred_region
        %p235 = scmp.lt.s32.totalorder %s13, 1
        %s236 = scalar_select %p235, %s13, 1
        %s237 = smul.addr %s236, 3
        %s238 = smul.addr %s237, 8
        %s239 = scalar_lea.vmem %s0, %s238
      $region36: #{_lambda_.17} parent=31 // pred_fallthru
        _
      // Predicated region
      $region37: #{_lambda_.17} parent=31 // pred_check
        %p240 = pneg %p101
      $region38: #{_lambda_.17} parent=31 // pred_check_branch
        %242 = sbr.rel (%p240) target = $region40
      $region39: #{_lambda_.17} parent=31 // pred_region
        %p243 = scmp.lt.s32.totalorder %s13, 1
        %s244 = scalar_select %p243, %s13, 1
        %s245 = smul.addr %s244, 2
        %s246 = smul.addr %s245, 8
        %s247 = scalar_lea.vmem %s3, %s246
      $region40: #{_lambda_.17} parent=31 // pred_fallthru
        _
      // Predicated region
      $region41: #{_lambda_.17} parent=31 // pred_check
        %p248 = pneg %p169
      $region42: #{_lambda_.17} parent=31 // pred_check_branch
        %250 = sbr.rel (%p248) target = $region44
      $region43: #{_lambda_.17} parent=31 // pred_region
        %p251 = scmp.lt.s32.totalorder %s13, 1
        %s252 = scalar_select %p251, %s13, 1
        %s253 = smul.addr %s252, 2
        %s254 = smul.addr %s253, 8
        %s255 = scalar_lea.vmem %s6, %s254
      $region44: #{_lambda_.17} parent=31 // pred_fallthru
        _
    $region32: #{_lambda_.17} parent=5 // pred_fallthru
      _
    %p256 = scmp.le.s32.totalorder 1, %s13
    %p257 = scmp.lt.s32.totalorder %s13, 3
    %p258 = pnand %p256, %p257
    %p259 = pneg %p258
    // Predicated region
    $region45: #{_lambda_.17} parent=5 // pred_check
      _
    $region46: #{_lambda_.17} parent=5 // pred_check_branch
      %261 = sbr.rel (%p258) target = $region48
    $region47: #{_lambda_.17} parent=5 // pred_region
      %s262 = ssub.s32 %s13, 1
      %p263 = scmp.lt.s32.totalorder %s18, 1
      %s264 = scalar_select %p263, %s18, 1
      %s265 = smul.addr %s264, 3
      %s266 = smul.addr %s265, 8
      %s267 = scalar_lea.vmem %s0, %s266
      %p268 = pneg %p39
      %p269 = pneg %p36
      %p270 = pneg %p60
      %p271 = pneg %p57
      %p272 = pneg %p81
      %p273 = pneg %p78
      %p274 = scmp.lt.s32.totalorder %s18, 1
      %s275 = scalar_select %p274, %s18, 1
      %s276 = smul.addr %s275, 2
      %s277 = smul.addr %s276, 8
      %s278 = scalar_lea.vmem %s3, %s277
      %p279 = pneg %p107
      %p280 = pneg %p104
      %p281 = pneg %p128
      %p282 = pneg %p125
      %p283 = pneg %p149
      %p284 = pneg %p146
      %p285 = scmp.lt.s32.totalorder %s18, 1
      %s286 = scalar_select %p285, %s18, 1
      %s287 = smul.addr %s286, 2
      %s288 = smul.addr %s287, 8
      %s289 = scalar_lea.vmem %s6, %s288
      %p290 = pneg %p175
      %p291 = pneg %p172
      %p292 = pneg %p201
      %p293 = pneg %p198
      %p294 = scmp.lt.s32.totalorder %s18, 1
      %s295 = scalar_select %p294, %s18, 1
      %s296 = smul.addr %s295, 2
      %s297 = smul.addr %s296, 8
      %s298 = scalar_lea.vmem %s7, %s297
      %p299 = scmp.lt.s32.totalorder %s18, 1
      %s300 = scalar_select %p299, %s18, 1
      %s301 = smul.addr %s300, 3
      %s302 = smul.addr %s301, 8
      %s303 = scalar_lea.vmem %s0, %s302
      %p304 = scmp.lt.s32.totalorder %s18, 1
      %s305 = scalar_select %p304, %s18, 1
      %s306 = smul.addr %s305, 2
      %s307 = smul.addr %s306, 8
      %s308 = scalar_lea.vmem %s3, %s307
      %p309 = scmp.lt.s32.totalorder %s18, 1
      %s310 = scalar_select %p309, %s18, 1
      %s311 = smul.addr %s310, 2
      %s312 = smul.addr %s311, 8
      %s313 = scalar_lea.vmem %s6, %s312
      %p314 = scmp.lt.s32.totalorder %s18, 1
      %s315 = scalar_select %p314, %s18, 1
      %s316 = smul.addr %s315, 2
      %s317 = smul.addr %s316, 8
      %s318 = scalar_lea.vmem %s7, %s317
      %v320 = vld [vmem:[%s303] sm:$0xff]
      %v321 = vld [vmem:[%s303 + $0x8] sm:$0xff]
      %v322 = vpack.c.bf16 %v321, %v320
      %v323 = vld [vmem:[%s1] sm:$0xff]
      %v324 = vld [vmem:[%s1 + $0x8] sm:$0xff]
      %v325 = vld [vmem:[%s1 + $0x10] sm:$0xff]
      %v326 = vld [vmem:[%s1 + $0x18] sm:$0xff]
      %v327 = vld [vmem:[%s1 + $0x20] sm:$0xff]
      %v328 = vld [vmem:[%s1 + $0x28] sm:$0xff]
      %v329 = vld [vmem:[%s1 + $0x30] sm:$0xff]
      %v330 = vld [vmem:[%s1 + $0x38] sm:$0xff]
      %v331 = vpack.c.bf16 %v324, %v323
      %v332 = vpack.c.bf16 %v326, %v325
      %v333 = vpack.c.bf16 %v328, %v327
      %v334 = vpack.c.bf16 %v330, %v329
      %v335 = vld [vmem:[%s303 + $0x1] sm:$0xff]
      %v336 = vld [vmem:[%s303 + $0x9] sm:$0xff]
      %v337 = vpack.c.bf16 %v336, %v335
      %s338 = scalar_lea.vmem %s1, 64
      %v339 = vld [vmem:[%s338] sm:$0xff]
      %v340 = vld [vmem:[%s338 + $0x8] sm:$0xff]
      %v341 = vld [vmem:[%s338 + $0x10] sm:$0xff]
      %v342 = vld [vmem:[%s338 + $0x18] sm:$0xff]
      %v343 = vld [vmem:[%s338 + $0x20] sm:$0xff]
      %v344 = vld [vmem:[%s338 + $0x28] sm:$0xff]
      %v345 = vld [vmem:[%s338 + $0x30] sm:$0xff]
      %v346 = vld [vmem:[%s338 + $0x38] sm:$0xff]
      %v347 = vpack.c.bf16 %v340, %v339
      %v348 = vpack.c.bf16 %v342, %v341
      %v349 = vpack.c.bf16 %v344, %v343
      %v350 = vpack.c.bf16 %v346, %v345
      %vm351 = vcmask 523264
      %v353 = vsel %vm351, %v337, 0
      %355 = vmatprep.subr.bf16.mxu0 0
      %356 = vmatpush1.bf16.msra.mxu0 0
      %357 = vmatprep.subr.bf16.mxu0 0
      %358 = vmatpush1.bf16.msra.mxu0 0
      %359 = vmatprep.subr.bf16.mxu0 0
      %360 = vmatpush1.bf16.msra.mxu0 0
      %361 = vmatprep.subr.bf16.mxu0 0
      %362 = vmatpush1.bf16.msra.mxu0 0
      %363 = vmatprep.subr.bf16.mxu0 0
      %364 = vmatpush1.bf16.msra.mxu0 %v350
      %365 = vmatprep.subr.bf16.mxu0 0
      %366 = vmatpush1.bf16.msra.mxu0 %v349
      %367 = vmatprep.subr.bf16.mxu0 0
      %368 = vmatpush1.bf16.msra.mxu0 %v348
      %369 = vmatprep.subr.bf16.mxu0 0
      %370 = vmatpush1.bf16.msra.mxu0 %v347
      %371 = vmatprep.subr.bf16.mxu0 0
      %372 = vmatpush2.bf16.msra.mxu0 0
      %373 = vmatprep.subr.bf16.mxu0 0
      %374 = vmatpush2.bf16.msra.mxu0 0
      %375 = vmatprep.subr.bf16.mxu0 0
      %376 = vmatpush2.bf16.msra.mxu0 0
      %377 = vmatprep.subr.bf16.mxu0 0
      %378 = vmatpush2.bf16.msra.mxu0 0
      %379 = vmatprep.subr.bf16.mxu0 0
      %380 = vmatpush2.bf16.msra.mxu0 0
      %381 = vmatprep.subr.bf16.mxu0 0
      %382 = vmatpush2.bf16.msra.mxu0 0
      %383 = vmatprep.subr.bf16.mxu0 0
      %384 = vmatpush2.bf16.msra.mxu0 0
      %385 = vmatprep.subr.bf16.mxu0 0
      %386 = vmatpush2.bf16.msra.mxu0 0
      %387 = vmatprep.mubr.bf16.mxu0 0
      %388 = vmatmul.mubr.bf16.gmra.mxu0 %v353
      %v389 = vpop.f32.mrf.mxu0
      %v390 = vadd.f32 0.0, %v389
      %v391 = vpop.f32.mrf.mxu0
      %v392 = vpop.f32.mrf.mxu0
      %v393 = vadd.f32 0.0, %v392
      %v394 = vpop.f32.mrf.mxu0
      %395 = vdwg.mxu0
      %v397 = vsel %vm351, %v322, 0
      %399 = vmatprep.subr.bf16.mxu0 0
      %400 = vmatpush1.bf16.msra.mxu0 0
      %401 = vmatprep.subr.bf16.mxu0 0
      %402 = vmatpush1.bf16.msra.mxu0 0
      %403 = vmatprep.subr.bf16.mxu0 0
      %404 = vmatpush1.bf16.msra.mxu0 0
      %405 = vmatprep.subr.bf16.mxu0 0
      %406 = vmatpush1.bf16.msra.mxu0 0
      %407 = vmatprep.subr.bf16.mxu0 0
      %408 = vmatpush1.bf16.msra.mxu0 %v334
      %409 = vmatprep.subr.bf16.mxu0 0
      %410 = vmatpush1.bf16.msra.mxu0 %v333
      %411 = vmatprep.subr.bf16.mxu0 0
      %412 = vmatpush1.bf16.msra.mxu0 %v332
      %413 = vmatprep.subr.bf16.mxu0 0
      %414 = vmatpush1.bf16.msra.mxu0 %v331
      %415 = vmatprep.subr.bf16.mxu0 0
      %416 = vmatpush2.bf16.msra.mxu0 0
      %417 = vmatprep.subr.bf16.mxu0 0
      %418 = vmatpush2.bf16.msra.mxu0 0
      %419 = vmatprep.subr.bf16.mxu0 0
      %420 = vmatpush2.bf16.msra.mxu0 0
      %421 = vmatprep.subr.bf16.mxu0 0
      %422 = vmatpush2.bf16.msra.mxu0 0
      %423 = vmatprep.subr.bf16.mxu0 0
      %424 = vmatpush2.bf16.msra.mxu0 0
      %425 = vmatprep.subr.bf16.mxu0 0
      %426 = vmatpush2.bf16.msra.mxu0 0
      %427 = vmatprep.subr.bf16.mxu0 0
      %428 = vmatpush2.bf16.msra.mxu0 0
      %429 = vmatprep.subr.bf16.mxu0 0
      %430 = vmatpush2.bf16.msra.mxu0 0
      %431 = vmatprep.mubr.bf16.mxu0 0
      %432 = vmatmul.mubr.bf16.gmra.mxu0 %v397
      %v433 = vpop.f32.mrf.mxu0
      %v434 = vadd.f32 %v390, %v433
      %v435 = vpop.f32.mrf.mxu0
      %v436 = vpop.f32.mrf.mxu0
      %v437 = vadd.f32 %v393, %v436
      %v438 = vpop.f32.mrf.mxu0
      %439 = vdwg.mxu0
      %v440 = vld [vmem:[%s303 + $0x2] sm:$0xff]
      %v441 = vld [vmem:[%s303 + $0xa] sm:$0xff]
      %v442 = vpack.c.bf16 %v441, %v440
      %s443 = scalar_lea.vmem %s1, 128
      %v444 = vld [vmem:[%s443] sm:$0xff]
      %v445 = vld [vmem:[%s443 + $0x8] sm:$0xff]
      %v446 = vld [vmem:[%s443 + $0x10] sm:$0xff]
      %v447 = vld [vmem:[%s443 + $0x18] sm:$0xff]
      %v448 = vld [vmem:[%s443 + $0x20] sm:$0xff]
      %v449 = vld [vmem:[%s443 + $0x28] sm:$0xff]
      %v450 = vld [vmem:[%s443 + $0x30] sm:$0xff]
      %v451 = vld [vmem:[%s443 + $0x38] sm:$0xff]
      %v452 = vpack.c.bf16 %v445, %v444
      %v453 = vpack.c.bf16 %v447, %v446
      %v454 = vpack.c.bf16 %v449, %v448
      %v455 = vpack.c.bf16 %v451, %v450
      %v457 = vsel %vm351, %v442, 0
      %459 = vmatprep.subr.bf16.mxu0 0
      %460 = vmatpush1.bf16.msra.mxu0 0
      %461 = vmatprep.subr.bf16.mxu0 0
      %462 = vmatpush1.bf16.msra.mxu0 0
      %463 = vmatprep.subr.bf16.mxu0 0
      %464 = vmatpush1.bf16.msra.mxu0 0
      %465 = vmatprep.subr.bf16.mxu0 0
      %466 = vmatpush1.bf16.msra.mxu0 0
      %467 = vmatprep.subr.bf16.mxu0 0
      %468 = vmatpush1.bf16.msra.mxu0 %v455
      %469 = vmatprep.subr.bf16.mxu0 0
      %470 = vmatpush1.bf16.msra.mxu0 %v454
      %471 = vmatprep.subr.bf16.mxu0 0
      %472 = vmatpush1.bf16.msra.mxu0 %v453
      %473 = vmatprep.subr.bf16.mxu0 0
      %474 = vmatpush1.bf16.msra.mxu0 %v452
      %475 = vmatprep.subr.bf16.mxu0 0
      %476 = vmatpush2.bf16.msra.mxu0 0
      %477 = vmatprep.subr.bf16.mxu0 0
      %478 = vmatpush2.bf16.msra.mxu0 0
      %479 = vmatprep.subr.bf16.mxu0 0
      %480 = vmatpush2.bf16.msra.mxu0 0
      %481 = vmatprep.subr.bf16.mxu0 0
      %482 = vmatpush2.bf16.msra.mxu0 0
      %483 = vmatprep.subr.bf16.mxu0 0
      %484 = vmatpush2.bf16.msra.mxu0 0
      %485 = vmatprep.subr.bf16.mxu0 0
      %486 = vmatpush2.bf16.msra.mxu0 0
      %487 = vmatprep.subr.bf16.mxu0 0
      %488 = vmatpush2.bf16.msra.mxu0 0
      %489 = vmatprep.subr.bf16.mxu0 0
      %490 = vmatpush2.bf16.msra.mxu0 0
      %491 = vmatprep.mubr.bf16.mxu0 0
      %492 = vmatmul.mubr.bf16.gmra.mxu0 %v457
      %v493 = vpop.f32.mrf.mxu0
      %v494 = vadd.f32 0.0, %v493
      %v495 = vpop.f32.mrf.mxu0
      %v496 = vpop.f32.mrf.mxu0
      %v497 = vadd.f32 0.0, %v496
      %v498 = vpop.f32.mrf.mxu0
      %499 = vdwg.mxu0
      %v500 = vadd.f32 %v434, %v494
      %v501 = vadd.f32 %v437, %v497
      %v502 = vld [vmem:[%s308] sm:$0xff]
      %v503 = vld [vmem:[%s308 + $0x8] sm:$0xff]
      %v504 = vadd.f32 %v502, %v500
      %v505 = vadd.f32 %v503, %v501
      %v506 = vld [vmem:[%s2] sm:$0x1]
      %v508 = vlaneseq
      %v509 = vshrl.u32 %v508, 7
      %v510 = vsub.s32 0, %v509
      %v511 = vrot.slane %v506, %v510
      %v513 = vadd.f32 %v504, %v511
      %v514 = vadd.f32 %v505, %v511
      %vm515 = vcmask 261120
      %v516 = vsel %vm515, %v513, 0.0
      %517 = vadd.xlane.f32.xlu0 %v516
      %v518 = vpop.xlane.xlu0 %517
      %v519 = vsel %vm515, %v514, 0.0
      %520 = vadd.xlane.f32.xlu0 %v519
      %v521 = vpop.xlane.xlu0 %520
      %v522 = vrcp.pop 32.0
      %v523 = vmul.f32 %v518, %v522
      %v524 = vmul.f32 %v521, %v522
      %v525 = vsub.f32 %v513, %v523
      %v526 = vsub.f32 %v514, %v524
      %v527 = vmul.f32 %v525, %v525
      %v528 = vmul.f32 %v526, %v526
      %v529 = vsel %vm515, %v527, 0.0
      %530 = vadd.xlane.f32.xlu0 %v529
      %v531 = vpop.xlane.xlu0 %530
      %v532 = vsel %vm515, %v528, 0.0
      %533 = vadd.xlane.f32.xlu0 %v532
      %v534 = vpop.xlane.xlu0 %533
      %v535 = vmul.f32 %v531, %v522
      %v536 = vmul.f32 %v534, %v522
      %v537 = vadd.f32 %v535, 1e-05
      %v538 = vadd.f32 %v536, 1e-05
      %v539 = vrsqrt.pop %v537
      %v540 = vrsqrt.pop %v538
      %v541 = vmul.f32 %v525, %v539
      %v542 = vmul.f32 %v526, %v540
      %v543 = vld [vmem:[%s4] sm:$0x1]
      %v545 = vlaneseq
      %v546 = vshrl.u32 %v545, 7
      %v547 = vsub.s32 0, %v546
      %v548 = vrot.slane %v543, %v547
      %v550 = vmul.f32 %v541, %v548
      %v551 = vmul.f32 %v542, %v548
      %v552 = vld [vmem:[%s5] sm:$0x1]
      %v554 = vlaneseq
      %v555 = vshrl.u32 %v554, 7
      %v556 = vsub.s32 0, %v555
      %v557 = vrot.slane %v552, %v556
      %v559 = vadd.f32 %v550, %v557
      %v560 = vadd.f32 %v551, %v557
      %v561 = vld [vmem:[%s313] sm:$0xff]
      %v562 = vld [vmem:[%s313 + $0x8] sm:$0xff]
      %564 = vset.pattern.permute.xlu0 0
      %565 = vperm.xlu0 %564, %v561
      %v566 = vpop.permute.xlu0 %565
      %569 = vset.pattern.permute.xlu0 0
      %570 = vperm.xlu0 %569, %v562
      %v571 = vpop.permute.xlu0 %570
      %v573 = vmul.f32 %v559, %v566
      %v574 = vmul.f32 %v560, %v571
      %575 = vst.msk [vmem:[%s318] sm:$0xff] %vm515, %v573
      %576 = vst.msk [vmem:[%s318 + $0x8] sm:$0xff] %vm515, %v574
      %p577 = scmp.lt.s32.totalorder %s18, 1
      %s578 = scalar_select %p577, %s18, 1
      %s579 = smul.addr %s578, 2
      %s580 = smul.addr %s579, 8
      %s581 = scalar_lea.vmem %s7, %s580
      // Predicated region
      $region49: #{_lambda_.17} parent=47 // pred_check
        %p582 = pneg %p198
      $region50: #{_lambda_.17} parent=47 // pred_check_branch
        %584 = sbr.rel (%p582) target = $region52
      $region51: #{_lambda_.17} parent=47 // pred_region
        _
      $region52: #{_lambda_.17} parent=47 // pred_fallthru
        _
    $region48: #{_lambda_.17} parent=5 // pred_fallthru
      _
    %p585 = scmp.le.s32.totalorder 2, %s13
    // Predicated region
    $region53: #{_lambda_.17} parent=5 // pred_check
      %p586 = pneg %p585
    $region54: #{_lambda_.17} parent=5 // pred_check_branch
      %588 = sbr.rel (%p586) target = $region56
    $region55: #{_lambda_.17} parent=5 // pred_region
      %s589 = ssub.s32 %s13, 2
      // Predicated region
      $region57: #{_lambda_.17} parent=55 // pred_check
        %p590 = pneg %p204
      $region58: #{_lambda_.17} parent=55 // pred_check_branch
        %592 = sbr.rel (%p590) target = $region60
      $region59: #{_lambda_.17} parent=55 // pred_region
        %p593 = scmp.lt.s32.totalorder %s19, 1
        %s594 = scalar_select %p593, %s19, 1
        %s595 = smul.addr %s594, 2
        %s596 = smul.addr %s595, 8
        %s597 = scalar_lea.vmem %s7, %s596
      $region60: #{_lambda_.17} parent=55 // pred_fallthru
        _
    $region56: #{_lambda_.17} parent=5 // pred_fallthru
      _
  $region6: #{_lambda_.17} parent=0 // loop_footer
    %s17 = sadd.s32 1, %s13
  $region7: #{_lambda_.17} parent=0 // loop_footer_branch
    %12 = sbr.rel target = $region3
  $region8: #{_lambda_.17} parent=0 // loop_exit
    _

// kernel: _lambda_.14
$region0: #{_lambda_.14}
  #allocation0 [shape = 'u32[]', space=smem, size = 0x4, offset = 0x4, fixed_abs, tag = 'smem constant byte address 0x4 - core index']
  #allocation1 [shape = 'u32[144,128]{1,0:T(1,128)}', space=vmem, size = 0x12000, scoped, tag = 'internal scratch']
  #allocation2 [shape = 's32[1]{0}', space=sflag, size = 0x4, scoped, tag = 'scoped memory for _lambda_.14']
  #allocation3 [shape = 'u8[512]{0}', space=smem, size = 0x200, scoped, tag = 'prefetched SMEM operand 0']
  %s0 = inlined_call_operand.vmem [shape: s32[2], index: 0, kind: input, shape index: {}]
  %s1 = inlined_call_operand.vmem [shape: f32[2,16,96], index: 1, kind: input, shape index: {}]
  %s2 = inlined_call_operand.vmem [shape: f32[21,16], index: 2, kind: input, shape index: {}]
  %s3 = inlined_call_operand.vmem [shape: f32[21,16], index: 3, kind: input, shape index: {}]
  %s4 = inlined_call_operand.vmem [shape: f32[2,16,32], index: 4, kind: output, shape index: {}]
  %s5 = sld [smem:[#allocation0]]
  $region45: #{_lambda_.14} parent=0
    _
  %s7 = ssub.s32 1, %s5
  %s8 = scalar_select 0, %s7, %s5
  %s9 = sshll.u32 %s0, 4
  %s10 = int_to_ptr.vmem [resolvable:$true] %s9
  %12 = dma.vmem_to_smem %s10, 16, [#allocation3], [#allocation2]
  %13 = dma.done [#allocation2], 16
  %14 = sfence
  loop: start=0, step=1, limit=4
  $region2: #{_lambda_.14} parent=0 // loop_pre_header
    _
  $region3: #{_lambda_.14} parent=0 // loop_header
    %s16 = sphi 0, %s20
    %p17 = scmp.ge.s32.totalorder %s16, 4
    %s26 = sphi 0, %s28
    %s29 = sphi 0, %s26
    %s30 = sphi 0, %s29
    %s46 = sphi 0, %s30
    %s50 = sphi 0, %s50
    %s52 = sphi 0, %s50
    %s53 = sphi 0, %s52
    %s67 = sphi 0, %s53
    %s71 = sphi 0, %s71
    %s73 = sphi 0, %s71
    %s74 = sphi 0, %s73
    %s88 = sphi 0, %s74
    %s94 = sphi 0, %s96
    %s97 = sphi 0, %s94
    %s98 = sphi 0, %s97
    %s114 = sphi 0, %s98
  $region4: #{_lambda_.14} parent=0 // loop_header_branch
    %19 = sbr.rel (%p17) target = $region8
  $region5: #{_lambda_.14} parent=0 // loop_body
    %s21 = ssub.s32 %s16, 1
    %s22 = ssub.s32 %s16, 2
    %s23 = sadd.s32 %s16, 1
    %s24 = ssub.s32 %s16, %s23
    %p25 = scmp.eq.s32.totalorder %s24, 0
    %s27 = sadd.s32 %s26, 1
    %s28 = scalar_select %p25, %s26, %s27
    %p31 = pneg %p25
    %p32 = scmp.eq.s32.totalorder %s16, 1
    %p33 = por %p31, %p32
    %p34 = scmp.ne.s32.totalorder %s26, %s29
    %p35 = scmp.eq.s32.totalorder %s16, 0
    %p36 = por %p34, %p35
    %p37 = scmp.ne.s32.totalorder %s26, %s29
    %p38 = scmp.eq.s32.totalorder %s21, 1
    %p39 = por %p37, %p38
    %p40 = scmp.ne.s32.totalorder %s29, %s30
    %p41 = scmp.eq.s32.totalorder %s21, 0
    %p42 = por %p40, %p41
    %p43 = scmp.ne.s32.totalorder %s29, %s30
    %p44 = scmp.eq.s32.totalorder %s22, 1
    %p45 = por %p43, %p44
    %p47 = scmp.ne.s32.totalorder %s30, %s46
    %p48 = scmp.eq.s32.totalorder %s22, 0
    %p49 = por %p47, %p48
    %s51 = sadd.s32 %s50, 1
    %p54 = scmp.eq.s32.totalorder %s16, 1
    %p55 = scmp.ne.s32.totalorder %s50, %s52
    %p56 = scmp.eq.s32.totalorder %s16, 0
    %p57 = por %p55, %p56
    %p58 = scmp.ne.s32.totalorder %s50, %s52
    %p59 = scmp.eq.s32.totalorder %s21, 1
    %p60 = por %p58, %p59
    %p61 = scmp.ne.s32.totalorder %s52, %s53
    %p62 = scmp.eq.s32.totalorder %s21, 0
    %p63 = por %p61, %p62
    %p64 = scmp.ne.s32.totalorder %s52, %s53
    %p65 = scmp.eq.s32.totalorder %s22, 1
    %p66 = por %p64, %p65
    %p68 = scmp.ne.s32.totalorder %s53, %s67
    %p69 = scmp.eq.s32.totalorder %s22, 0
    %p70 = por %p68, %p69
    %s72 = sadd.s32 %s71, 1
    %p75 = scmp.eq.s32.totalorder %s16, 1
    %p76 = scmp.ne.s32.totalorder %s71, %s73
    %p77 = scmp.eq.s32.totalorder %s16, 0
    %p78 = por %p76, %p77
    %p79 = scmp.ne.s32.totalorder %s71, %s73
    %p80 = scmp.eq.s32.totalorder %s21, 1
    %p81 = por %p79, %p80
    %p82 = scmp.ne.s32.totalorder %s73, %s74
    %p83 = scmp.eq.s32.totalorder %s21, 0
    %p84 = por %p82, %p83
    %p85 = scmp.ne.s32.totalorder %s73, %s74
    %p86 = scmp.eq.s32.totalorder %s22, 1
    %p87 = por %p85, %p86
    %p89 = scmp.ne.s32.totalorder %s74, %s88
    %p90 = scmp.eq.s32.totalorder %s22, 0
    %p91 = por %p89, %p90
    %s92 = ssub.s32 %s16, %s23
    %p93 = scmp.eq.s32.totalorder %s92, 0
    %s95 = sadd.s32 %s94, 1
    %s96 = scalar_select %p93, %s94, %s95
    %p99 = pneg %p93
    %p100 = scmp.eq.s32.totalorder %s16, 1
    %p101 = por %p99, %p100
    %p102 = scmp.ne.s32.totalorder %s94, %s97
    %p103 = scmp.eq.s32.totalorder %s16, 0
    %p104 = por %p102, %p103
    %p105 = scmp.ne.s32.totalorder %s94, %s97
    %p106 = scmp.eq.s32.totalorder %s21, 1
    %p107 = por %p105, %p106
    %p108 = scmp.ne.s32.totalorder %s97, %s98
    %p109 = scmp.eq.s32.totalorder %s21, 0
    %p110 = por %p108, %p109
    %p111 = scmp.ne.s32.totalorder %s97, %s98
    %p112 = scmp.eq.s32.totalorder %s22, 1
    %p113 = por %p111, %p112
    %p115 = scmp.ne.s32.totalorder %s98, %s114
    %p116 = scmp.eq.s32.totalorder %s22, 0
    %p117 = por %p115, %p116
    %p118 = scmp.le.s32.totalorder 1, %s16
    %p119 = scmp.lt.s32.totalorder %s16, 3
    %p120 = pnand %p118, %p119
    %p121 = pneg %p120
    // Predicated region
    $region9: #{_lambda_.14} parent=5 // pred_check
      _
    $region10: #{_lambda_.14} parent=5 // pred_check_branch
      %123 = sbr.rel (%p120) target = $region12
    $region11: #{_lambda_.14} parent=5 // pred_region
      %s124 = ssub.s32 %s16, 1
      // Predicated region
      $region13: #{_lambda_.14} parent=11 // pred_check
        %p125 = pneg %p63
      $region14: #{_lambda_.14} parent=11 // pred_check_branch
        %127 = sbr.rel (%p125) target = $region16
      $region15: #{_lambda_.14} parent=11 // pred_region
        _
      $region16: #{_lambda_.14} parent=11 // pred_fallthru
        _
      // Predicated region
      $region17: #{_lambda_.14} parent=11 // pred_check
        %p128 = pneg %p84
      $region18: #{_lambda_.14} parent=11 // pred_check_branch
        %130 = sbr.rel (%p128) target = $region20
      $region19: #{_lambda_.14} parent=11 // pred_region
        _
      $region20: #{_lambda_.14} parent=11 // pred_fallthru
        _
    $region12: #{_lambda_.14} parent=5 // pred_fallthru
      _
    %p131 = scmp.lt.s32.totalorder %s16, 2
    // Predicated region
    $region21: #{_lambda_.14} parent=5 // pred_check
      %p132 = pneg %p131
    $region22: #{_lambda_.14} parent=5 // pred_check_branch
      %134 = sbr.rel (%p132) target = $region24
    $region23: #{_lambda_.14} parent=5 // pred_region
      // Predicated region
      $region25: #{_lambda_.14} parent=23 // pred_check
        %p135 = pneg %p36
      $region26: #{_lambda_.14} parent=23 // pred_check_branch
        %137 = sbr.rel (%p135) target = $region28
      $region27: #{_lambda_.14} parent=23 // pred_region
        %p138 = scmp.lt.s32.totalorder %s16, 1
        %s139 = scalar_select %p138, %s16, 1
        %s140 = smul.addr %s139, 2
        %s141 = smul.addr %s140, 8
        %s142 = scalar_lea.vmem %s1, %s141
      $region28: #{_lambda_.14} parent=23 // pred_fallthru
        _
    $region24: #{_lambda_.14} parent=5 // pred_fallthru
      _
    %p143 = scmp.le.s32.totalorder 1, %s16
    %p144 = scmp.lt.s32.totalorder %s16, 3
    %p145 = pnand %p143, %p144
    %p146 = pneg %p145
    // Predicated region
    $region29: #{_lambda_.14} parent=5 // pred_check
      _
    $region30: #{_lambda_.14} parent=5 // pred_check_branch
      %148 = sbr.rel (%p145) target = $region32
    $region31: #{_lambda_.14} parent=5 // pred_region
      %s149 = ssub.s32 %s16, 1
      %p150 = scmp.lt.s32.totalorder %s21, 1
      %s151 = scalar_select %p150, %s21, 1
      %s152 = smul.addr %s151, 2
      %s153 = smul.addr %s152, 8
      %s154 = scalar_lea.vmem %s1, %s153
      %p155 = pneg %p42
      %p156 = pneg %p39
      %p157 = pneg %p63
      %p158 = pneg %p60
      %p159 = pneg %p84
      %p160 = pneg %p81
      %p161 = pneg %p110
      %p162 = pneg %p107
      %p163 = scmp.lt.s32.totalorder %s21, 1
      %s164 = scalar_select %p163, %s21, 1
      %s165 = smul.addr %s164, 2
      %s166 = smul.addr %s165, 8
      %s167 = scalar_lea.vmem %s4, %s166
      %p168 = scmp.lt.s32.totalorder %s21, 1
      %s169 = scalar_select %p168, %s21, 1
      %s170 = smul.addr %s169, 2
      %s171 = smul.addr %s170, 8
      %s172 = scalar_lea.vmem %s1, %s171
      %p173 = scmp.lt.s32.totalorder %s21, 1
      %s174 = scalar_select %p173, %s21, 1
      %s175 = smul.addr %s174, 2
      %s176 = smul.addr %s175, 8
      %s177 = scalar_lea.vmem %s4, %s176
      %s179 = sld [smem:[#allocation3 + %s21]]
      %v180 = vlaneseq
      %v181 = vshrl.u32 %v180, 7
      %v182 = vadd.s32 %v181, 8
      %v183 = vlaneseq
      %v184 = vand.u32 %v183, 127
      %v185 = vstv %s179
      %vm186 = vcmp.lt.s32.totalorder %v181, %v185
      %vm187 = vcmp.lt.s32.totalorder %v182, %v185
      %vm188 = vcmp.lt.s32.totalorder %v184, %v185
      %vm189 = vmand %vm186, %vm188
      %vm190 = vmand %vm187, %vm188
      %v191 = vsub.s32 %v184, %v181
      %v192 = vsub.s32 %v184, %v182
      %vm193 = vcmp.eq.s32.totalorder %v191, 4294967286
      %vm194 = vcmp.eq.s32.totalorder %v192, 4294967286
      %vm195 = vcmp.eq.s32.totalorder %v191, 4294967287
      %vm196 = vcmp.eq.s32.totalorder %v192, 4294967287
      %vm197 = vcmp.eq.s32.totalorder %v191, 4294967288
      %vm198 = vcmp.eq.s32.totalorder %v192, 4294967288
      %vm199 = vcmp.eq.s32.totalorder %v191, 4294967289
      %vm200 = vcmp.eq.s32.totalorder %v192, 4294967289
      %vm201 = vcmp.eq.s32.totalorder %v191, 4294967290
      %vm202 = vcmp.eq.s32.totalorder %v192, 4294967290
      %vm203 = vcmp.eq.s32.totalorder %v191, 4294967291
      %vm204 = vcmp.eq.s32.totalorder %v192, 4294967291
      %vm205 = vcmp.eq.s32.totalorder %v191, 4294967292
      %vm206 = vcmp.eq.s32.totalorder %v192, 4294967292
      %vm207 = vcmp.eq.s32.totalorder %v191, 4294967293
      %vm208 = vcmp.eq.s32.totalorder %v192, 4294967293
      %vm209 = vcmp.eq.s32.totalorder %v191, 4294967294
      %vm210 = vcmp.eq.s32.totalorder %v192, 4294967294
      %vm211 = vcmp.eq.s32.totalorder %v191, 4294967295
      %vm212 = vcmp.eq.s32.totalorder %v192, 4294967295
      %vm213 = vcmp.eq.s32.totalorder %v191, 0
      %vm214 = vcmp.eq.s32.totalorder %v192, 0
      %vm215 = vcmp.eq.s32.totalorder %v191, 1
      %vm216 = vcmp.eq.s32.totalorder %v192, 1
      %vm217 = vcmp.eq.s32.totalorder %v191, 2
      %vm218 = vcmp.eq.s32.totalorder %v192, 2
      %vm219 = vcmp.eq.s32.totalorder %v191, 3
      %vm220 = vcmp.eq.s32.totalorder %v192, 3
      %vm221 = vcmp.eq.s32.totalorder %v191, 4
      %vm222 = vcmp.eq.s32.totalorder %v192, 4
      %vm223 = vcmp.eq.s32.totalorder %v191, 5
      %vm224 = vcmp.eq.s32.totalorder %v192, 5
      %vm225 = vcmp.eq.s32.totalorder %v191, 6
      %vm226 = vcmp.eq.s32.totalorder %v192, 6
      %vm227 = vcmp.eq.s32.totalorder %v191, 7
      %vm228 = vcmp.eq.s32.totalorder %v192, 7
      %vm229 = vcmp.eq.s32.totalorder %v191, 8
      %vm230 = vcmp.eq.s32.totalorder %v192, 8
      %vm231 = vcmp.eq.s32.totalorder %v191, 9
      %vm232 = vcmp.eq.s32.totalorder %v192, 9
      %vm233 = vcmp.eq.s32.totalorder %v191, 10
      %vm234 = vcmp.eq.s32.totalorder %v192, 10
      %v235 = vld [vmem:[%s2] sm:$0xff]
      %v236 = vld [vmem:[%s2 + $0x8] sm:$0xff]
      %v237 = vld [vmem:[%s2 + $0x10] sm:$0x1f]
      %v238 = vpack.c.bf16 %v236, %v235
      %v239 = vpack.c.bf16 %v237, %v237
      %v240 = vld [vmem:[%s3] sm:$0xff]
      %v241 = vld [vmem:[%s3 + $0x8] sm:$0xff]
      %v242 = vld [vmem:[%s3 + $0x10] sm:$0x1f]
      %v243 = vld [vmem:[%s172] sm:$0xff]
      %v244 = vld [vmem:[%s172 + $0x8] sm:$0xff]
      %v245 = vpack.c.bf16 %v244, %v243
      %247 = vrot.lane.b32.xlu0 %v245, 96
      %v248 = vpop.permute.xlu0 %247
      %vm249 = vcmask 130048
      %v251 = vsel %vm249, %v245, 0
      %v254 = vsel %vm249, %v248, 0
      %256 = vmatprep.subr.bf16.mxu0 0
      %257 = vmatpush1.bf16.xpose.msra.mxu0 0
      %258 = vmatprep.subr.bf16.mxu0 0
      %259 = vmatpush1.bf16.xpose.msra.mxu0 0
      %260 = vmatprep.subr.bf16.mxu0 0
      %261 = vmatpush1.bf16.xpose.msra.mxu0 0
      %262 = vmatprep.subr.bf16.mxu0 0
      %263 = vmatpush1.bf16.xpose.msra.mxu0 0
      %264 = vmatprep.subr.bf16.mxu0 0
      %265 = vmatpush1.bf16.xpose.msra.mxu0 0
      %266 = vmatprep.subr.bf16.mxu0 0
      %267 = vmatpush1.bf16.xpose.msra.mxu0 0
      %268 = vmatprep.subr.bf16.mxu0 0
      %269 = vmatpush1.bf16.xpose.msra.mxu0 0
      %270 = vmatprep.subr.bf16.mxu0 0
      %271 = vmatpush1.bf16.xpose.msra.mxu0 %v254
      %272 = vmatprep.subr.bf16.mxu0 0
      %273 = vmatpush2.bf16.xpose.msra.mxu0 0
      %274 = vmatprep.subr.bf16.mxu0 0
      %275 = vmatpush2.bf16.xpose.msra.mxu0 0
      %276 = vmatprep.subr.bf16.mxu0 0
      %277 = vmatpush2.bf16.xpose.msra.mxu0 0
      %278 = vmatprep.subr.bf16.mxu0 0
      %279 = vmatpush2.bf16.xpose.msra.mxu0 0
      %280 = vmatprep.subr.bf16.mxu0 0
      %281 = vmatpush2.bf16.xpose.msra.mxu0 0
      %282 = vmatprep.subr.bf16.mxu0 0
      %283 = vmatpush2.bf16.xpose.msra.mxu0 0
      %284 = vmatprep.subr.bf16.mxu0 0
      %285 = vmatpush2.bf16.xpose.msra.mxu0 0
      %286 = vmatprep.subr.bf16.mxu0 0
      %287 = vmatpush2.bf16.xpose.msra.mxu0 0
      %288 = vmatprep.mubr.bf16.mxu0 0
      %289 = vmatmul.mubr.bf16.gmra.mxu0 %v251
      %v290 = vpop.f32.mrf.mxu0
      %v291 = vadd.f32 0.0, %v290
      %v292 = vpop.f32.mrf.mxu0
      %v293 = vpop.f32.mrf.mxu0
      %v294 = vadd.f32 0.0, %v293
      %v295 = vpop.f32.mrf.mxu0
      %296 = vdwg.mxu0
      %v297 = vmul.f32 %v291, 0.25
      %v298 = vmul.f32 %v294, 0.25
      %v300 = vsel %vm249, %v238, 0
      %v303 = vsel %vm249, %v239, 0
      %305 = vmatprep.subr.bf16.mxu0 0
      %306 = vmatpush1.bf16.xpose.msra.mxu0 0
      %307 = vmatprep.subr.bf16.mxu0 0
      %308 = vmatpush1.bf16.xpose.msra.mxu0 0
      %309 = vmatprep.subr.bf16.mxu0 0
      %310 = vmatpush1.bf16.xpose.msra.mxu0 0
      %311 = vmatprep.subr.bf16.mxu0 0
      %312 = vmatpush1.bf16.xpose.msra.mxu0 0
      %313 = vmatprep.subr.bf16.mxu0 0
      %314 = vmatpush1.bf16.xpose.msra.mxu0 0
      %315 = vmatprep.subr.bf16.mxu0 0
      %316 = vmatpush1.bf16.xpose.msra.mxu0 0
      %317 = vmatprep.subr.bf16.mxu0 0
      %318 = vmatpush1.bf16.xpose.msra.mxu0 %v303
      %319 = vmatprep.subr.bf16.mxu0 0
      %320 = vmatpush1.bf16.xpose.msra.mxu0 %v300
      %321 = vmatprep.subr.bf16.mxu0 0
      %322 = vmatpush2.bf16.xpose.msra.mxu0 0
      %323 = vmatprep.subr.bf16.mxu0 0
      %324 = vmatpush2.bf16.xpose.msra.mxu0 0
      %325 = vmatprep.subr.bf16.mxu0 0
      %326 = vmatpush2.bf16.xpose.msra.mxu0 0
      %327 = vmatprep.subr.bf16.mxu0 0
      %328 = vmatpush2.bf16.xpose.msra.mxu0 0
      %329 = vmatprep.subr.bf16.mxu0 0
      %330 = vmatpush2.bf16.xpose.msra.mxu0 0
      %331 = vmatprep.subr.bf16.mxu0 0
      %332 = vmatpush2.bf16.xpose.msra.mxu0 0
      %333 = vmatprep.subr.bf16.mxu0 0
      %334 = vmatpush2.bf16.xpose.msra.mxu0 0
      %335 = vmatprep.subr.bf16.mxu0 0
      %336 = vmatpush2.bf16.xpose.msra.mxu0 0
      %337 = vmatprep.mubr.bf16.mxu0 0
      %338 = vmatmul.mubr.bf16.gmra.mxu0 %v251
      %v339 = vpop.f32.mrf.mxu0
      %v340 = vadd.f32 0.0, %v339
      %v341 = vpop.f32.mrf.mxu0
      %v342 = vpop.f32.mrf.mxu0
      %v343 = vadd.f32 0.0, %v342
      %v344 = vpop.f32.mrf.mxu0
      %345 = vdwg.mxu0
      %v346 = vmul.f32 %v340, 0.25
      %v347 = vmul.f32 %v343, 0.25
      %349 = vset.pattern.permute.xlu0 0
      %350 = vperm.xlu0 %349, %v346
      %v351 = vpop.permute.xlu0 %350
      %354 = vset.pattern.permute.xlu0 0
      %355 = vperm.xlu0 %354, %v347
      %v356 = vpop.permute.xlu0 %355
      %v358 = vsel %vm193, %v351, 0.0
      %v359 = vsel %vm194, %v356, 0.0
      %v360 = vadd.f32 %v297, %v358
      %v361 = vadd.f32 %v298, %v359
      %362 = vset.pattern.permute.xlu0 1
      %363 = vperm.xlu0 %362, %v346
      %v364 = vpop.permute.xlu0 %363
      %366 = vset.pattern.permute.xlu0 1
      %367 = vperm.xlu0 %366, %v347
      %v368 = vpop.permute.xlu0 %367
      %v370 = vsel %vm195, %v364, 0.0
      %v371 = vsel %vm196, %v368, 0.0
      %v372 = vadd.f32 %v360, %v370
      %v373 = vadd.f32 %v361, %v371
      %374 = vset.pattern.permute.xlu0 2
      %375 = vperm.xlu0 %374, %v346
      %v376 = vpop.permute.xlu0 %375
      %378 = vset.pattern.permute.xlu0 2
      %379 = vperm.xlu0 %378, %v347
      %v380 = vpop.permute.xlu0 %379
      %v382 = vsel %vm197, %v376, 0.0
      %v383 = vsel %vm198, %v380, 0.0
      %v384 = vadd.f32 %v372, %v382
      %v385 = vadd.f32 %v373, %v383
      %386 = vset.pattern.permute.xlu0 3
      %387 = vperm.xlu0 %386, %v346
      %v388 = vpop.permute.xlu0 %387
      %390 = vset.pattern.permute.xlu0 3
      %391 = vperm.xlu0 %390, %v347
      %v392 = vpop.permute.xlu0 %391
      %v394 = vsel %vm199, %v388, 0.0
      %v395 = vsel %vm200, %v392, 0.0
      %v396 = vadd.f32 %v384, %v394
      %v397 = vadd.f32 %v385, %v395
      %398 = vset.pattern.permute.xlu0 4
      %399 = vperm.xlu0 %398, %v346
      %v400 = vpop.permute.xlu0 %399
      %402 = vset.pattern.permute.xlu0 4
      %403 = vperm.xlu0 %402, %v347
      %v404 = vpop.permute.xlu0 %403
      %v406 = vsel %vm201, %v400, 0.0
      %v407 = vsel %vm202, %v404, 0.0
      %v408 = vadd.f32 %v396, %v406
      %v409 = vadd.f32 %v397, %v407
      %410 = vset.pattern.permute.xlu0 5
      %411 = vperm.xlu0 %410, %v346
      %v412 = vpop.permute.xlu0 %411
      %414 = vset.pattern.permute.xlu0 5
      %415 = vperm.xlu0 %414, %v347
      %v416 = vpop.permute.xlu0 %415
      %v418 = vsel %vm203, %v412, 0.0
      %v419 = vsel %vm204, %v416, 0.0
      %v420 = vadd.f32 %v408, %v418
      %v421 = vadd.f32 %v409, %v419
      %422 = vset.pattern.permute.xlu0 6
      %423 = vperm.xlu0 %422, %v346
      %v424 = vpop.permute.xlu0 %423
      %426 = vset.pattern.permute.xlu0 6
      %427 = vperm.xlu0 %426, %v347
      %v428 = vpop.permute.xlu0 %427
      %v430 = vsel %vm205, %v424, 0.0
      %v431 = vsel %vm206, %v428, 0.0
      %v432 = vadd.f32 %v420, %v430
      %v433 = vadd.f32 %v421, %v431
      %434 = vset.pattern.permute.xlu0 7
      %435 = vperm.xlu0 %434, %v346
      %v436 = vpop.permute.xlu0 %435
      %438 = vset.pattern.permute.xlu0 7
      %439 = vperm.xlu0 %438, %v347
      %v440 = vpop.permute.xlu0 %439
      %v442 = vsel %vm207, %v436, 0.0
      %v443 = vsel %vm208, %v440, 0.0
      %v444 = vadd.f32 %v432, %v442
      %v445 = vadd.f32 %v433, %v443
      %446 = vset.pattern.permute.xlu0 8
      %447 = vperm.xlu0 %446, %v346
      %v448 = vpop.permute.xlu0 %447
      %450 = vset.pattern.permute.xlu0 8
      %451 = vperm.xlu0 %450, %v347
      %v452 = vpop.permute.xlu0 %451
      %v454 = vsel %vm209, %v448, 0.0
      %v455 = vsel %vm210, %v452, 0.0
      %v456 = vadd.f32 %v444, %v454
      %v457 = vadd.f32 %v445, %v455
      %458 = vset.pattern.permute.xlu0 9
      %459 = vperm.xlu0 %458, %v346
      %v460 = vpop.permute.xlu0 %459
      %462 = vset.pattern.permute.xlu0 9
      %463 = vperm.xlu0 %462, %v347
      %v464 = vpop.permute.xlu0 %463
      %v466 = vsel %vm211, %v460, 0.0
      %v467 = vsel %vm212, %v464, 0.0
      %v468 = vadd.f32 %v456, %v466
      %v469 = vadd.f32 %v457, %v467
      %470 = vset.pattern.permute.xlu0 10
      %471 = vperm.xlu0 %470, %v346
      %v472 = vpop.permute.xlu0 %471
      %474 = vset.pattern.permute.xlu0 10
      %475 = vperm.xlu0 %474, %v347
      %v476 = vpop.permute.xlu0 %475
      %v478 = vsel %vm213, %v472, 0.0
      %v479 = vsel %vm214, %v476, 0.0
      %v480 = vadd.f32 %v468, %v478
      %v481 = vadd.f32 %v469, %v479
      %482 = vset.pattern.permute.xlu0 11
      %483 = vperm.xlu0 %482, %v346
      %v484 = vpop.permute.xlu0 %483
      %486 = vset.pattern.permute.xlu0 11
      %487 = vperm.xlu0 %486, %v347
      %v488 = vpop.permute.xlu0 %487
      %v490 = vsel %vm215, %v484, 0.0
      %v491 = vsel %vm216, %v488, 0.0
      %v492 = vadd.f32 %v480, %v490
      %v493 = vadd.f32 %v481, %v491
      %494 = vset.pattern.permute.xlu0 12
      %495 = vperm.xlu0 %494, %v346
      %v496 = vpop.permute.xlu0 %495
      %498 = vset.pattern.permute.xlu0 12
      %499 = vperm.xlu0 %498, %v347
      %v500 = vpop.permute.xlu0 %499
      %v502 = vsel %vm217, %v496, 0.0
      %v503 = vsel %vm218, %v500, 0.0
      %v504 = vadd.f32 %v492, %v502
      %v505 = vadd.f32 %v493, %v503
      %506 = vset.pattern.permute.xlu0 13
      %507 = vperm.xlu0 %506, %v346
      %v508 = vpop.permute.xlu0 %507
      %510 = vset.pattern.permute.xlu0 13
      %511 = vperm.xlu0 %510, %v347
      %v512 = vpop.permute.xlu0 %511
      %v514 = vsel %vm219, %v508, 0.0
      %v515 = vsel %vm220, %v512, 0.0
      %v516 = vadd.f32 %v504, %v514
      %v517 = vadd.f32 %v505, %v515
      %518 = vset.pattern.permute.xlu0 14
      %519 = vperm.xlu0 %518, %v346
      %v520 = vpop.permute.xlu0 %519
      %522 = vset.pattern.permute.xlu0 14
      %523 = vperm.xlu0 %522, %v347
      %v524 = vpop.permute.xlu0 %523
      %v526 = vsel %vm221, %v520, 0.0
      %v527 = vsel %vm222, %v524, 0.0
      %v528 = vadd.f32 %v516, %v526
      %v529 = vadd.f32 %v517, %v527
      %530 = vset.pattern.permute.xlu0 15
      %531 = vperm.xlu0 %530, %v346
      %v532 = vpop.permute.xlu0 %531
      %534 = vset.pattern.permute.xlu0 15
      %535 = vperm.xlu0 %534, %v347
      %v536 = vpop.permute.xlu0 %535
      %v538 = vsel %vm223, %v532, 0.0
      %v539 = vsel %vm224, %v536, 0.0
      %v540 = vadd.f32 %v528, %v538
      %v541 = vadd.f32 %v529, %v539
      %542 = vset.pattern.permute.xlu0 16
      %543 = vperm.xlu0 %542, %v346
      %v544 = vpop.permute.xlu0 %543
      %546 = vset.pattern.permute.xlu0 16
      %547 = vperm.xlu0 %546, %v347
      %v548 = vpop.permute.xlu0 %547
      %v550 = vsel %vm225, %v544, 0.0
      %v551 = vsel %vm226, %v548, 0.0
      %v552 = vadd.f32 %v540, %v550
      %v553 = vadd.f32 %v541, %v551
      %554 = vset.pattern.permute.xlu0 17
      %555 = vperm.xlu0 %554, %v346
      %v556 = vpop.permute.xlu0 %555
      %558 = vset.pattern.permute.xlu0 17
      %559 = vperm.xlu0 %558, %v347
      %v560 = vpop.permute.xlu0 %559
      %v562 = vsel %vm227, %v556, 0.0
      %v563 = vsel %vm228, %v560, 0.0
      %v564 = vadd.f32 %v552, %v562
      %v565 = vadd.f32 %v553, %v563
      %566 = vset.pattern.permute.xlu0 18
      %567 = vperm.xlu0 %566, %v346
      %v568 = vpop.permute.xlu0 %567
      %570 = vset.pattern.permute.xlu0 18
      %571 = vperm.xlu0 %570, %v347
      %v572 = vpop.permute.xlu0 %571
      %v574 = vsel %vm229, %v568, 0.0
      %v575 = vsel %vm230, %v572, 0.0
      %v576 = vadd.f32 %v564, %v574
      %v577 = vadd.f32 %v565, %v575
      %578 = vset.pattern.permute.xlu0 19
      %579 = vperm.xlu0 %578, %v346
      %v580 = vpop.permute.xlu0 %579
      %582 = vset.pattern.permute.xlu0 19
      %583 = vperm.xlu0 %582, %v347
      %v584 = vpop.permute.xlu0 %583
      %v586 = vsel %vm231, %v580, 0.0
      %v587 = vsel %vm232, %v584, 0.0
      %v588 = vadd.f32 %v576, %v586
      %v589 = vadd.f32 %v577, %v587
      %590 = vset.pattern.permute.xlu0 20
      %591 = vperm.xlu0 %590, %v346
      %v592 = vpop.permute.xlu0 %591
      %594 = vset.pattern.permute.xlu0 20
      %595 = vperm.xlu0 %594, %v347
      %v596 = vpop.permute.xlu0 %595
      %v598 = vsel %vm233, %v592, 0.0
      %v599 = vsel %vm234, %v596, 0.0
      %v600 = vadd.f32 %v588, %v598
      %v601 = vadd.f32 %v589, %v599
      %v602 = vsel %vm189, %v600, -10000.0
      %v603 = vsel %vm190, %v601, -10000.0
      %v604 = vsel %vm249, %v602, -inf
      %605 = vmax.xlane.f32.xlu0 %v604
      %v606 = vpop.xlane.xlu0 %605
      %v607 = vsel %vm249, %v603, -inf
      %608 = vmax.xlane.f32.xlu0 %v607
      %v609 = vpop.xlane.xlu0 %608
      %v610 = vsub.f32 %v602, %v606
      %v611 = vsub.f32 %v603, %v609
      %v612 = vmul.f32 %v610, 1.442695
      %v613 = vpow.pop %v612
      %v614 = vmul.f32 %v611, 1.442695
      %v615 = vpow.pop %v614
      %v616 = vsel %vm249, %v613, 0.0
      %617 = vadd.xlane.f32.xlu0 %v616
      %v618 = vpop.xlane.xlu0 %617
      %v619 = vsel %vm249, %v615, 0.0
      %620 = vadd.xlane.f32.xlu0 %v619
      %v621 = vpop.xlane.xlu0 %620
      %v622 = vrcp.pop %v618
      %v623 = vrcp.pop %v621
      %v624 = vmul.f32 %v613, %v622
      %v625 = vmul.f32 %v615, %v623
      %v626 = vpack.c.bf16 %v625, %v624
      %v627 = vsel %vm193, %v624, 0.0
      %v628 = vsel %vm194, %v625, 0.0
      %v629 = vsel %vm249, %v627, 0.0
      %630 = vadd.xlane.f32.xlu0 %v629
      %v631 = vpop.xlane.xlu0 %630
      %v632 = vsel %vm249, %v628, 0.0
      %633 = vadd.xlane.f32.xlu0 %v632
      %v634 = vpop.xlane.xlu0 %633
      %v635 = vlaneseq
      %v636 = vshrl.u32 %v635, 7
      %v637 = vsub.s32 0, %v636
      %v638 = vrot.slane %v240, %v637
      %v639 = vmul.f32 %v631, %v638
      %v640 = vmul.f32 %v634, %v638
      %641 = vrot.lane.b32.xlu0 %v245, 64
      %v642 = vpop.permute.xlu0 %641
      %v645 = vsel %vm249, %v626, 0
      %647 = vmatprep.subr.bf16.mxu0 0
      %648 = vmatpush1.bf16.msra.mxu0 0
      %649 = vmatprep.subr.bf16.mxu0 0
      %650 = vmatpush1.bf16.msra.mxu0 0
      %651 = vmatprep.subr.bf16.mxu0 0
      %652 = vmatpush1.bf16.msra.mxu0 0
      %653 = vmatprep.subr.bf16.mxu0 0
      %654 = vmatpush1.bf16.msra.mxu0 0
      %655 = vmatprep.subr.bf16.mxu0 0
      %656 = vmatpush1.bf16.msra.mxu0 0
      %657 = vmatprep.subr.bf16.mxu0 0
      %658 = vmatpush1.bf16.msra.mxu0 0
      %659 = vmatprep.subr.bf16.mxu0 0
      %660 = vmatpush1.bf16.msra.mxu0 0
      %661 = vmatprep.subr.bf16.mxu0 0
      %662 = vmatpush1.bf16.msra.mxu0 %v642
      %663 = vmatprep.subr.bf16.mxu0 0
      %664 = vmatpush2.bf16.msra.mxu0 0
      %665 = vmatprep.subr.bf16.mxu0 0
      %666 = vmatpush2.bf16.msra.mxu0 0
      %667 = vmatprep.subr.bf16.mxu0 0
      %668 = vmatpush2.bf16.msra.mxu0 0
      %669 = vmatprep.subr.bf16.mxu0 0
      %670 = vmatpush2.bf16.msra.mxu0 0
      %671 = vmatprep.subr.bf16.mxu0 0
      %672 = vmatpush2.bf16.msra.mxu0 0
      %673 = vmatprep.subr.bf16.mxu0 0
      %674 = vmatpush2.bf16.msra.mxu0 0
      %675 = vmatprep.subr.bf16.mxu0 0
      %676 = vmatpush2.bf16.msra.mxu0 0
      %677 = vmatprep.subr.bf16.mxu0 0
      %678 = vmatpush2.bf16.msra.mxu0 0
      %679 = vmatprep.mubr.bf16.mxu0 0
      %680 = vmatmul.mubr.bf16.gmra.mxu0 %v645
      %v681 = vpop.f32.mrf.mxu0
      %v682 = vadd.f32 %v639, %v681
      %v683 = vpop.f32.mrf.mxu0
      %v684 = vpop.f32.mrf.mxu0
      %v685 = vadd.f32 %v640, %v684
      %v686 = vpop.f32.mrf.mxu0
      %687 = vdwg.mxu0
      %v688 = vsel %vm195, %v624, 0.0
      %v689 = vsel %vm196, %v625, 0.0
      %v690 = vsel %vm249, %v688, 0.0
      %691 = vadd.xlane.f32.xlu0 %v690
      %v692 = vpop.xlane.xlu0 %691
      %v693 = vsel %vm249, %v689, 0.0
      %694 = vadd.xlane.f32.xlu0 %v693
      %v695 = vpop.xlane.xlu0 %694
      %v696 = vlaneseq
      %v697 = vshrl.u32 %v696, 7
      %v698 = vsub.s32 1, %v697
      %v699 = vrot.slane %v240, %v698
      %v700 = vmul.f32 %v692, %v699
      %v701 = vmul.f32 %v695, %v699
      %v702 = vadd.f32 %v682, %v700
      %v703 = vadd.f32 %v685, %v701
      %v704 = vsel %vm197, %v624, 0.0
      %v705 = vsel %vm198, %v625, 0.0
      %v706 = vsel %vm249, %v704, 0.0
      %707 = vadd.xlane.f32.xlu0 %v706
      %v708 = vpop.xlane.xlu0 %707
      %v709 = vsel %vm249, %v705, 0.0
      %710 = vadd.xlane.f32.xlu0 %v709
      %v711 = vpop.xlane.xlu0 %710
      %v712 = vlaneseq
      %v713 = vshrl.u32 %v712, 7
      %v714 = vsub.s32 2, %v713
      %v715 = vrot.slane %v240, %v714
      %v716 = vmul.f32 %v708, %v715
      %v717 = vmul.f32 %v711, %v715
      %v718 = vadd.f32 %v702, %v716
      %v719 = vadd.f32 %v703, %v717
      %v720 = vsel %vm199, %v624, 0.0
      %v721 = vsel %vm200, %v625, 0.0
      %v722 = vsel %vm249, %v720, 0.0
      %723 = vadd.xlane.f32.xlu0 %v722
      %v724 = vpop.xlane.xlu0 %723
      %v725 = vsel %vm249, %v721, 0.0
      %726 = vadd.xlane.f32.xlu0 %v725
      %v727 = vpop.xlane.xlu0 %726
      %v728 = vlaneseq
      %v729 = vshrl.u32 %v728, 7
      %v730 = vsub.s32 3, %v729
      %v731 = vrot.slane %v240, %v730
      %v732 = vmul.f32 %v724, %v731
      %v733 = vmul.f32 %v727, %v731
      %v734 = vadd.f32 %v718, %v732
      %v735 = vadd.f32 %v719, %v733
      %v736 = vsel %vm201, %v624, 0.0
      %v737 = vsel %vm202, %v625, 0.0
      %v738 = vsel %vm249, %v736, 0.0
      %739 = vadd.xlane.f32.xlu0 %v738
      %v740 = vpop.xlane.xlu0 %739
      %v741 = vsel %vm249, %v737, 0.0
      %742 = vadd.xlane.f32.xlu0 %v741
      %v743 = vpop.xlane.xlu0 %742
      %v744 = vlaneseq
      %v745 = vshrl.u32 %v744, 7
      %v746 = vsub.s32 4, %v745
      %v747 = vrot.slane %v240, %v746
      %v748 = vmul.f32 %v740, %v747
      %v749 = vmul.f32 %v743, %v747
      %v750 = vadd.f32 %v734, %v748
      %v751 = vadd.f32 %v735, %v749
      %v752 = vsel %vm203, %v624, 0.0
      %v753 = vsel %vm204, %v625, 0.0
      %v754 = vsel %vm249, %v752, 0.0
      %755 = vadd.xlane.f32.xlu0 %v754
      %v756 = vpop.xlane.xlu0 %755
      %v757 = vsel %vm249, %v753, 0.0
      %758 = vadd.xlane.f32.xlu0 %v757
      %v759 = vpop.xlane.xlu0 %758
      %v760 = vlaneseq
      %v761 = vshrl.u32 %v760, 7
      %v762 = vsub.s32 5, %v761
      %v763 = vrot.slane %v240, %v762
      %v764 = vmul.f32 %v756, %v763
      %v765 = vmul.f32 %v759, %v763
      %v766 = vadd.f32 %v750, %v764
      %v767 = vadd.f32 %v751, %v765
      %v768 = vsel %vm205, %v624, 0.0
      %v769 = vsel %vm206, %v625, 0.0
      %v770 = vsel %vm249, %v768, 0.0
      %771 = vadd.xlane.f32.xlu0 %v770
      %v772 = vpop.xlane.xlu0 %771
      %v773 = vsel %vm249, %v769, 0.0
      %774 = vadd.xlane.f32.xlu0 %v773
      %v775 = vpop.xlane.xlu0 %774
      %v776 = vlaneseq
      %v777 = vshrl.u32 %v776, 7
      %v778 = vsub.s32 6, %v777
      %v779 = vrot.slane %v240, %v778
      %v780 = vmul.f32 %v772, %v779
      %v781 = vmul.f32 %v775, %v779
      %v782 = vadd.f32 %v766, %v780
      %v783 = vadd.f32 %v767, %v781
      %v784 = vsel %vm207, %v624, 0.0
      %v785 = vsel %vm208, %v625, 0.0
      %v786 = vsel %vm249, %v784, 0.0
      %787 = vadd.xlane.f32.xlu0 %v786
      %v788 = vpop.xlane.xlu0 %787
      %v789 = vsel %vm249, %v785, 0.0
      %790 = vadd.xlane.f32.xlu0 %v789
      %v791 = vpop.xlane.xlu0 %790
      %v792 = vlaneseq
      %v793 = vshrl.u32 %v792, 7
      %v794 = vsub.s32 7, %v793
      %v795 = vrot.slane %v240, %v794
      %v796 = vmul.f32 %v788, %v795
      %v797 = vmul.f32 %v791, %v795
      %v798 = vadd.f32 %v782, %v796
      %v799 = vadd.f32 %v783, %v797
      %v800 = vsel %vm209, %v624, 0.0
      %v801 = vsel %vm210, %v625, 0.0
      %v802 = vsel %vm249, %v800, 0.0
      %803 = vadd.xlane.f32.xlu0 %v802
      %v804 = vpop.xlane.xlu0 %803
      %v805 = vsel %vm249, %v801, 0.0
      %806 = vadd.xlane.f32.xlu0 %v805
      %v807 = vpop.xlane.xlu0 %806
      %v808 = vlaneseq
      %v809 = vshrl.u32 %v808, 7
      %v810 = vsub.s32 0, %v809
      %v811 = vrot.slane %v241, %v810
      %v812 = vmul.f32 %v804, %v811
      %v813 = vmul.f32 %v807, %v811
      %v814 = vadd.f32 %v798, %v812
      %v815 = vadd.f32 %v799, %v813
      %v816 = vsel %vm211, %v624, 0.0
      %v817 = vsel %vm212, %v625, 0.0
      %v818 = vsel %vm249, %v816, 0.0
      %819 = vadd.xlane.f32.xlu0 %v818
      %v820 = vpop.xlane.xlu0 %819
      %v821 = vsel %vm249, %v817, 0.0
      %822 = vadd.xlane.f32.xlu0 %v821
      %v823 = vpop.xlane.xlu0 %822
      %v824 = vlaneseq
      %v825 = vshrl.u32 %v824, 7
      %v826 = vsub.s32 1, %v825
      %v827 = vrot.slane %v241, %v826
      %v828 = vmul.f32 %v820, %v827
      %v829 = vmul.f32 %v823, %v827
      %v830 = vadd.f32 %v814, %v828
      %v831 = vadd.f32 %v815, %v829
      %v832 = vsel %vm213, %v624, 0.0
      %v833 = vsel %vm214, %v625, 0.0
      %v834 = vsel %vm249, %v832, 0.0
      %835 = vadd.xlane.f32.xlu0 %v834
      %v836 = vpop.xlane.xlu0 %835
      %v837 = vsel %vm249, %v833, 0.0
      %838 = vadd.xlane.f32.xlu0 %v837
      %v839 = vpop.xlane.xlu0 %838
      %v840 = vlaneseq
      %v841 = vshrl.u32 %v840, 7
      %v842 = vsub.s32 2, %v841
      %v843 = vrot.slane %v241, %v842
      %v844 = vmul.f32 %v836, %v843
      %v845 = vmul.f32 %v839, %v843
      %v846 = vadd.f32 %v830, %v844
      %v847 = vadd.f32 %v831, %v845
      %v848 = vsel %vm215, %v624, 0.0
      %v849 = vsel %vm216, %v625, 0.0
      %v850 = vsel %vm249, %v848, 0.0
      %851 = vadd.xlane.f32.xlu0 %v850
      %v852 = vpop.xlane.xlu0 %851
      %v853 = vsel %vm249, %v849, 0.0
      %854 = vadd.xlane.f32.xlu0 %v853
      %v855 = vpop.xlane.xlu0 %854
      %v856 = vlaneseq
      %v857 = vshrl.u32 %v856, 7
      %v858 = vsub.s32 3, %v857
      %v859 = vrot.slane %v241, %v858
      %v860 = vmul.f32 %v852, %v859
      %v861 = vmul.f32 %v855, %v859
      %v862 = vadd.f32 %v846, %v860
      %v863 = vadd.f32 %v847, %v861
      %v864 = vsel %vm217, %v624, 0.0
      %v865 = vsel %vm218, %v625, 0.0
      %v866 = vsel %vm249, %v864, 0.0
      %867 = vadd.xlane.f32.xlu0 %v866
      %v868 = vpop.xlane.xlu0 %867
      %v869 = vsel %vm249, %v865, 0.0
      %870 = vadd.xlane.f32.xlu0 %v869
      %v871 = vpop.xlane.xlu0 %870
      %v872 = vlaneseq
      %v873 = vshrl.u32 %v872, 7
      %v874 = vsub.s32 4, %v873
      %v875 = vrot.slane %v241, %v874
      %v876 = vmul.f32 %v868, %v875
      %v877 = vmul.f32 %v871, %v875
      %v878 = vadd.f32 %v862, %v876
      %v879 = vadd.f32 %v863, %v877
      %v880 = vsel %vm219, %v624, 0.0
      %v881 = vsel %vm220, %v625, 0.0
      %v882 = vsel %vm249, %v880, 0.0
      %883 = vadd.xlane.f32.xlu0 %v882
      %v884 = vpop.xlane.xlu0 %883
      %v885 = vsel %vm249, %v881, 0.0
      %886 = vadd.xlane.f32.xlu0 %v885
      %v887 = vpop.xlane.xlu0 %886
      %v888 = vlaneseq
      %v889 = vshrl.u32 %v888, 7
      %v890 = vsub.s32 5, %v889
      %v891 = vrot.slane %v241, %v890
      %v892 = vmul.f32 %v884, %v891
      %v893 = vmul.f32 %v887, %v891
      %v894 = vadd.f32 %v878, %v892
      %v895 = vadd.f32 %v879, %v893
      %v896 = vsel %vm221, %v624, 0.0
      %v897 = vsel %vm222, %v625, 0.0
      %v898 = vsel %vm249, %v896, 0.0
      %899 = vadd.xlane.f32.xlu0 %v898
      %v900 = vpop.xlane.xlu0 %899
      %v901 = vsel %vm249, %v897, 0.0
      %902 = vadd.xlane.f32.xlu0 %v901
      %v903 = vpop.xlane.xlu0 %902
      %v904 = vlaneseq
      %v905 = vshrl.u32 %v904, 7
      %v906 = vsub.s32 6, %v905
      %v907 = vrot.slane %v241, %v906
      %v908 = vmul.f32 %v900, %v907
      %v909 = vmul.f32 %v903, %v907
      %v910 = vadd.f32 %v894, %v908
      %v911 = vadd.f32 %v895, %v909
      %v912 = vsel %vm223, %v624, 0.0
      %v913 = vsel %vm224, %v625, 0.0
      %v914 = vsel %vm249, %v912, 0.0
      %915 = vadd.xlane.f32.xlu0 %v914
      %v916 = vpop.xlane.xlu0 %915
      %v917 = vsel %vm249, %v913, 0.0
      %918 = vadd.xlane.f32.xlu0 %v917
      %v919 = vpop.xlane.xlu0 %918
      %v920 = vlaneseq
      %v921 = vshrl.u32 %v920, 7
      %v922 = vsub.s32 7, %v921
      %v923 = vrot.slane %v241, %v922
      %v924 = vmul.f32 %v916, %v923
      %v925 = vmul.f32 %v919, %v923
      %v926 = vadd.f32 %v910, %v924
      %v927 = vadd.f32 %v911, %v925
      %v928 = vsel %vm225, %v624, 0.0
      %v929 = vsel %vm226, %v625, 0.0
      %v930 = vsel %vm249, %v928, 0.0
      %931 = vadd.xlane.f32.xlu0 %v930
      %v932 = vpop.xlane.xlu0 %931
      %v933 = vsel %vm249, %v929, 0.0
      %934 = vadd.xlane.f32.xlu0 %v933
      %v935 = vpop.xlane.xlu0 %934
      %v936 = vlaneseq
      %v937 = vshrl.u32 %v936, 7
      %v938 = vsub.s32 0, %v937
      %v939 = vrot.slane %v242, %v938
      %v940 = vmul.f32 %v932, %v939
      %v941 = vmul.f32 %v935, %v939
      %v942 = vadd.f32 %v926, %v940
      %v943 = vadd.f32 %v927, %v941
      %v944 = vsel %vm227, %v624, 0.0
      %v945 = vsel %vm228, %v625, 0.0
      %v946 = vsel %vm249, %v944, 0.0
      %947 = vadd.xlane.f32.xlu0 %v946
      %v948 = vpop.xlane.xlu0 %947
      %v949 = vsel %vm249, %v945, 0.0
      %950 = vadd.xlane.f32.xlu0 %v949
      %v951 = vpop.xlane.xlu0 %950
      %v952 = vlaneseq
      %v953 = vshrl.u32 %v952, 7
      %v954 = vsub.s32 1, %v953
      %v955 = vrot.slane %v242, %v954
      %v956 = vmul.f32 %v948, %v955
      %v957 = vmul.f32 %v951, %v955
      %v958 = vadd.f32 %v942, %v956
      %v959 = vadd.f32 %v943, %v957
      %v960 = vsel %vm229, %v624, 0.0
      %v961 = vsel %vm230, %v625, 0.0
      %v962 = vsel %vm249, %v960, 0.0
      %963 = vadd.xlane.f32.xlu0 %v962
      %v964 = vpop.xlane.xlu0 %963
      %v965 = vsel %vm249, %v961, 0.0
      %966 = vadd.xlane.f32.xlu0 %v965
      %v967 = vpop.xlane.xlu0 %966
      %v968 = vlaneseq
      %v969 = vshrl.u32 %v968, 7
      %v970 = vsub.s32 2, %v969
      %v971 = vrot.slane %v242, %v970
      %v972 = vmul.f32 %v964, %v971
      %v973 = vmul.f32 %v967, %v971
      %v974 = vadd.f32 %v958, %v972
      %v975 = vadd.f32 %v959, %v973
      %v976 = vsel %vm231, %v624, 0.0
      %v977 = vsel %vm232, %v625, 0.0
      %v978 = vsel %vm249, %v976, 0.0
      %979 = vadd.xlane.f32.xlu0 %v978
      %v980 = vpop.xlane.xlu0 %979
      %v981 = vsel %vm249, %v977, 0.0
      %982 = vadd.xlane.f32.xlu0 %v981
      %v983 = vpop.xlane.xlu0 %982
      %v984 = vlaneseq
      %v985 = vshrl.u32 %v984, 7
      %v986 = vsub.s32 3, %v985
      %v987 = vrot.slane %v242, %v986
      %v988 = vmul.f32 %v980, %v987
      %v989 = vmul.f32 %v983, %v987
      %v990 = vadd.f32 %v974, %v988
      %v991 = vadd.f32 %v975, %v989
      %v992 = vsel %vm233, %v624, 0.0
      %v993 = vsel %vm234, %v625, 0.0
      %v994 = vsel %vm249, %v992, 0.0
      %995 = vadd.xlane.f32.xlu0 %v994
      %v996 = vpop.xlane.xlu0 %995
      %v997 = vsel %vm249, %v993, 0.0
      %998 = vadd.xlane.f32.xlu0 %v997
      %v999 = vpop.xlane.xlu0 %998
      %v1000 = vlaneseq
      %v1001 = vshrl.u32 %v1000, 7
      %v1002 = vsub.s32 4, %v1001
      %v1003 = vrot.slane %v242, %v1002
      %v1004 = vmul.f32 %v996, %v1003
      %v1005 = vmul.f32 %v999, %v1003
      %v1006 = vadd.f32 %v990, %v1004
      %v1007 = vadd.f32 %v991, %v1005
      %1008 = vrot.lane.b32.xlu0 %v245, 112
      %v1009 = vpop.permute.xlu0 %1008
      %1010 = vrot.lane.b32.xlu0 %v245, 80
      %v1011 = vpop.permute.xlu0 %1010
      %v1013 = vsel %vm249, %v1009, 0
      %v1016 = vsel %vm249, %v1011, 0
      %1018 = vmatprep.subr.bf16.mxu0 0
      %1019 = vmatpush1.bf16.xpose.msra.mxu0 0
      %1020 = vmatprep.subr.bf16.mxu0 0
      %1021 = vmatpush1.bf16.xpose.msra.mxu0 0
      %1022 = vmatprep.subr.bf16.mxu0 0
      %1023 = vmatpush1.bf16.xpose.msra.mxu0 0
      %1024 = vmatprep.subr.bf16.mxu0 0
      %1025 = vmatpush1.bf16.xpose.msra.mxu0 0
      %1026 = vmatprep.subr.bf16.mxu0 0
      %1027 = vmatpush1.bf16.xpose.msra.mxu0 0
      %1028 = vmatprep.subr.bf16.mxu0 0
      %1029 = vmatpush1.bf16.xpose.msra.mxu0 0
      %1030 = vmatprep.subr.bf16.mxu0 0
      %1031 = vmatpush1.bf16.xpose.msra.mxu0 0
      %1032 = vmatprep.subr.bf16.mxu0 0
      %1033 = vmatpush1.bf16.xpose.msra.mxu0 %v1016
      %1034 = vmatprep.subr.bf16.mxu0 0
      %1035 = vmatpush2.bf16.xpose.msra.mxu0 0
      %1036 = vmatprep.subr.bf16.mxu0 0
      %1037 = vmatpush2.bf16.xpose.msra.mxu0 0
      %1038 = vmatprep.subr.bf16.mxu0 0
      %1039 = vmatpush2.bf16.xpose.msra.mxu0 0
      %1040 = vmatprep.subr.bf16.mxu0 0
      %1041 = vmatpush2.bf16.xpose.msra.mxu0 0
      %1042 = vmatprep.subr.bf16.mxu0 0
      %1043 = vmatpush2.bf16.xpose.msra.mxu0 0
      %1044 = vmatprep.subr.bf16.mxu0 0
      %1045 = vmatpush2.bf16.xpose.msra.mxu0 0
      %1046 = vmatprep.subr.bf16.mxu0 0
      %1047 = vmatpush2.bf16.xpose.msra.mxu0 0
      %1048 = vmatprep.subr.bf16.mxu0 0
      %1049 = vmatpush2.bf16.xpose.msra.mxu0 0
      %1050 = vmatprep.mubr.bf16.mxu0 0
      %1051 = vmatmul.mubr.bf16.gmra.mxu0 %v1013
      %v1052 = vpop.f32.mrf.mxu0
      %v1053 = vadd.f32 0.0, %v1052
      %v1054 = vpop.f32.mrf.mxu0
      %v1055 = vpop.f32.mrf.mxu0
      %v1056 = vadd.f32 0.0, %v1055
      %v1057 = vpop.f32.mrf.mxu0
      %1058 = vdwg.mxu0
      %v1059 = vmul.f32 %v1053, 0.25
      %v1060 = vmul.f32 %v1056, 0.25
      %1061 = vmatprep.subr.bf16.mxu0 0
      %1062 = vmatpush1.bf16.xpose.msra.mxu0 0
      %1063 = vmatprep.subr.bf16.mxu0 0
      %1064 = vmatpush1.bf16.xpose.msra.mxu0 0
      %1065 = vmatprep.subr.bf16.mxu0 0
      %1066 = vmatpush1.bf16.xpose.msra.mxu0 0
      %1067 = vmatprep.subr.bf16.mxu0 0
      %1068 = vmatpush1.bf16.xpose.msra.mxu0 0
      %1069 = vmatprep.subr.bf16.mxu0 0
      %1070 = vmatpush1.bf16.xpose.msra.mxu0 0
      %1071 = vmatprep.subr.bf16.mxu0 0
      %1072 = vmatpush1.bf16.xpose.msra.mxu0 0
      %1073 = vmatprep.subr.bf16.mxu0 0
      %1074 = vmatpush1.bf16.xpose.msra.mxu0 %v303
      %1075 = vmatprep.subr.bf16.mxu0 0
      %1076 = vmatpush1.bf16.xpose.msra.mxu0 %v300
      %1077 = vmatprep.subr.bf16.mxu0 0
      %1078 = vmatpush2.bf16.xpose.msra.mxu0 0
      %1079 = vmatprep.subr.bf16.mxu0 0
      %1080 = vmatpush2.bf16.xpose.msra.mxu0 0
      %1081 = vmatprep.subr.bf16.mxu0 0
      %1082 = vmatpush2.bf16.xpose.msra.mxu0 0
      %1083 = vmatprep.subr.bf16.mxu0 0
      %1084 = vmatpush2.bf16.xpose.msra.mxu0 0
      %1085 = vmatprep.subr.bf16.mxu0 0
      %1086 = vmatpush2.bf16.xpose.msra.mxu0 0
      %1087 = vmatprep.subr.bf16.mxu0 0
      %1088 = vmatpush2.bf16.xpose.msra.mxu0 0
      %1089 = vmatprep.subr.bf16.mxu0 0
      %1090 = vmatpush2.bf16.xpose.msra.mxu0 0
      %1091 = vmatprep.subr.bf16.mxu0 0
      %1092 = vmatpush2.bf16.xpose.msra.mxu0 0
      %1093 = vmatprep.mubr.bf16.mxu0 0
      %1094 = vmatmul.mubr.bf16.gmra.mxu0 %v1013
      %v1095 = vpop.f32.mrf.mxu0
      %v1096 = vadd.f32 0.0, %v1095
      %v1097 = vpop.f32.mrf.mxu0
      %v1098 = vpop.f32.mrf.mxu0
      %v1099 = vadd.f32 0.0, %v1098
      %v1100 = vpop.f32.mrf.mxu0
      %1101 = vdwg.mxu0
      %v1102 = vmul.f32 %v1096, 0.25
      %v1103 = vmul.f32 %v1099, 0.25
      %1105 = vset.pattern.permute.xlu0 0
      %1106 = vperm.xlu0 %1105, %v1102
      %v1107 = vpop.permute.xlu0 %1106
      %1110 = vset.pattern.permute.xlu0 0
      %1111 = vperm.xlu0 %1110, %v1103
      %v1112 = vpop.permute.xlu0 %1111
      %v1114 = vsel %vm193, %v1107, 0.0
      %v1115 = vsel %vm194, %v1112, 0.0
      %v1116 = vadd.f32 %v1059, %v1114
      %v1117 = vadd.f32 %v1060, %v1115
      %1118 = vset.pattern.permute.xlu0 1
      %1119 = vperm.xlu0 %1118, %v1102
      %v1120 = vpop.permute.xlu0 %1119
      %1122 = vset.pattern.permute.xlu0 1
      %1123 = vperm.xlu0 %1122, %v1103
      %v1124 = vpop.permute.xlu0 %1123
      %v1126 = vsel %vm195, %v1120, 0.0
      %v1127 = vsel %vm196, %v1124, 0.0
      %v1128 = vadd.f32 %v1116, %v1126
      %v1129 = vadd.f32 %v1117, %v1127
      %1130 = vset.pattern.permute.xlu0 2
      %1131 = vperm.xlu0 %1130, %v1102
      %v1132 = vpop.permute.xlu0 %1131
      %1134 = vset.pattern.permute.xlu0 2
      %1135 = vperm.xlu0 %1134, %v1103
      %v1136 = vpop.permute.xlu0 %1135
      %v1138 = vsel %vm197, %v1132, 0.0
      %v1139 = vsel %vm198, %v1136, 0.0
      %v1140 = vadd.f32 %v1128, %v1138
      %v1141 = vadd.f32 %v1129, %v1139
      %1142 = vset.pattern.permute.xlu0 3
      %1143 = vperm.xlu0 %1142, %v1102
      %v1144 = vpop.permute.xlu0 %1143
      %1146 = vset.pattern.permute.xlu0 3
      %1147 = vperm.xlu0 %1146, %v1103
      %v1148 = vpop.permute.xlu0 %1147
      %v1150 = vsel %vm199, %v1144, 0.0
      %v1151 = vsel %vm200, %v1148, 0.0
      %v1152 = vadd.f32 %v1140, %v1150
      %v1153 = vadd.f32 %v1141, %v1151
      %1154 = vset.pattern.permute.xlu0 4
      %1155 = vperm.xlu0 %1154, %v1102
      %v1156 = vpop.permute.xlu0 %1155
      %1158 = vset.pattern.permute.xlu0 4
      %1159 = vperm.xlu0 %1158, %v1103
      %v1160 = vpop.permute.xlu0 %1159
      %v1162 = vsel %vm201, %v1156, 0.0
      %v1163 = vsel %vm202, %v1160, 0.0
      %v1164 = vadd.f32 %v1152, %v1162
      %v1165 = vadd.f32 %v1153, %v1163
      %1166 = vset.pattern.permute.xlu0 5
      %1167 = vperm.xlu0 %1166, %v1102
      %v1168 = vpop.permute.xlu0 %1167
      %1170 = vset.pattern.permute.xlu0 5
      %1171 = vperm.xlu0 %1170, %v1103
      %v1172 = vpop.permute.xlu0 %1171
      %v1174 = vsel %vm203, %v1168, 0.0
      %v1175 = vsel %vm204, %v1172, 0.0
      %v1176 = vadd.f32 %v1164, %v1174
      %v1177 = vadd.f32 %v1165, %v1175
      %1178 = vset.pattern.permute.xlu0 6
      %1179 = vperm.xlu0 %1178, %v1102
      %v1180 = vpop.permute.xlu0 %1179
      %1182 = vset.pattern.permute.xlu0 6
      %1183 = vperm.xlu0 %1182, %v1103
      %v1184 = vpop.permute.xlu0 %1183
      %v1186 = vsel %vm205, %v1180, 0.0
      %v1187 = vsel %vm206, %v1184, 0.0
      %v1188 = vadd.f32 %v1176, %v1186
      %v1189 = vadd.f32 %v1177, %v1187
      %1190 = vset.pattern.permute.xlu0 7
      %1191 = vperm.xlu0 %1190, %v1102
      %v1192 = vpop.permute.xlu0 %1191
      %1194 = vset.pattern.permute.xlu0 7
      %1195 = vperm.xlu0 %1194, %v1103
      %v1196 = vpop.permute.xlu0 %1195
      %v1198 = vsel %vm207, %v1192, 0.0
      %v1199 = vsel %vm208, %v1196, 0.0
      %v1200 = vadd.f32 %v1188, %v1198
      %v1201 = vadd.f32 %v1189, %v1199
      %1202 = vset.pattern.permute.xlu0 8
      %1203 = vperm.xlu0 %1202, %v1102
      %v1204 = vpop.permute.xlu0 %1203
      %1206 = vset.pattern.permute.xlu0 8
      %1207 = vperm.xlu0 %1206, %v1103
      %v1208 = vpop.permute.xlu0 %1207
      %v1210 = vsel %vm209, %v1204, 0.0
      %v1211 = vsel %vm210, %v1208, 0.0
      %v1212 = vadd.f32 %v1200, %v1210
      %v1213 = vadd.f32 %v1201, %v1211
      %1214 = vset.pattern.permute.xlu0 9
      %1215 = vperm.xlu0 %1214, %v1102
      %v1216 = vpop.permute.xlu0 %1215
      %1218 = vset.pattern.permute.xlu0 9
      %1219 = vperm.xlu0 %1218, %v1103
      %v1220 = vpop.permute.xlu0 %1219
      %v1222 = vsel %vm211, %v1216, 0.0
      %v1223 = vsel %vm212, %v1220, 0.0
      %v1224 = vadd.f32 %v1212, %v1222
      %v1225 = vadd.f32 %v1213, %v1223
      %1226 = vset.pattern.permute.xlu0 10
      %1227 = vperm.xlu0 %1226, %v1102
      %v1228 = vpop.permute.xlu0 %1227
      %1230 = vset.pattern.permute.xlu0 10
      %1231 = vperm.xlu0 %1230, %v1103
      %v1232 = vpop.permute.xlu0 %1231
      %v1234 = vsel %vm213, %v1228, 0.0
      %v1235 = vsel %vm214, %v1232, 0.0
      %v1236 = vadd.f32 %v1224, %v1234
      %v1237 = vadd.f32 %v1225, %v1235
      %1238 = vset.pattern.permute.xlu0 11
      %1239 = vperm.xlu0 %1238, %v1102
      %v1240 = vpop.permute.xlu0 %1239
      %1242 = vset.pattern.permute.xlu0 11
      %1243 = vperm.xlu0 %1242, %v1103
      %v1244 = vpop.permute.xlu0 %1243
      %v1246 = vsel %vm215, %v1240, 0.0
      %v1247 = vsel %vm216, %v1244, 0.0
      %v1248 = vadd.f32 %v1236, %v1246
      %v1249 = vadd.f32 %v1237, %v1247
      %1250 = vset.pattern.permute.xlu0 12
      %1251 = vperm.xlu0 %1250, %v1102
      %v1252 = vpop.permute.xlu0 %1251
      %1254 = vset.pattern.permute.xlu0 12
      %1255 = vperm.xlu0 %1254, %v1103
      %v1256 = vpop.permute.xlu0 %1255
      %v1258 = vsel %vm217, %v1252, 0.0
      %v1259 = vsel %vm218, %v1256, 0.0
      %v1260 = vadd.f32 %v1248, %v1258
      %v1261 = vadd.f32 %v1249, %v1259
      %1262 = vset.pattern.permute.xlu0 13
      %1263 = vperm.xlu0 %1262, %v1102
      %v1264 = vpop.permute.xlu0 %1263
      %1266 = vset.pattern.permute.xlu0 13
      %1267 = vperm.xlu0 %1266, %v1103
      %v1268 = vpop.permute.xlu0 %1267
      %v1270 = vsel %vm219, %v1264, 0.0
      %v1271 = vsel %vm220, %v1268, 0.0
      %v1272 = vadd.f32 %v1260, %v1270
      %v1273 = vadd.f32 %v1261, %v1271
      %1274 = vset.pattern.permute.xlu0 14
      %1275 = vperm.xlu0 %1274, %v1102
      %v1276 = vpop.permute.xlu0 %1275
      %1278 = vset.pattern.permute.xlu0 14
      %1279 = vperm.xlu0 %1278, %v1103
      %v1280 = vpop.permute.xlu0 %1279
      %v1282 = vsel %vm221, %v1276, 0.0
      %v1283 = vsel %vm222, %v1280, 0.0
      %v1284 = vadd.f32 %v1272, %v1282
      %v1285 = vadd.f32 %v1273, %v1283
      %1286 = vset.pattern.permute.xlu0 15
      %1287 = vperm.xlu0 %1286, %v1102
      %v1288 = vpop.permute.xlu0 %1287
      %1290 = vset.pattern.permute.xlu0 15
      %1291 = vperm.xlu0 %1290, %v1103
      %v1292 = vpop.permute.xlu0 %1291
      %v1294 = vsel %vm223, %v1288, 0.0
      %v1295 = vsel %vm224, %v1292, 0.0
      %v1296 = vadd.f32 %v1284, %v1294
      %v1297 = vadd.f32 %v1285, %v1295
      %1298 = vset.pattern.permute.xlu0 16
      %1299 = vperm.xlu0 %1298, %v1102
      %v1300 = vpop.permute.xlu0 %1299
      %1302 = vset.pattern.permute.xlu0 16
      %1303 = vperm.xlu0 %1302, %v1103
      %v1304 = vpop.permute.xlu0 %1303
      %v1306 = vsel %vm225, %v1300, 0.0
      %v1307 = vsel %vm226, %v1304, 0.0
      %v1308 = vadd.f32 %v1296, %v1306
      %v1309 = vadd.f32 %v1297, %v1307
      %1310 = vset.pattern.permute.xlu0 17
      %1311 = vperm.xlu0 %1310, %v1102
      %v1312 = vpop.permute.xlu0 %1311
      %1314 = vset.pattern.permute.xlu0 17
      %1315 = vperm.xlu0 %1314, %v1103
      %v1316 = vpop.permute.xlu0 %1315
      %v1318 = vsel %vm227, %v1312, 0.0
      %v1319 = vsel %vm228, %v1316, 0.0
      %v1320 = vadd.f32 %v1308, %v1318
      %v1321 = vadd.f32 %v1309, %v1319
      %1322 = vset.pattern.permute.xlu0 18
      %1323 = vperm.xlu0 %1322, %v1102
      %v1324 = vpop.permute.xlu0 %1323
      %1326 = vset.pattern.permute.xlu0 18
      %1327 = vperm.xlu0 %1326, %v1103
      %v1328 = vpop.permute.xlu0 %1327
      %v1330 = vsel %vm229, %v1324, 0.0
      %v1331 = vsel %vm230, %v1328, 0.0
      %v1332 = vadd.f32 %v1320, %v1330
      %v1333 = vadd.f32 %v1321, %v1331
      %1334 = vset.pattern.permute.xlu0 19
      %1335 = vperm.xlu0 %1334, %v1102
      %v1336 = vpop.permute.xlu0 %1335
      %1338 = vset.pattern.permute.xlu0 19
      %1339 = vperm.xlu0 %1338, %v1103
      %v1340 = vpop.permute.xlu0 %1339
      %v1342 = vsel %vm231, %v1336, 0.0
      %v1343 = vsel %vm232, %v1340, 0.0
      %v1344 = vadd.f32 %v1332, %v1342
      %v1345 = vadd.f32 %v1333, %v1343
      %1346 = vset.pattern.permute.xlu0 20
      %1347 = vperm.xlu0 %1346, %v1102
      %v1348 = vpop.permute.xlu0 %1347
      %1350 = vset.pattern.permute.xlu0 20
      %1351 = vperm.xlu0 %1350, %v1103
      %v1352 = vpop.permute.xlu0 %1351
      %v1354 = vsel %vm233, %v1348, 0.0
      %v1355 = vsel %vm234, %v1352, 0.0
      %v1356 = vadd.f32 %v1344, %v1354
      %v1357 = vadd.f32 %v1345, %v1355
      %v1358 = vsel %vm189, %v1356, -10000.0
      %v1359 = vsel %vm190, %v1357, -10000.0
      %v1360 = vsel %vm249, %v1358, -inf
      %1361 = vmax.xlane.f32.xlu0 %v1360
      %v1362 = vpop.xlane.xlu0 %1361
      %v1363 = vsel %vm249, %v1359, -inf
      %1364 = vmax.xlane.f32.xlu0 %v1363
      %v1365 = vpop.xlane.xlu0 %1364
      %v1366 = vsub.f32 %v1358, %v1362
      %v1367 = vsub.f32 %v1359, %v1365
      %v1368 = vmul.f32 %v1366, 1.442695
      %v1369 = vpow.pop %v1368
      %v1370 = vmul.f32 %v1367, 1.442695
      %v1371 = vpow.pop %v1370
      %v1372 = vsel %vm249, %v1369, 0.0
      %1373 = vadd.xlane.f32.xlu0 %v1372
      %v1374 = vpop.xlane.xlu0 %1373
      %v1375 = vsel %vm249, %v1371, 0.0
      %1376 = vadd.xlane.f32.xlu0 %v1375
      %v1377 = vpop.xlane.xlu0 %1376
      %v1378 = vrcp.pop %v1374
      %v1379 = vrcp.pop %v1377
      %v1380 = vmul.f32 %v1369, %v1378
      %v1381 = vmul.f32 %v1371, %v1379
      %v1382 = vpack.c.bf16 %v1381, %v1380
      %v1383 = vsel %vm193, %v1380, 0.0
      %v1384 = vsel %vm194, %v1381, 0.0
      %v1385 = vsel %vm249, %v1383, 0.0
      %1386 = vadd.xlane.f32.xlu0 %v1385
      %v1387 = vpop.xlane.xlu0 %1386
      %v1388 = vsel %vm249, %v1384, 0.0
      %1389 = vadd.xlane.f32.xlu0 %v1388
      %v1390 = vpop.xlane.xlu0 %1389
      %v1391 = vmul.f32 %v1387, %v638
      %v1392 = vmul.f32 %v1390, %v638
      %1393 = vrot.lane.b32.xlu0 %v245, 48
      %v1394 = vpop.permute.xlu0 %1393
      %v1397 = vsel %vm249, %v1382, 0
      %1399 = vmatprep.subr.bf16.mxu0 0
      %1400 = vmatpush1.bf16.msra.mxu0 0
      %1401 = vmatprep.subr.bf16.mxu0 0
      %1402 = vmatpush1.bf16.msra.mxu0 0
      %1403 = vmatprep.subr.bf16.mxu0 0
      %1404 = vmatpush1.bf16.msra.mxu0 0
      %1405 = vmatprep.subr.bf16.mxu0 0
      %1406 = vmatpush1.bf16.msra.mxu0 0
      %1407 = vmatprep.subr.bf16.mxu0 0
      %1408 = vmatpush1.bf16.msra.mxu0 0
      %1409 = vmatprep.subr.bf16.mxu0 0
      %1410 = vmatpush1.bf16.msra.mxu0 0
      %1411 = vmatprep.subr.bf16.mxu0 0
      %1412 = vmatpush1.bf16.msra.mxu0 0
      %1413 = vmatprep.subr.bf16.mxu0 0
      %1414 = vmatpush1.bf16.msra.mxu0 %v1394
      %1415 = vmatprep.subr.bf16.mxu0 0
      %1416 = vmatpush2.bf16.msra.mxu0 0
      %1417 = vmatprep.subr.bf16.mxu0 0
      %1418 = vmatpush2.bf16.msra.mxu0 0
      %1419 = vmatprep.subr.bf16.mxu0 0
      %1420 = vmatpush2.bf16.msra.mxu0 0
      %1421 = vmatprep.subr.bf16.mxu0 0
      %1422 = vmatpush2.bf16.msra.mxu0 0
      %1423 = vmatprep.subr.bf16.mxu0 0
      %1424 = vmatpush2.bf16.msra.mxu0 0
      %1425 = vmatprep.subr.bf16.mxu0 0
      %1426 = vmatpush2.bf16.msra.mxu0 0
      %1427 = vmatprep.subr.bf16.mxu0 0
      %1428 = vmatpush2.bf16.msra.mxu0 0
      %1429 = vmatprep.subr.bf16.mxu0 0
      %1430 = vmatpush2.bf16.msra.mxu0 0
      %1431 = vmatprep.mubr.bf16.mxu0 0
      %1432 = vmatmul.mubr.bf16.gmra.mxu0 %v1397
      %v1433 = vpop.f32.mrf.mxu0
      %v1434 = vadd.f32 %v1391, %v1433
      %v1435 = vpop.f32.mrf.mxu0
      %v1436 = vpop.f32.mrf.mxu0
      %v1437 = vadd.f32 %v1392, %v1436
      %v1438 = vpop.f32.mrf.mxu0
      %1439 = vdwg.mxu0
      %v1440 = vsel %vm195, %v1380, 0.0
      %v1441 = vsel %vm196, %v1381, 0.0
      %v1442 = vsel %vm249, %v1440, 0.0
      %1443 = vadd.xlane.f32.xlu0 %v1442
      %v1444 = vpop.xlane.xlu0 %1443
      %v1445 = vsel %vm249, %v1441, 0.0
      %1446 = vadd.xlane.f32.xlu0 %v1445
      %v1447 = vpop.xlane.xlu0 %1446
      %v1448 = vmul.f32 %v1444, %v699
      %v1449 = vmul.f32 %v1447, %v699
      %v1450 = vadd.f32 %v1434, %v1448
      %v1451 = vadd.f32 %v1437, %v1449
      %v1452 = vsel %vm197, %v1380, 0.0
      %v1453 = vsel %vm198, %v1381, 0.0
      %v1454 = vsel %vm249, %v1452, 0.0
      %1455 = vadd.xlane.f32.xlu0 %v1454
      %v1456 = vpop.xlane.xlu0 %1455
      %v1457 = vsel %vm249, %v1453, 0.0
      %1458 = vadd.xlane.f32.xlu0 %v1457
      %v1459 = vpop.xlane.xlu0 %1458
      %v1460 = vmul.f32 %v1456, %v715
      %v1461 = vmul.f32 %v1459, %v715
      %v1462 = vadd.f32 %v1450, %v1460
      %v1463 = vadd.f32 %v1451, %v1461
      %v1464 = vsel %vm199, %v1380, 0.0
      %v1465 = vsel %vm200, %v1381, 0.0
      %v1466 = vsel %vm249, %v1464, 0.0
      %1467 = vadd.xlane.f32.xlu0 %v1466
      %v1468 = vpop.xlane.xlu0 %1467
      %v1469 = vsel %vm249, %v1465, 0.0
      %1470 = vadd.xlane.f32.xlu0 %v1469
      %v1471 = vpop.xlane.xlu0 %1470
      %v1472 = vmul.f32 %v1468, %v731
      %v1473 = vmul.f32 %v1471, %v731
      %v1474 = vadd.f32 %v1462, %v1472
      %v1475 = vadd.f32 %v1463, %v1473
      %v1476 = vsel %vm201, %v1380, 0.0
      %v1477 = vsel %vm202, %v1381, 0.0
      %v1478 = vsel %vm249, %v1476, 0.0
      %1479 = vadd.xlane.f32.xlu0 %v1478
      %v1480 = vpop.xlane.xlu0 %1479
      %v1481 = vsel %vm249, %v1477, 0.0
      %1482 = vadd.xlane.f32.xlu0 %v1481
      %v1483 = vpop.xlane.xlu0 %1482
      %v1484 = vmul.f32 %v1480, %v747
      %v1485 = vmul.f32 %v1483, %v747
      %v1486 = vadd.f32 %v1474, %v1484
      %v1487 = vadd.f32 %v1475, %v1485
      %v1488 = vsel %vm203, %v1380, 0.0
      %v1489 = vsel %vm204, %v1381, 0.0
      %v1490 = vsel %vm249, %v1488, 0.0
      %1491 = vadd.xlane.f32.xlu0 %v1490
      %v1492 = vpop.xlane.xlu0 %1491
      %v1493 = vsel %vm249, %v1489, 0.0
      %1494 = vadd.xlane.f32.xlu0 %v1493
      %v1495 = vpop.xlane.xlu0 %1494
      %v1496 = vmul.f32 %v1492, %v763
      %v1497 = vmul.f32 %v1495, %v763
      %v1498 = vadd.f32 %v1486, %v1496
      %v1499 = vadd.f32 %v1487, %v1497
      %v1500 = vsel %vm205, %v1380, 0.0
      %v1501 = vsel %vm206, %v1381, 0.0
      %v1502 = vsel %vm249, %v1500, 0.0
      %1503 = vadd.xlane.f32.xlu0 %v1502
      %v1504 = vpop.xlane.xlu0 %1503
      %v1505 = vsel %vm249, %v1501, 0.0
      %1506 = vadd.xlane.f32.xlu0 %v1505
      %v1507 = vpop.xlane.xlu0 %1506
      %v1508 = vmul.f32 %v1504, %v779
      %v1509 = vmul.f32 %v1507, %v779
      %v1510 = vadd.f32 %v1498, %v1508
      %v1511 = vadd.f32 %v1499, %v1509
      %v1512 = vsel %vm207, %v1380, 0.0
      %v1513 = vsel %vm208, %v1381, 0.0
      %v1514 = vsel %vm249, %v1512, 0.0
      %1515 = vadd.xlane.f32.xlu0 %v1514
      %v1516 = vpop.xlane.xlu0 %1515
      %v1517 = vsel %vm249, %v1513, 0.0
      %1518 = vadd.xlane.f32.xlu0 %v1517
      %v1519 = vpop.xlane.xlu0 %1518
      %v1520 = vmul.f32 %v1516, %v795
      %v1521 = vmul.f32 %v1519, %v795
      %v1522 = vadd.f32 %v1510, %v1520
      %v1523 = vadd.f32 %v1511, %v1521
      %v1524 = vsel %vm209, %v1380, 0.0
      %v1525 = vsel %vm210, %v1381, 0.0
      %v1526 = vsel %vm249, %v1524, 0.0
      %1527 = vadd.xlane.f32.xlu0 %v1526
      %v1528 = vpop.xlane.xlu0 %1527
      %v1529 = vsel %vm249, %v1525, 0.0
      %1530 = vadd.xlane.f32.xlu0 %v1529
      %v1531 = vpop.xlane.xlu0 %1530
      %v1532 = vmul.f32 %v1528, %v811
      %v1533 = vmul.f32 %v1531, %v811
      %v1534 = vadd.f32 %v1522, %v1532
      %v1535 = vadd.f32 %v1523, %v1533
      %v1536 = vsel %vm211, %v1380, 0.0
      %v1537 = vsel %vm212, %v1381, 0.0
      %v1538 = vsel %vm249, %v1536, 0.0
      %1539 = vadd.xlane.f32.xlu0 %v1538
      %v1540 = vpop.xlane.xlu0 %1539
      %v1541 = vsel %vm249, %v1537, 0.0
      %1542 = vadd.xlane.f32.xlu0 %v1541
      %v1543 = vpop.xlane.xlu0 %1542
      %v1544 = vmul.f32 %v1540, %v827
      %v1545 = vmul.f32 %v1543, %v827
      %v1546 = vadd.f32 %v1534, %v1544
      %v1547 = vadd.f32 %v1535, %v1545
      %v1548 = vsel %vm213, %v1380, 0.0
      %v1549 = vsel %vm214, %v1381, 0.0
      %v1550 = vsel %vm249, %v1548, 0.0
      %1551 = vadd.xlane.f32.xlu0 %v1550
      %v1552 = vpop.xlane.xlu0 %1551
      %v1553 = vsel %vm249, %v1549, 0.0
      %1554 = vadd.xlane.f32.xlu0 %v1553
      %v1555 = vpop.xlane.xlu0 %1554
      %v1556 = vmul.f32 %v1552, %v843
      %v1557 = vmul.f32 %v1555, %v843
      %v1558 = vadd.f32 %v1546, %v1556
      %v1559 = vadd.f32 %v1547, %v1557
      %v1560 = vsel %vm215, %v1380, 0.0
      %v1561 = vsel %vm216, %v1381, 0.0
      %v1562 = vsel %vm249, %v1560, 0.0
      %1563 = vadd.xlane.f32.xlu0 %v1562
      %v1564 = vpop.xlane.xlu0 %1563
      %v1565 = vsel %vm249, %v1561, 0.0
      %1566 = vadd.xlane.f32.xlu0 %v1565
      %v1567 = vpop.xlane.xlu0 %1566
      %v1568 = vmul.f32 %v1564, %v859
      %v1569 = vmul.f32 %v1567, %v859
      %v1570 = vadd.f32 %v1558, %v1568
      %v1571 = vadd.f32 %v1559, %v1569
      %v1572 = vsel %vm217, %v1380, 0.0
      %v1573 = vsel %vm218, %v1381, 0.0
      %v1574 = vsel %vm249, %v1572, 0.0
      %1575 = vadd.xlane.f32.xlu0 %v1574
      %v1576 = vpop.xlane.xlu0 %1575
      %v1577 = vsel %vm249, %v1573, 0.0
      %1578 = vadd.xlane.f32.xlu0 %v1577
      %v1579 = vpop.xlane.xlu0 %1578
      %v1580 = vmul.f32 %v1576, %v875
      %v1581 = vmul.f32 %v1579, %v875
      %v1582 = vadd.f32 %v1570, %v1580
      %v1583 = vadd.f32 %v1571, %v1581
      %v1584 = vsel %vm219, %v1380, 0.0
      %v1585 = vsel %vm220, %v1381, 0.0
      %v1586 = vsel %vm249, %v1584, 0.0
      %1587 = vadd.xlane.f32.xlu0 %v1586
      %v1588 = vpop.xlane.xlu0 %1587
      %v1589 = vsel %vm249, %v1585, 0.0
      %1590 = vadd.xlane.f32.xlu0 %v1589
      %v1591 = vpop.xlane.xlu0 %1590
      %v1592 = vmul.f32 %v1588, %v891
      %v1593 = vmul.f32 %v1591, %v891
      %v1594 = vadd.f32 %v1582, %v1592
      %v1595 = vadd.f32 %v1583, %v1593
      %v1596 = vsel %vm221, %v1380, 0.0
      %v1597 = vsel %vm222, %v1381, 0.0
      %v1598 = vsel %vm249, %v1596, 0.0
      %1599 = vadd.xlane.f32.xlu0 %v1598
      %v1600 = vpop.xlane.xlu0 %1599
      %v1601 = vsel %vm249, %v1597, 0.0
      %1602 = vadd.xlane.f32.xlu0 %v1601
      %v1603 = vpop.xlane.xlu0 %1602
      %v1604 = vmul.f32 %v1600, %v907
      %v1605 = vmul.f32 %v1603, %v907
      %v1606 = vadd.f32 %v1594, %v1604
      %v1607 = vadd.f32 %v1595, %v1605
      %v1608 = vsel %vm223, %v1380, 0.0
      %v1609 = vsel %vm224, %v1381, 0.0
      %v1610 = vsel %vm249, %v1608, 0.0
      %1611 = vadd.xlane.f32.xlu0 %v1610
      %v1612 = vpop.xlane.xlu0 %1611
      %v1613 = vsel %vm249, %v1609, 0.0
      %1614 = vadd.xlane.f32.xlu0 %v1613
      %v1615 = vpop.xlane.xlu0 %1614
      %v1616 = vmul.f32 %v1612, %v923
      %v1617 = vmul.f32 %v1615, %v923
      %v1618 = vadd.f32 %v1606, %v1616
      %v1619 = vadd.f32 %v1607, %v1617
      %v1620 = vsel %vm225, %v1380, 0.0
      %v1621 = vsel %vm226, %v1381, 0.0
      %v1622 = vsel %vm249, %v1620, 0.0
      %1623 = vadd.xlane.f32.xlu0 %v1622
      %v1624 = vpop.xlane.xlu0 %1623
      %v1625 = vsel %vm249, %v1621, 0.0
      %1626 = vadd.xlane.f32.xlu0 %v1625
      %v1627 = vpop.xlane.xlu0 %1626
      %v1628 = vmul.f32 %v1624, %v939
      %v1629 = vmul.f32 %v1627, %v939
      %v1630 = vadd.f32 %v1618, %v1628
      %v1631 = vadd.f32 %v1619, %v1629
      %v1632 = vsel %vm227, %v1380, 0.0
      %v1633 = vsel %vm228, %v1381, 0.0
      %v1634 = vsel %vm249, %v1632, 0.0
      %1635 = vadd.xlane.f32.xlu0 %v1634
      %v1636 = vpop.xlane.xlu0 %1635
      %v1637 = vsel %vm249, %v1633, 0.0
      %1638 = vadd.xlane.f32.xlu0 %v1637
      %v1639 = vpop.xlane.xlu0 %1638
      %v1640 = vmul.f32 %v1636, %v955
      %v1641 = vmul.f32 %v1639, %v955
      %v1642 = vadd.f32 %v1630, %v1640
      %v1643 = vadd.f32 %v1631, %v1641
      %v1644 = vsel %vm229, %v1380, 0.0
      %v1645 = vsel %vm230, %v1381, 0.0
      %v1646 = vsel %vm249, %v1644, 0.0
      %1647 = vadd.xlane.f32.xlu0 %v1646
      %v1648 = vpop.xlane.xlu0 %1647
      %v1649 = vsel %vm249, %v1645, 0.0
      %1650 = vadd.xlane.f32.xlu0 %v1649
      %v1651 = vpop.xlane.xlu0 %1650
      %v1652 = vmul.f32 %v1648, %v971
      %v1653 = vmul.f32 %v1651, %v971
      %v1654 = vadd.f32 %v1642, %v1652
      %v1655 = vadd.f32 %v1643, %v1653
      %v1656 = vsel %vm231, %v1380, 0.0
      %v1657 = vsel %vm232, %v1381, 0.0
      %v1658 = vsel %vm249, %v1656, 0.0
      %1659 = vadd.xlane.f32.xlu0 %v1658
      %v1660 = vpop.xlane.xlu0 %1659
      %v1661 = vsel %vm249, %v1657, 0.0
      %1662 = vadd.xlane.f32.xlu0 %v1661
      %v1663 = vpop.xlane.xlu0 %1662
      %v1664 = vmul.f32 %v1660, %v987
      %v1665 = vmul.f32 %v1663, %v987
      %v1666 = vadd.f32 %v1654, %v1664
      %v1667 = vadd.f32 %v1655, %v1665
      %v1668 = vsel %vm233, %v1380, 0.0
      %v1669 = vsel %vm234, %v1381, 0.0
      %v1670 = vsel %vm249, %v1668, 0.0
      %1671 = vadd.xlane.f32.xlu0 %v1670
      %v1672 = vpop.xlane.xlu0 %1671
      %v1673 = vsel %vm249, %v1669, 0.0
      %1674 = vadd.xlane.f32.xlu0 %v1673
      %v1675 = vpop.xlane.xlu0 %1674
      %v1676 = vmul.f32 %v1672, %v1003
      %v1677 = vmul.f32 %v1675, %v1003
      %v1678 = vadd.f32 %v1666, %v1676
      %v1679 = vadd.f32 %v1667, %v1677
      %1682 = vrot.lane.b32.xlu0 %v1678, 16
      %v1683 = vpop.permute.xlu0 %1682
      %1684 = vrot.lane.b32.xlu0 %v1679, 16
      %v1685 = vpop.permute.xlu0 %1684
      %v1688 = vsel %vm249, %v1006, %v1683
      %v1689 = vsel %vm249, %v1007, %v1685
      %vm1690 = vcmask 261120
      %1691 = vst.msk [vmem:[%s177] sm:$0xff] %vm1690, %v1688
      %1692 = vst.msk [vmem:[%s177 + $0x8] sm:$0xff] %vm1690, %v1689
      %p1693 = scmp.lt.s32.totalorder %s21, 1
      %s1694 = scalar_select %p1693, %s21, 1
      %s1695 = smul.addr %s1694, 2
      %s1696 = smul.addr %s1695, 8
      %s1697 = scalar_lea.vmem %s4, %s1696
      // Predicated region
      $region33: #{_lambda_.14} parent=31 // pred_check
        %p1698 = pneg %p107
      $region34: #{_lambda_.14} parent=31 // pred_check_branch
        %1700 = sbr.rel (%p1698) target = $region36
      $region35: #{_lambda_.14} parent=31 // pred_region
        _
      $region36: #{_lambda_.14} parent=31 // pred_fallthru
        _
    $region32: #{_lambda_.14} parent=5 // pred_fallthru
      _
    %p1701 = scmp.le.s32.totalorder 2, %s16
    // Predicated region
    $region37: #{_lambda_.14} parent=5 // pred_check
      %p1702 = pneg %p1701
    $region38: #{_lambda_.14} parent=5 // pred_check_branch
      %1704 = sbr.rel (%p1702) target = $region40
    $region39: #{_lambda_.14} parent=5 // pred_region
      %s1705 = ssub.s32 %s16, 2
      // Predicated region
      $region41: #{_lambda_.14} parent=39 // pred_check
        %p1706 = pneg %p113
      $region42: #{_lambda_.14} parent=39 // pred_check_branch
        %1708 = sbr.rel (%p1706) target = $region44
      $region43: #{_lambda_.14} parent=39 // pred_region
        %p1709 = scmp.lt.s32.totalorder %s22, 1
        %s1710 = scalar_select %p1709, %s22, 1
        %s1711 = smul.addr %s1710, 2
        %s1712 = smul.addr %s1711, 8
        %s1713 = scalar_lea.vmem %s4, %s1712
      $region44: #{_lambda_.14} parent=39 // pred_fallthru
        _
    $region40: #{_lambda_.14} parent=5 // pred_fallthru
      _
  $region6: #{_lambda_.14} parent=0 // loop_footer
    %s20 = sadd.s32 1, %s16
  $region7: #{_lambda_.14} parent=0 // loop_footer_branch
    %15 = sbr.rel target = $region3
  $region8: #{_lambda_.14} parent=0 // loop_exit
    _

// kernel: _lambda_.23
$region0: #{_lambda_.23}
  #allocation0 [shape = 'u32[]', space=smem, size = 0x4, offset = 0x4, fixed_abs, tag = 'smem constant byte address 0x4 - core index']
  #allocation1 [shape = 'u32[144,128]{1,0:T(1,128)}', space=vmem, size = 0x12000, scoped, tag = 'internal scratch']
  #allocation2 [shape = 'f32[32,8]{1,0:T(8,128)}', space=vmem, size = 0x4000, scoped, tag = 'scratch operand']
  %s0 = inlined_call_operand.vmem [shape: f32[32,32], index: 0, kind: input, shape index: {}]
  %s1 = inlined_call_operand.vmem [shape: f32[32,8], index: 1, kind: input, shape index: {}]
  %s2 = inlined_call_operand.vmem [shape: f32[1,8], index: 2, kind: input, shape index: {}]
  %s3 = inlined_call_operand.vmem [shape: f32[32,1], index: 3, kind: input, shape index: {}]
  %s4 = inlined_call_operand.vmem [shape: f32[32,8], index: 4, kind: output, shape index: {}]
  %s5 = sld [smem:[#allocation0]]
  $region34: #{_lambda_.23} parent=0
    _
  %s7 = ssub.s32 1, %s5
  %s8 = scalar_select 0, %s7, %s5
  // Predicated region
  $region2: #{_lambda_.23} parent=0 // pred_check
    _
  $region3: #{_lambda_.23} parent=0 // pred_check_branch
    %10 = sbr.rel (0) target = $region5
  $region4: #{_lambda_.23} parent=0 // pred_region
    _
  $region5: #{_lambda_.23} parent=0 // pred_fallthru
    _
  // Predicated region
  $region6: #{_lambda_.23} parent=0 // pred_check
    _
  $region7: #{_lambda_.23} parent=0 // pred_check_branch
    %12 = sbr.rel (0) target = $region9
  $region8: #{_lambda_.23} parent=0 // pred_region
    _
  $region9: #{_lambda_.23} parent=0 // pred_fallthru
    _
  // Predicated region
  $region10: #{_lambda_.23} parent=0 // pred_check
    _
  $region11: #{_lambda_.23} parent=0 // pred_check_branch
    %14 = sbr.rel (0) target = $region13
  $region12: #{_lambda_.23} parent=0 // pred_region
    _
  $region13: #{_lambda_.23} parent=0 // pred_fallthru
    _
  // Predicated region
  $region14: #{_lambda_.23} parent=0 // pred_check
    _
  $region15: #{_lambda_.23} parent=0 // pred_check_branch
    %16 = sbr.rel (0) target = $region17
  $region16: #{_lambda_.23} parent=0 // pred_region
    _
  $region17: #{_lambda_.23} parent=0 // pred_fallthru
    _
  %p18 = scmp.eq.s32.totalorder 0, 0
  // Predicated region
  $region18: #{_lambda_.23} parent=0 // pred_check
    %p19 = pneg %p18
  $region19: #{_lambda_.23} parent=0 // pred_check_branch
    %21 = sbr.rel (%p19) target = $region21
  $region20: #{_lambda_.23} parent=0 // pred_region
    %vm22 = vcmask 64512
    %23 = vst.msk [vmem:[#allocation2] sm:$0xff] %vm22, 0.0
    %24 = vst.msk [vmem:[#allocation2 + $0x8] sm:$0xff] %vm22, 0.0
    %25 = vst.msk [vmem:[#allocation2 + $0x10] sm:$0xff] %vm22, 0.0
    %26 = vst.msk [vmem:[#allocation2 + $0x18] sm:$0xff] %vm22, 0.0
  $region21: #{_lambda_.23} parent=0 // pred_fallthru
    _
  %v27 = vld [vmem:[#allocation2] sm:$0xff]
  %v28 = vld [vmem:[#allocation2 + $0x8] sm:$0xff]
  %v29 = vld [vmem:[#allocation2 + $0x10] sm:$0xff]
  %v30 = vld [vmem:[#allocation2 + $0x18] sm:$0xff]
  %v31 = vld [vmem:[%s0] sm:$0xff]
  %v32 = vld [vmem:[%s0 + $0x8] sm:$0xff]
  %v33 = vld [vmem:[%s0 + $0x10] sm:$0xff]
  %v34 = vld [vmem:[%s0 + $0x18] sm:$0xff]
  %v35 = vpack.c.bf16 %v32, %v31
  %v36 = vpack.c.bf16 %v34, %v33
  %v37 = vld [vmem:[%s1] sm:$0xff]
  %v38 = vld [vmem:[%s1 + $0x8] sm:$0xff]
  %v39 = vld [vmem:[%s1 + $0x10] sm:$0xff]
  %v40 = vld [vmem:[%s1 + $0x18] sm:$0xff]
  %v41 = vpack.c.bf16 %v38, %v37
  %v42 = vpack.c.bf16 %v40, %v39
  %vm43 = vcmask 261120
  %v45 = vsel %vm43, %v35, 0
  %v48 = vsel %vm43, %v36, 0
  %50 = vmatprep.subr.bf16.mxu0 0
  %51 = vmatpush1.bf16.msra.mxu0 0
  %52 = vmatprep.subr.bf16.mxu0 0
  %53 = vmatpush1.bf16.msra.mxu0 0
  %54 = vmatprep.subr.bf16.mxu0 0
  %55 = vmatpush1.bf16.msra.mxu0 0
  %56 = vmatprep.subr.bf16.mxu0 0
  %57 = vmatpush1.bf16.msra.mxu0 0
  %58 = vmatprep.subr.bf16.mxu0 0
  %59 = vmatpush1.bf16.msra.mxu0 0
  %60 = vmatprep.subr.bf16.mxu0 0
  %61 = vmatpush1.bf16.msra.mxu0 0
  %62 = vmatprep.subr.bf16.mxu0 0
  %63 = vmatpush1.bf16.msra.mxu0 %v42
  %64 = vmatprep.subr.bf16.mxu0 0
  %65 = vmatpush1.bf16.msra.mxu0 %v41
  %66 = vmatprep.subr.bf16.mxu0 0
  %67 = vmatpush2.bf16.msra.mxu0 0
  %68 = vmatprep.subr.bf16.mxu0 0
  %69 = vmatpush2.bf16.msra.mxu0 0
  %70 = vmatprep.subr.bf16.mxu0 0
  %71 = vmatpush2.bf16.msra.mxu0 0
  %72 = vmatprep.subr.bf16.mxu0 0
  %73 = vmatpush2.bf16.msra.mxu0 0
  %74 = vmatprep.subr.bf16.mxu0 0
  %75 = vmatpush2.bf16.msra.mxu0 0
  %76 = vmatprep.subr.bf16.mxu0 0
  %77 = vmatpush2.bf16.msra.mxu0 0
  %78 = vmatprep.subr.bf16.mxu0 0
  %79 = vmatpush2.bf16.msra.mxu0 0
  %80 = vmatprep.subr.bf16.mxu0 0
  %81 = vmatpush2.bf16.msra.mxu0 0
  %82 = vmatprep.mubr.bf16.mxu0 0
  %83 = vmatmul.mubr.bf16.gmra.mxu0 %v45
  %v84 = vpop.f32.mrf.mxu0
  %v85 = vadd.f32 0.0, %v84
  %v86 = vpop.f32.mrf.mxu0
  %v87 = vpop.f32.mrf.mxu0
  %v88 = vadd.f32 0.0, %v87
  %v89 = vpop.f32.mrf.mxu0
  %90 = vmatprep.mubr.bf16.mxu0 0
  %91 = vmatmul.mubr.bf16.gmra.mxu0 %v48
  %v92 = vpop.f32.mrf.mxu0
  %v93 = vadd.f32 0.0, %v92
  %v94 = vpop.f32.mrf.mxu0
  %v95 = vpop.f32.mrf.mxu0
  %v96 = vadd.f32 0.0, %v95
  %v97 = vpop.f32.mrf.mxu0
  %98 = vdwg.mxu0
  %v99 = vadd.f32 %v27, %v85
  %v100 = vadd.f32 %v28, %v88
  %v101 = vadd.f32 %v29, %v93
  %v102 = vadd.f32 %v30, %v96
  %vm103 = vcmask 64512
  %104 = vst.msk [vmem:[#allocation2] sm:$0xff] %vm103, %v99
  %105 = vst.msk [vmem:[#allocation2 + $0x8] sm:$0xff] %vm103, %v100
  %106 = vst.msk [vmem:[#allocation2 + $0x10] sm:$0xff] %vm103, %v101
  %107 = vst.msk [vmem:[#allocation2 + $0x18] sm:$0xff] %vm103, %v102
  // Predicated region
  $region22: #{_lambda_.23} parent=0 // pred_check
    %p108 = pneg %p18
  $region23: #{_lambda_.23} parent=0 // pred_check_branch
    %110 = sbr.rel (%p108) target = $region25
  $region24: #{_lambda_.23} parent=0 // pred_region
    %v111 = vld [vmem:[#allocation2] sm:$0xff]
    %v112 = vld [vmem:[#allocation2 + $0x8] sm:$0xff]
    %v113 = vld [vmem:[#allocation2 + $0x10] sm:$0xff]
    %v114 = vld [vmem:[#allocation2 + $0x18] sm:$0xff]
    %v115 = vld [vmem:[%s2] sm:$0x1]
    %v117 = vlaneseq
    %v118 = vshrl.u32 %v117, 7
    %v119 = vsub.s32 0, %v118
    %v120 = vrot.slane %v115, %v119
    %v122 = vadd.f32 %v111, %v120
    %v123 = vadd.f32 %v112, %v120
    %v124 = vadd.f32 %v113, %v120
    %v125 = vadd.f32 %v114, %v120
    %v126 = vld [vmem:[%s3] sm:$0xff]
    %v127 = vld [vmem:[%s3 + $0x8] sm:$0xff]
    %v128 = vld [vmem:[%s3 + $0x10] sm:$0xff]
    %v129 = vld [vmem:[%s3 + $0x18] sm:$0xff]
    %131 = vset.pattern.permute.xlu0 0
    %132 = vperm.xlu0 %131, %v126
    %v133 = vpop.permute.xlu0 %132
    %136 = vset.pattern.permute.xlu0 0
    %137 = vperm.xlu0 %136, %v127
    %v138 = vpop.permute.xlu0 %137
    %141 = vset.pattern.permute.xlu0 0
    %142 = vperm.xlu0 %141, %v128
    %v143 = vpop.permute.xlu0 %142
    %146 = vset.pattern.permute.xlu0 0
    %147 = vperm.xlu0 %146, %v129
    %v148 = vpop.permute.xlu0 %147
    %v150 = vmul.f32 %v122, %v133
    %v151 = vmul.f32 %v123, %v138
    %v152 = vmul.f32 %v124, %v143
    %v153 = vmul.f32 %v125, %v148
    %154 = vst.msk [vmem:[%s4] sm:$0xff] %vm103, %v150
    %155 = vst.msk [vmem:[%s4 + $0x8] sm:$0xff] %vm103, %v151
    %156 = vst.msk [vmem:[%s4 + $0x10] sm:$0xff] %vm103, %v152
    %157 = vst.msk [vmem:[%s4 + $0x18] sm:$0xff] %vm103, %v153
  $region25: #{_lambda_.23} parent=0 // pred_fallthru
    _
  // Predicated region
  $region26: #{_lambda_.23} parent=0 // pred_check
    _
  $region27: #{_lambda_.23} parent=0 // pred_check_branch
    %159 = sbr.rel (0) target = $region29
  $region28: #{_lambda_.23} parent=0 // pred_region
    _
  $region29: #{_lambda_.23} parent=0 // pred_fallthru
    _
  // Predicated region
  $region30: #{_lambda_.23} parent=0 // pred_check
    _
  $region31: #{_lambda_.23} parent=0 // pred_check_branch
    %161 = sbr.rel (0) target = $region33
  $region32: #{_lambda_.23} parent=0 // pred_region
    _
  $region33: #{_lambda_.23} parent=0 // pred_fallthru
    _

</llo_original>
